<compile_context>
chip_gen: v7x
topology: tpu7x:2x2x1
jax: 0.10.0
libtpu: 0.0.40
codegen_flags: <defaults>
</compile_context>

<pallas_src>
import math
from functools import partial

import numpy as np
import jax
import jax.numpy as jnp
from jax.experimental import pallas as pl
from jax.experimental.pallas import tpu as pltpu


# ----------------------------------------------------------------------------
# Bounded-range sine.  The Fourier pre-activation magnitude is bounded at
# trace time (sum_k |weight_scale_k|*|coords| + pi), so a cheap
# round-to-period reduction + odd degree-9 polynomial replaces XLA's generic
# heavyweight sin.  Max error ~1e-5 on [-pi, pi].
# ----------------------------------------------------------------------------
def _fit_sin_coeffs(degree=9, samples=4001):
    x = np.linspace(-np.pi, np.pi, samples)
    powers = np.arange(1, degree + 1, 2)
    a = np.stack([x ** p for p in powers], axis=1)
    c, *_ = np.linalg.lstsq(a, np.sin(x), rcond=None)
    return tuple(float(v) for v in c)


_SIN_COEFFS = _fit_sin_coeffs()
_TWO_PI = 2.0 * math.pi


def _poly_sin(x, coeffs):
    """sin(x) via period reduction + odd polynomial (pure VPU ops)."""
    n = jnp.floor(x * (1.0 / _TWO_PI) + 0.5)
    r = x - n * _TWO_PI                        # r in [-pi, pi]
    r2 = r * r
    p = coeffs[-1]
    for c in coeffs[-2::-1]:
        p = p * r2 + c
    return p * r


# ----------------------------------------------------------------------------
# Kernel
# ----------------------------------------------------------------------------
def _mfn_kernel(coords_ref, wf_ref, bf_ref, wl_ref, bl_ref, wo_ref, bo_ref,
                out_ref, *, hidden, n_filters, output_act, sin_coeffs):
    """Fused MFN forward for one batch tile.

    coords_ref : (TB, Fin)   f32   coordinates tile
    wf_ref     : (Fin, NF*H) f32   Fourier weights, filters stacked on lanes
    bf_ref     : (1, NF*H)   f32   Fourier biases
    wl_ref     : (NL, H, H)  bf16  hidden linears (pre-transposed)
    bl_ref     : (NL, H)     f32   hidden linear biases
    wo_ref     : (H, OUT)    bf16  output linear (pre-transposed)
    bo_ref     : (1, OUT)    f32   output bias
    out_ref    : (TB, OUT)   f32
    """
    coords = coords_ref[...]                    # (TB, Fin) f32
    wf = wf_ref[...]                            # (Fin, NF*H) f32
    fin = coords.shape[1]

    # All Fourier pre-activations in one lane-dense pass over (TB, NF*H):
    # only Fin coords-column broadcasts (not NF*Fin) and one fused sin.
    # Fin is tiny (1-3 coordinate dims), so this stays an unrolled VPU FMA
    # rather than an under-fed K=Fin MXU matmul; coords stays f32 (bf16 would
    # corrupt the high-frequency sin arguments).
    pre = coords[:, 0:1] * wf[0:1, :]
    for k in range(1, fin):
        pre = pre + coords[:, k:k + 1] * wf[k:k + 1, :]
    zall = _poly_sin(pre + bf_ref[...], sin_coeffs)        # (TB, NF*H) f32

    # z stays in VMEM/vregs for the whole stack -- no HBM round trips.
    # Hidden/output matmuls: bf16 operands on the MXU, f32 accumulation.
    # hidden is a multiple of 128 -> the zall slices are lane-tile aligned.
    z = zall[:, :hidden]
    for i in range(1, n_filters):
        lin = jnp.dot(z.astype(jnp.bfloat16), wl_ref[i - 1],
                      preferred_element_type=jnp.float32)
        lin = lin + bl_ref[i - 1:i, :]
        z = zall[:, i * hidden:(i + 1) * hidden] * lin

    y = jnp.dot(z.astype(jnp.bfloat16), wo_ref[...],
                preferred_element_type=jnp.float32) + bo_ref[...]
    if output_act:
        y = _poly_sin(y, sin_coeffs)
    out_ref[...] = y.astype(out_ref.dtype)


# ----------------------------------------------------------------------------
# Wrapper
# ----------------------------------------------------------------------------
def mfn_forward(coords, params, *, tile_b=1024, output_act=False):
    """coords: [B, Fin] f32 -> [B, out_size] f32."""
    wf, bf, wl, bl, wo, bo = params
    B, fin = coords.shape
    hidden = wl.shape[1]
    n_filters = wf.shape[1] // hidden
    out_size = wo.shape[1]

    # bf16 matmul operands (MXU-native on all generations); accumulation in
    # the kernel stays f32 via preferred_element_type.
    wl_bf16 = wl.astype(jnp.bfloat16)
    wo_bf16 = wo.astype(jnp.bfloat16)

    # Batch tiling: sublane-aligned tile capped at ~B/2 so the "parallel"
    # grid has >=2 steps whenever possible (both v7x TensorCores used), then
    # pad the batch up to a tile multiple and slice the result back.
    half = -(-B // 2)                                   # ceil(B/2)
    tb = max(8, min(tile_b, ((half + 7) // 8) * 8))
    bp = ((B + tb - 1) // tb) * tb
    coords_p = coords if bp == B else jnp.pad(coords, ((0, bp - B), (0, 0)))

    kernel = partial(_mfn_kernel, hidden=hidden, n_filters=n_filters,
                     output_act=output_act, sin_coeffs=_SIN_COEFFS)

    out = pl.pallas_call(
        kernel,
        out_shape=jax.ShapeDtypeStruct((bp, out_size), jnp.float32),
        grid_spec=pltpu.PrefetchScalarGridSpec(
            num_scalar_prefetch=0,
            grid=(bp // tb,),
            in_specs=[
                # batch-tiled, double-buffered by the pipeline
                pl.BlockSpec((tb, fin), lambda i: (i, 0)),
                # weights/biases: constant index maps -> VMEM-resident
                pl.BlockSpec(wf.shape, lambda i: (0, 0)),
                pl.BlockSpec(bf.shape, lambda i: (0, 0)),
                pl.BlockSpec(wl_bf16.shape, lambda i: (0, 0, 0)),
                pl.BlockSpec(bl.shape, lambda i: (0, 0)),
                pl.BlockSpec(wo_bf16.shape, lambda i: (0, 0)),
                pl.BlockSpec(bo.shape, lambda i: (0, 0)),
            ],
            out_specs=pl.BlockSpec((tb, out_size), lambda i: (i, 0)),
        ),
        compiler_params=pltpu.CompilerParams(
            dimension_semantics=("parallel",),
            # > v5e's 16 MiB scoped default, < v7x's 64 MiB physical VMEM.
            vmem_limit_bytes=48 * 1024 * 1024,
        ),
    )(coords_p, wf, bf, wl_bf16, bl, wo_bf16, bo)
    return out[:B] if bp != B else out


def mfn_base_forward(model_input, params, *, output_act=False, tile_b=1024):
    """Mirror of MFNBase.forward's dict interface."""
    # TODO(synk): torch's `.clone().detach().requires_grad_(True)` autograd
    # bookkeeping has no Pallas equivalent; JAX handles grads functionally.
    coords = model_input['coords']
    out = mfn_forward(coords, params, tile_b=tile_b, output_act=output_act)
    return {'model_in': dict(model_input), 'model_out': {'output': out}}


# ----------------------------------------------------------------------------
# Parameter init (deterministic re-implementation of the PyTorch inits)
# ----------------------------------------------------------------------------
def _init_fourier_wt(key, in_features, out_features, weight_scale,
                     quantization_interval=2 * math.pi):
    """Returns W.T with shape (in_features, out_features): integer-quantized
    frequencies as in the BACON FourierLayer."""
    rows = []
    row_keys = jax.random.split(key, in_features)
    for k in range(in_features):
        r = 2 * weight_scale[k] / quantization_interval
        assert math.isclose(r, round(r)), \
            'weight_scale should be divisible by quantization interval'
        hi = int(round(r)) + 1
        init = jax.random.randint(row_keys[k], (out_features,), 0, hi)
        rows.append(init.astype(jnp.float32) * quantization_interval
                    - weight_scale[k])
    return jnp.stack(rows, axis=0)


def _init_linear(key, fan_in, fan_out):
    """nn.Linear with mfn_weights_init: weight ~ U(+-sqrt(6/fan_in)),
    bias ~ U(+-1/sqrt(fan_in)) (PyTorch default).  Returned pre-transposed."""
    kw, kb = jax.random.split(key)
    bw = math.sqrt(6.0 / fan_in)
    w_t = jax.random.uniform(kw, (fan_in, fan_out), jnp.float32, -bw, bw)
    bb = 1.0 / math.sqrt(fan_in)
    b = jax.random.uniform(kb, (fan_out,), jnp.float32, -bb, bb)
    return w_t, b


def init_mfn_params(key, in_features, hidden, out_size, n_layers, weight_scale,
                    quantization_interval=2 * math.pi):
    assert n_layers >= 1
    n_filters = n_layers + 1
    kf, kfb, kl, ko = jax.random.split(key, 4)

    f_keys = jax.random.split(kf, n_filters)
    fb_keys = jax.random.split(kfb, n_filters)
    # Filters stacked along the hidden/lane axis: wf[:, i*H:(i+1)*H] = Wf_i.T
    wf = jnp.concatenate(
        [_init_fourier_wt(f_keys[i], in_features, hidden, weight_scale,
                          quantization_interval) for i in range(n_filters)],
        axis=1)                                           # (Fin, n_filters*H)
    bf = jnp.concatenate(
        [jax.random.uniform(fb_keys[i], (hidden,), jnp.float32,
                            -math.pi, math.pi) for i in range(n_filters)],
        axis=0)[None, :]                                  # (1, n_filters*H)

    l_keys = jax.random.split(kl, n_layers)
    wls, bls = zip(*[_init_linear(l_keys[i], hidden, hidden)
                     for i in range(n_layers)])
    wl = jnp.stack(wls, axis=0)                           # (n_layers, H, H)
    bl = jnp.stack(bls, axis=0)                           # (n_layers, H)

    wo, bo = _init_linear(ko, hidden, out_size)           # (H, OUT), (OUT,)
    return wf, bf, wl, bl, wo, bo[None, :]


# ----------------------------------------------------------------------------
# Pure-JAX references
# ----------------------------------------------------------------------------
def mfn_reference(coords, params, *, output_act=False, bf16_matmuls=False):
    """Module semantics.  bf16_matmuls=True mirrors the kernel's intentional
    bf16 MXU operands (f32 accumulation) for a tight comparison."""
    wf, bf, wl, bl, wo, bo = params
    hidden = wl.shape[1]
    n_filters = wf.shape[1] // hidden
    hp = jax.lax.Precision.HIGHEST

    def mm(a, b):
        if bf16_matmuls:
            return jnp.dot(a.astype(jnp.bfloat16), b.astype(jnp.bfloat16),
                           preferred_element_type=jnp.float32)
        return jnp.dot(a, b, precision=hp)

    zall = jnp.sin(jnp.dot(coords, wf, precision=hp) + bf)
    z = zall[:, :hidden]
    for i in range(1, n_filters):
        z = zall[:, i * hidden:(i + 1) * hidden] * (mm(z, wl[i - 1])
                                                    + bl[i - 1][None, :])
    y = mm(z, wo) + bo
    if output_act:
        y = jnp.sin(y)
    return y


# ----------------------------------------------------------------------------
if __name__ == "__main__":
    key = jax.random.PRNGKey(0)
    k_param, k_x = jax.random.split(key)

    in_features = 2            # 2-D coordinates
    hidden = 256               # lane-dense hidden size (multiple of 128)
    out_size = 128             # lane-dense output slab (multiple of 128)
    n_layers = 2               # -> 3 Fourier filters
    batch = 512
    weight_scale = [4 * math.pi] * in_features

    params = init_mfn_params(k_param, in_features, hidden, out_size,
                             n_layers, weight_scale)
    coords = jax.random.uniform(k_x, (batch, in_features), jnp.float32,
                                -1.0, 1.0)

    result = mfn_base_forward({'coords': coords}, params, output_act=False)
    out = jax.block_until_ready(result['model_out']['output'])
    assert out.shape == (batch, out_size)

    # Tight check against a reference with the same intentional bf16 matmul
    # operands (isolates kernel correctness from the deliberate quantization),
    # plus a looser check against the full-f32 module semantics.
    ref_q = mfn_reference(coords, params, output_act=False, bf16_matmuls=True)
    ref_f = mfn_reference(coords, params, output_act=False, bf16_matmuls=False)
    err_q = float(jnp.max(jnp.abs(out - ref_q)))
    err_f = float(jnp.max(jnp.abs(out - ref_f)))
    assert jnp.allclose(out, ref_q, atol=1e-2, rtol=1e-2), \
        f"mismatch vs bf16-matmul reference (max err {err_q})"
    assert jnp.allclose(out, ref_f, atol=5e-2, rtol=5e-2), \
        f"mismatch vs f32 reference (max err {err_f})"

    # Irregular batch: exercises the pad-to-tile path and the >=2-step grid.
    out_odd = jax.block_until_ready(mfn_forward(coords[:200], params))
    assert out_odd.shape == (200, out_size)
    assert jnp.allclose(out_odd, ref_q[:200], atol=1e-2, rtol=1e-2), \
        "mismatch on padded (irregular) batch"

    print("KERNEL_OK")
</pallas_src>

<mosaic_0001>
module attributes {stable_mosaic.version = 11 : i64} {
  func.func @_mfn_kernel(%arg0: i32, %arg1: memref<256x2xf32, #tpu.memory_space<vmem>>, %arg2: memref<2x768xf32, #tpu.memory_space<vmem>>, %arg3: memref<1x768xf32, #tpu.memory_space<vmem>>, %arg4: memref<2x256x256xbf16, #tpu.memory_space<vmem>>, %arg5: memref<2x256xf32, #tpu.memory_space<vmem>>, %arg6: memref<256x128xbf16, #tpu.memory_space<vmem>>, %arg7: memref<1x128xf32, #tpu.memory_space<vmem>>, %arg8: memref<256x128xf32, #tpu.memory_space<vmem>>) attributes {dimension_semantics = [#tpu.dimension_semantics<parallel>], iteration_bounds = array<i64: 2>, scalar_prefetch = 0 : i64, scratch_operands = 0 : i64, tpu.core_type = #tpu.core_type<tc>, window_params = [{transform_indices = @transform_0, window_bounds = array<i64: 256, 2>}, {pipeline_mode = #tpu.pipeline_mode<synchronous>, transform_indices = @transform_1, window_bounds = array<i64: 2, 768>}, {pipeline_mode = #tpu.pipeline_mode<synchronous>, transform_indices = @transform_2, window_bounds = array<i64: 1, 768>}, {pipeline_mode = #tpu.pipeline_mode<synchronous>, transform_indices = @transform_3, window_bounds = array<i64: 2, 256, 256>}, {pipeline_mode = #tpu.pipeline_mode<synchronous>, transform_indices = @transform_4, window_bounds = array<i64: 2, 256>}, {pipeline_mode = #tpu.pipeline_mode<synchronous>, transform_indices = @transform_5, window_bounds = array<i64: 256, 128>}, {pipeline_mode = #tpu.pipeline_mode<synchronous>, transform_indices = @transform_6, window_bounds = array<i64: 1, 128>}, {transform_indices = @transform_7, window_bounds = array<i64: 256, 128>}]} {
    %c0 = arith.constant 0 : index
    %c0_0 = arith.constant 0 : index
    %0 = vector.load %arg1[%c0, %c0_0] : memref<256x2xf32, #tpu.memory_space<vmem>>, vector<256x2xf32>
    %c0_1 = arith.constant 0 : index
    %c0_2 = arith.constant 0 : index
    %1 = vector.load %arg2[%c0_1, %c0_2] : memref<2x768xf32, #tpu.memory_space<vmem>>, vector<2x768xf32>
    %2 = vector.extract_strided_slice %0 {offsets = [0, 0], sizes = [256, 1], strides = [1, 1]} : vector<256x2xf32> to vector<256x1xf32>
    %3 = vector.extract_strided_slice %1 {offsets = [0, 0], sizes = [1, 768], strides = [1, 1]} : vector<2x768xf32> to vector<1x768xf32>
    %4 = vector.broadcast %2 : vector<256x1xf32> to vector<256x768xf32>
    %5 = vector.broadcast %3 : vector<1x768xf32> to vector<256x768xf32>
    %6 = arith.mulf %4, %5 : vector<256x768xf32>
    %7 = vector.extract_strided_slice %0 {offsets = [0, 1], sizes = [256, 1], strides = [1, 1]} : vector<256x2xf32> to vector<256x1xf32>
    %8 = vector.extract_strided_slice %1 {offsets = [1, 0], sizes = [1, 768], strides = [1, 1]} : vector<2x768xf32> to vector<1x768xf32>
    %9 = vector.broadcast %7 : vector<256x1xf32> to vector<256x768xf32>
    %10 = vector.broadcast %8 : vector<1x768xf32> to vector<256x768xf32>
    %11 = arith.mulf %9, %10 : vector<256x768xf32>
    %12 = arith.addf %6, %11 : vector<256x768xf32>
    %c0_3 = arith.constant 0 : index
    %c0_4 = arith.constant 0 : index
    %13 = vector.load %arg3[%c0_3, %c0_4] : memref<1x768xf32, #tpu.memory_space<vmem>>, vector<1x768xf32>
    %14 = vector.broadcast %13 : vector<1x768xf32> to vector<256x768xf32>
    %15 = arith.addf %12, %14 : vector<256x768xf32>
    %cst = arith.constant 0.159154937 : f32
    %16 = vector.broadcast %cst : f32 to vector<256x768xf32>
    %17 = arith.mulf %15, %16 : vector<256x768xf32>
    %cst_5 = arith.constant 5.000000e-01 : f32
    %18 = vector.broadcast %cst_5 : f32 to vector<256x768xf32>
    %19 = arith.addf %17, %18 : vector<256x768xf32>
    %20 = math.floor %19 : vector<256x768xf32>
    %cst_6 = arith.constant 6.28318548 : f32
    %21 = vector.broadcast %cst_6 : f32 to vector<256x768xf32>
    %22 = arith.mulf %20, %21 : vector<256x768xf32>
    %23 = arith.subf %15, %22 : vector<256x768xf32>
    %24 = arith.mulf %23, %23 : vector<256x768xf32>
    %cst_7 = arith.constant 2.17300249E-6 : f32
    %25 = vector.broadcast %cst_7 : f32 to vector<256x768xf32>
    %26 = arith.mulf %25, %24 : vector<256x768xf32>
    %cst_8 = arith.constant -1.93157946E-4 : f32
    %27 = vector.broadcast %cst_8 : f32 to vector<256x768xf32>
    %28 = arith.addf %26, %27 : vector<256x768xf32>
    %29 = arith.mulf %28, %24 : vector<256x768xf32>
    %cst_9 = arith.constant 0.00831235945 : f32
    %30 = vector.broadcast %cst_9 : f32 to vector<256x768xf32>
    %31 = arith.addf %29, %30 : vector<256x768xf32>
    %32 = arith.mulf %31, %24 : vector<256x768xf32>
    %cst_10 = arith.constant -0.166632533 : f32
    %33 = vector.broadcast %cst_10 : f32 to vector<256x768xf32>
    %34 = arith.addf %32, %33 : vector<256x768xf32>
    %35 = arith.mulf %34, %24 : vector<256x768xf32>
    %cst_11 = arith.constant 0.999984562 : f32
    %36 = vector.broadcast %cst_11 : f32 to vector<256x768xf32>
    %37 = arith.addf %35, %36 : vector<256x768xf32>
    %38 = arith.mulf %37, %23 : vector<256x768xf32>
    %39 = vector.extract_strided_slice %38 {offsets = [0, 0], sizes = [256, 256], strides = [1, 1]} : vector<256x768xf32> to vector<256x256xf32>
    %40 = arith.truncf %39 : vector<256x256xf32> to vector<256x256xbf16>
    %c0_12 = arith.constant 0 : index
    %c0_13 = arith.constant 0 : index
    %c0_14 = arith.constant 0 : index
    %41 = vector.load %arg4[%c0_12, %c0_13, %c0_14] : memref<2x256x256xbf16, #tpu.memory_space<vmem>>, vector<1x256x256xbf16>
    %42 = vector.shape_cast %41 : vector<1x256x256xbf16> to vector<256x256xbf16>
    %cst_15 = arith.constant dense<0.000000e+00> : vector<256x256xf32>
    %43 = tpu.matmul %40, %42, %cst_15 {dimension_numbers = #tpu.dot_dimension_numbers<[1], [0], [0], [1], [0, 0, 1, 1], [], []>} : vector<256x256xbf16>, vector<256x256xbf16>, vector<256x256xf32> -> vector<256x256xf32>
    %c0_16 = arith.constant 0 : index
    %c0_17 = arith.constant 0 : index
    %44 = vector.load %arg5[%c0_16, %c0_17] : memref<2x256xf32, #tpu.memory_space<vmem>>, vector<1x256xf32>
    %45 = vector.broadcast %44 : vector<1x256xf32> to vector<256x256xf32>
    %46 = arith.addf %43, %45 : vector<256x256xf32>
    %47 = vector.extract_strided_slice %38 {offsets = [0, 256], sizes = [256, 256], strides = [1, 1]} : vector<256x768xf32> to vector<256x256xf32>
    %48 = arith.mulf %47, %46 : vector<256x256xf32>
    %49 = arith.truncf %48 : vector<256x256xf32> to vector<256x256xbf16>
    %c1 = arith.constant 1 : index
    %c0_18 = arith.constant 0 : index
    %c0_19 = arith.constant 0 : index
    %50 = vector.load %arg4[%c1, %c0_18, %c0_19] : memref<2x256x256xbf16, #tpu.memory_space<vmem>>, vector<1x256x256xbf16>
    %51 = vector.shape_cast %50 : vector<1x256x256xbf16> to vector<256x256xbf16>
    %cst_20 = arith.constant dense<0.000000e+00> : vector<256x256xf32>
    %52 = tpu.matmul %49, %51, %cst_20 {dimension_numbers = #tpu.dot_dimension_numbers<[1], [0], [0], [1], [0, 0, 1, 1], [], []>} : vector<256x256xbf16>, vector<256x256xbf16>, vector<256x256xf32> -> vector<256x256xf32>
    %c1_21 = arith.constant 1 : index
    %c0_22 = arith.constant 0 : index
    %53 = vector.load %arg5[%c1_21, %c0_22] : memref<2x256xf32, #tpu.memory_space<vmem>>, vector<1x256xf32>
    %54 = vector.broadcast %53 : vector<1x256xf32> to vector<256x256xf32>
    %55 = arith.addf %52, %54 : vector<256x256xf32>
    %56 = vector.extract_strided_slice %38 {offsets = [0, 512], sizes = [256, 256], strides = [1, 1]} : vector<256x768xf32> to vector<256x256xf32>
    %57 = arith.mulf %56, %55 : vector<256x256xf32>
    %58 = arith.truncf %57 : vector<256x256xf32> to vector<256x256xbf16>
    %c0_23 = arith.constant 0 : index
    %c0_24 = arith.constant 0 : index
    %59 = vector.load %arg6[%c0_23, %c0_24] : memref<256x128xbf16, #tpu.memory_space<vmem>>, vector<256x128xbf16>
    %cst_25 = arith.constant dense<0.000000e+00> : vector<256x128xf32>
    %60 = tpu.matmul %58, %59, %cst_25 {dimension_numbers = #tpu.dot_dimension_numbers<[1], [0], [0], [1], [0, 0, 1, 1], [], []>} : vector<256x256xbf16>, vector<256x128xbf16>, vector<256x128xf32> -> vector<256x128xf32>
    %c0_26 = arith.constant 0 : index
    %c0_27 = arith.constant 0 : index
    %61 = vector.load %arg7[%c0_26, %c0_27] : memref<1x128xf32, #tpu.memory_space<vmem>>, vector<1x128xf32>
    %62 = vector.broadcast %61 : vector<1x128xf32> to vector<256x128xf32>
    %63 = arith.addf %60, %62 : vector<256x128xf32>
    %c0_28 = arith.constant 0 : index
    %c0_29 = arith.constant 0 : index
    %64 = vector.load %arg8[%c0_28, %c0_29] : memref<256x128xf32, #tpu.memory_space<vmem>>, vector<256x128xf32>
    tpu.vector_store %arg8[%c0_28, %c0_29], %63 {strides = array<i32>} : memref<256x128xf32, #tpu.memory_space<vmem>>, vector<256x128xf32>,
    return
  }
  func.func @transform_0(%arg0: i32) -> (i32, i32) {
    %c0_i32 = arith.constant 0 : i32
    %c0_i32_0 = arith.constant 0 : i32
    return %arg0, %c0_i32 : i32, i32
  }
  func.func @transform_1(%arg0: i32) -> (i32, i32) {
    %c0_i32 = arith.constant 0 : i32
    %c0_i32_0 = arith.constant 0 : i32
    %c0_i32_1 = arith.constant 0 : i32
    return %c0_i32, %c0_i32_0 : i32, i32
  }
  func.func @transform_2(%arg0: i32) -> (i32, i32) {
    %c0_i32 = arith.constant 0 : i32
    %c0_i32_0 = arith.constant 0 : i32
    %c0_i32_1 = arith.constant 0 : i32
    return %c0_i32, %c0_i32_0 : i32, i32
  }
  func.func @transform_3(%arg0: i32) -> (i32, i32, i32) {
    %c0_i32 = arith.constant 0 : i32
    %c0_i32_0 = arith.constant 0 : i32
    %c0_i32_1 = arith.constant 0 : i32
    %c0_i32_2 = arith.constant 0 : i32
    return %c0_i32, %c0_i32_0, %c0_i32_1 : i32, i32, i32
  }
  func.func @transform_4(%arg0: i32) -> (i32, i32) {
    %c0_i32 = arith.constant 0 : i32
    %c0_i32_0 = arith.constant 0 : i32
    %c0_i32_1 = arith.constant 0 : i32
    return %c0_i32, %c0_i32_0 : i32, i32
  }
  func.func @transform_5(%arg0: i32) -> (i32, i32) {
    %c0_i32 = arith.constant 0 : i32
    %c0_i32_0 = arith.constant 0 : i32
    %c0_i32_1 = arith.constant 0 : i32
    return %c0_i32, %c0_i32_0 : i32, i32
  }
  func.func @transform_6(%arg0: i32) -> (i32, i32) {
    %c0_i32 = arith.constant 0 : i32
    %c0_i32_0 = arith.constant 0 : i32
    %c0_i32_1 = arith.constant 0 : i32
    return %c0_i32, %c0_i32_0 : i32, i32
  }
  func.func @transform_7(%arg0: i32) -> (i32, i32) {
    %c0_i32 = arith.constant 0 : i32
    %c0_i32_0 = arith.constant 0 : i32
    return %arg0, %c0_i32 : i32, i32
  }
}

</mosaic_0001>

<llo_original>
// kernel: tpu_custom_call.1
$region0: #{tpu_custom_call.1}
  #allocation0 [shape = 'u32[]', space=smem, size = 0x4, offset = 0x4, fixed_abs, tag = 'smem constant byte address 0x4 - core index']
  #allocation1 [shape = 'u32[144,128]{1,0:T(1,128)}', space=vmem, size = 0x12000, scoped, tag = 'internal scratch']
  %s0 = inlined_call_operand.vmem [shape: f32[512,2], index: 0, kind: input, shape index: {}]
  %s1 = inlined_call_operand.vmem [shape: f32[2,768], index: 1, kind: input, shape index: {}]
  %s2 = inlined_call_operand.vmem [shape: f32[1,768], index: 2, kind: input, shape index: {}]
  %s3 = inlined_call_operand.vmem [shape: bf16[2,256,256], index: 3, kind: input, shape index: {}]
  %s4 = inlined_call_operand.vmem [shape: f32[2,256], index: 4, kind: input, shape index: {}]
  %s5 = inlined_call_operand.hbm [shape: bf16[256,128], index: 5, kind: input, shape index: {}]
  %s6 = inlined_call_operand.vmem [shape: f32[1,128], index: 6, kind: input, shape index: {}]
  %s7 = inlined_call_operand.hbm [shape: f32[512,128], index: 7, kind: output, shape index: {}]
  %s8 = sld [smem:[#allocation0]]
  $region65: #{tpu_custom_call.1} parent=0
    _
  %s10 = ssub.s32 1, %s8
  %s11 = scalar_select 0, %s10, %s8
  $region1: #{tpu_custom_call.1} parent=0
    #allocation2 [shape = 'u8[65536]{0}', space=vmem, size = 0x10000, scoped, tag = 'input window, operand 5, single buffered']
    #allocation3 [shape = 's32[2]{0}', space=sflag, size = 0x8, scoped, tag = 'scoped memory for tpu_custom_call.1']
    #allocation4 [shape = 's32[2]{0}', space=sflag, size = 0x8, scoped, tag = 'scoped memory for tpu_custom_call.1']
    #allocation5 [shape = 'u8[262144]{0}', space=vmem, size = 0x40000, scoped, tag = 'output window, operand 0']
    %12 = vsyncpa [#allocation3], 0
    %13 = vsyncpa [#allocation4], 0
    %s14 = scalar_lea.sflag [#allocation4], 1
    %15 = vsyncpa %s14, 0
    loop: start=0, step=1, limit=4
    $region2: #{tpu_custom_call.1} parent=1 // loop_pre_header
      _
    $region3: #{tpu_custom_call.1} parent=1 // loop_header
      %s17 = sphi 0, %s21
      %p18 = scmp.ge.s32.totalorder %s17, 4
      %s27 = sphi 0, %s29
      %s30 = sphi 0, %s27
      %s31 = sphi 0, %s30
      %s47 = sphi 0, %s31
      %s51 = sphi 0, %s51
      %s53 = sphi 0, %s51
      %s54 = sphi 0, %s53
      %s68 = sphi 0, %s54
      %s72 = sphi 0, %s72
      %s74 = sphi 0, %s72
      %s75 = sphi 0, %s74
      %s89 = sphi 0, %s75
      %s93 = sphi 0, %s93
      %s95 = sphi 0, %s93
      %s96 = sphi 0, %s95
      %s110 = sphi 0, %s96
      %s114 = sphi 0, %s114
      %s116 = sphi 0, %s114
      %s117 = sphi 0, %s116
      %s131 = sphi 0, %s117
      %s135 = sphi 0, %s135
      %s137 = sphi 0, %s135
      %s138 = sphi 0, %s137
      %s152 = sphi 0, %s138
      %s156 = sphi 0, %s156
      %s158 = sphi 0, %s156
      %s159 = sphi 0, %s158
      %s173 = sphi 0, %s159
      %s179 = sphi 0, %s181
      %s182 = sphi 0, %s179
      %s183 = sphi 0, %s182
      %s199 = sphi 0, %s183
    $region4: #{tpu_custom_call.1} parent=1 // loop_header_branch
      %20 = sbr.rel (%p18) target = $region8
    $region5: #{tpu_custom_call.1} parent=1 // loop_body
      %s22 = ssub.s32 %s17, 1
      %s23 = ssub.s32 %s17, 2
      %s24 = sadd.s32 %s17, 1
      %s25 = ssub.s32 %s17, %s24
      %p26 = scmp.eq.s32.totalorder %s25, 0
      %s28 = sadd.s32 %s27, 1
      %s29 = scalar_select %p26, %s27, %s28
      %p32 = pneg %p26
      %p33 = scmp.eq.s32.totalorder %s17, 1
      %p34 = por %p32, %p33
      %p35 = scmp.ne.s32.totalorder %s27, %s30
      %p36 = scmp.eq.s32.totalorder %s17, 0
      %p37 = por %p35, %p36
      %p38 = scmp.ne.s32.totalorder %s27, %s30
      %p39 = scmp.eq.s32.totalorder %s22, 1
      %p40 = por %p38, %p39
      %p41 = scmp.ne.s32.totalorder %s30, %s31
      %p42 = scmp.eq.s32.totalorder %s22, 0
      %p43 = por %p41, %p42
      %p44 = scmp.ne.s32.totalorder %s30, %s31
      %p45 = scmp.eq.s32.totalorder %s23, 1
      %p46 = por %p44, %p45
      %p48 = scmp.ne.s32.totalorder %s31, %s47
      %p49 = scmp.eq.s32.totalorder %s23, 0
      %p50 = por %p48, %p49
      %s52 = sadd.s32 %s51, 1
      %p55 = scmp.eq.s32.totalorder %s17, 1
      %p56 = scmp.ne.s32.totalorder %s51, %s53
      %p57 = scmp.eq.s32.totalorder %s17, 0
      %p58 = por %p56, %p57
      %p59 = scmp.ne.s32.totalorder %s51, %s53
      %p60 = scmp.eq.s32.totalorder %s22, 1
      %p61 = por %p59, %p60
      %p62 = scmp.ne.s32.totalorder %s53, %s54
      %p63 = scmp.eq.s32.totalorder %s22, 0
      %p64 = por %p62, %p63
      %p65 = scmp.ne.s32.totalorder %s53, %s54
      %p66 = scmp.eq.s32.totalorder %s23, 1
      %p67 = por %p65, %p66
      %p69 = scmp.ne.s32.totalorder %s54, %s68
      %p70 = scmp.eq.s32.totalorder %s23, 0
      %p71 = por %p69, %p70
      %s73 = sadd.s32 %s72, 1
      %p76 = scmp.eq.s32.totalorder %s17, 1
      %p77 = scmp.ne.s32.totalorder %s72, %s74
      %p78 = scmp.eq.s32.totalorder %s17, 0
      %p79 = por %p77, %p78
      %p80 = scmp.ne.s32.totalorder %s72, %s74
      %p81 = scmp.eq.s32.totalorder %s22, 1
      %p82 = por %p80, %p81
      %p83 = scmp.ne.s32.totalorder %s74, %s75
      %p84 = scmp.eq.s32.totalorder %s22, 0
      %p85 = por %p83, %p84
      %p86 = scmp.ne.s32.totalorder %s74, %s75
      %p87 = scmp.eq.s32.totalorder %s23, 1
      %p88 = por %p86, %p87
      %p90 = scmp.ne.s32.totalorder %s75, %s89
      %p91 = scmp.eq.s32.totalorder %s23, 0
      %p92 = por %p90, %p91
      %s94 = sadd.s32 %s93, 1
      %p97 = scmp.eq.s32.totalorder %s17, 1
      %p98 = scmp.ne.s32.totalorder %s93, %s95
      %p99 = scmp.eq.s32.totalorder %s17, 0
      %p100 = por %p98, %p99
      %p101 = scmp.ne.s32.totalorder %s93, %s95
      %p102 = scmp.eq.s32.totalorder %s22, 1
      %p103 = por %p101, %p102
      %p104 = scmp.ne.s32.totalorder %s95, %s96
      %p105 = scmp.eq.s32.totalorder %s22, 0
      %p106 = por %p104, %p105
      %p107 = scmp.ne.s32.totalorder %s95, %s96
      %p108 = scmp.eq.s32.totalorder %s23, 1
      %p109 = por %p107, %p108
      %p111 = scmp.ne.s32.totalorder %s96, %s110
      %p112 = scmp.eq.s32.totalorder %s23, 0
      %p113 = por %p111, %p112
      %s115 = sadd.s32 %s114, 1
      %p118 = scmp.eq.s32.totalorder %s17, 1
      %p119 = scmp.ne.s32.totalorder %s114, %s116
      %p120 = scmp.eq.s32.totalorder %s17, 0
      %p121 = por %p119, %p120
      %p122 = scmp.ne.s32.totalorder %s114, %s116
      %p123 = scmp.eq.s32.totalorder %s22, 1
      %p124 = por %p122, %p123
      %p125 = scmp.ne.s32.totalorder %s116, %s117
      %p126 = scmp.eq.s32.totalorder %s22, 0
      %p127 = por %p125, %p126
      %p128 = scmp.ne.s32.totalorder %s116, %s117
      %p129 = scmp.eq.s32.totalorder %s23, 1
      %p130 = por %p128, %p129
      %p132 = scmp.ne.s32.totalorder %s117, %s131
      %p133 = scmp.eq.s32.totalorder %s23, 0
      %p134 = por %p132, %p133
      %s136 = sadd.s32 %s135, 1
      %p139 = scmp.eq.s32.totalorder %s17, 1
      %p140 = scmp.ne.s32.totalorder %s135, %s137
      %p141 = scmp.eq.s32.totalorder %s17, 0
      %p142 = por %p140, %p141
      %p143 = scmp.ne.s32.totalorder %s135, %s137
      %p144 = scmp.eq.s32.totalorder %s22, 1
      %p145 = por %p143, %p144
      %p146 = scmp.ne.s32.totalorder %s137, %s138
      %p147 = scmp.eq.s32.totalorder %s22, 0
      %p148 = por %p146, %p147
      %p149 = scmp.ne.s32.totalorder %s137, %s138
      %p150 = scmp.eq.s32.totalorder %s23, 1
      %p151 = por %p149, %p150
      %p153 = scmp.ne.s32.totalorder %s138, %s152
      %p154 = scmp.eq.s32.totalorder %s23, 0
      %p155 = por %p153, %p154
      %s157 = sadd.s32 %s156, 1
      %p160 = scmp.eq.s32.totalorder %s17, 1
      %p161 = scmp.ne.s32.totalorder %s156, %s158
      %p162 = scmp.eq.s32.totalorder %s17, 0
      %p163 = por %p161, %p162
      %p164 = scmp.ne.s32.totalorder %s156, %s158
      %p165 = scmp.eq.s32.totalorder %s22, 1
      %p166 = por %p164, %p165
      %p167 = scmp.ne.s32.totalorder %s158, %s159
      %p168 = scmp.eq.s32.totalorder %s22, 0
      %p169 = por %p167, %p168
      %p170 = scmp.ne.s32.totalorder %s158, %s159
      %p171 = scmp.eq.s32.totalorder %s23, 1
      %p172 = por %p170, %p171
      %p174 = scmp.ne.s32.totalorder %s159, %s173
      %p175 = scmp.eq.s32.totalorder %s23, 0
      %p176 = por %p174, %p175
      %s177 = ssub.s32 %s17, %s24
      %p178 = scmp.eq.s32.totalorder %s177, 0
      %s180 = sadd.s32 %s179, 1
      %s181 = scalar_select %p178, %s179, %s180
      %p184 = pneg %p178
      %p185 = scmp.eq.s32.totalorder %s17, 1
      %p186 = por %p184, %p185
      %p187 = scmp.ne.s32.totalorder %s179, %s182
      %p188 = scmp.eq.s32.totalorder %s17, 0
      %p189 = por %p187, %p188
      %p190 = scmp.ne.s32.totalorder %s179, %s182
      %p191 = scmp.eq.s32.totalorder %s22, 1
      %p192 = por %p190, %p191
      %p193 = scmp.ne.s32.totalorder %s182, %s183
      %p194 = scmp.eq.s32.totalorder %s22, 0
      %p195 = por %p193, %p194
      %p196 = scmp.ne.s32.totalorder %s182, %s183
      %p197 = scmp.eq.s32.totalorder %s23, 1
      %p198 = por %p196, %p197
      %p200 = scmp.ne.s32.totalorder %s183, %s199
      %p201 = scmp.eq.s32.totalorder %s23, 0
      %p202 = por %p200, %p201
      %p203 = scmp.le.s32.totalorder 1, %s17
      %p204 = scmp.lt.s32.totalorder %s17, 3
      %p205 = pnand %p203, %p204
      %p206 = pneg %p205
      // Predicated region
      $region9: #{tpu_custom_call.1} parent=5 // pred_check
        _
      $region10: #{tpu_custom_call.1} parent=5 // pred_check_branch
        %208 = sbr.rel (%p205) target = $region12
      $region11: #{tpu_custom_call.1} parent=5 // pred_region
        %s209 = ssub.s32 %s17, 1
        // Predicated region
        $region13: #{tpu_custom_call.1} parent=11 // pred_check
          %p210 = pneg %p64
        $region14: #{tpu_custom_call.1} parent=11 // pred_check_branch
          %212 = sbr.rel (%p210) target = $region16
        $region15: #{tpu_custom_call.1} parent=11 // pred_region
          _
        $region16: #{tpu_custom_call.1} parent=11 // pred_fallthru
          _
        // Predicated region
        $region17: #{tpu_custom_call.1} parent=11 // pred_check
          %p213 = pneg %p85
        $region18: #{tpu_custom_call.1} parent=11 // pred_check_branch
          %215 = sbr.rel (%p213) target = $region20
        $region19: #{tpu_custom_call.1} parent=11 // pred_region
          _
        $region20: #{tpu_custom_call.1} parent=11 // pred_fallthru
          _
        // Predicated region
        $region21: #{tpu_custom_call.1} parent=11 // pred_check
          %p216 = pneg %p106
        $region22: #{tpu_custom_call.1} parent=11 // pred_check_branch
          %218 = sbr.rel (%p216) target = $region24
        $region23: #{tpu_custom_call.1} parent=11 // pred_region
          _
        $region24: #{tpu_custom_call.1} parent=11 // pred_fallthru
          _
        // Predicated region
        $region25: #{tpu_custom_call.1} parent=11 // pred_check
          %p219 = pneg %p127
        $region26: #{tpu_custom_call.1} parent=11 // pred_check_branch
          %221 = sbr.rel (%p219) target = $region28
        $region27: #{tpu_custom_call.1} parent=11 // pred_region
          _
        $region28: #{tpu_custom_call.1} parent=11 // pred_fallthru
          _
        // Predicated region
        $region29: #{tpu_custom_call.1} parent=11 // pred_check
          %p222 = pneg %p148
        $region30: #{tpu_custom_call.1} parent=11 // pred_check_branch
          %224 = sbr.rel (%p222) target = $region32
        $region31: #{tpu_custom_call.1} parent=11 // pred_region
          %s226 = ssub.s32 2048, 2048
          %227 = vsyncadd [#allocation3], %s226
          %s228 = sshll.u32 [#allocation2], 4
          %s229 = int_to_ptr.vmem [resolvable:$true] %s228
          %234 = dma.hbm_to_vmem [thread:$0]  %s5, 2048, %s229, [#allocation3], 64, 64, 4
        $region32: #{tpu_custom_call.1} parent=11 // pred_fallthru
          _
        // Predicated region
        $region33: #{tpu_custom_call.1} parent=11 // pred_check
          %p235 = pneg %p169
        $region34: #{tpu_custom_call.1} parent=11 // pred_check_branch
          %237 = sbr.rel (%p235) target = $region36
        $region35: #{tpu_custom_call.1} parent=11 // pred_region
          _
        $region36: #{tpu_custom_call.1} parent=11 // pred_fallthru
          _
      $region12: #{tpu_custom_call.1} parent=5 // pred_fallthru
        _
      %p238 = scmp.lt.s32.totalorder %s17, 2
      // Predicated region
      $region37: #{tpu_custom_call.1} parent=5 // pred_check
        %p239 = pneg %p238
      $region38: #{tpu_custom_call.1} parent=5 // pred_check_branch
        %241 = sbr.rel (%p239) target = $region40
      $region39: #{tpu_custom_call.1} parent=5 // pred_region
        // Predicated region
        $region41: #{tpu_custom_call.1} parent=39 // pred_check
          %p242 = pneg %p37
        $region42: #{tpu_custom_call.1} parent=39 // pred_check_branch
          %244 = sbr.rel (%p242) target = $region44
        $region43: #{tpu_custom_call.1} parent=39 // pred_region
          %s245 = smul.u32 32, %s17
          %p246 = scmp.lt.s32.totalorder %s245, 63
          %s247 = scalar_select %p246, %s245, 63
          %s248 = smul.addr %s247, 8
          %s249 = scalar_lea.vmem %s0, %s248
          %s250 = smul.u32 32, %s17
        $region44: #{tpu_custom_call.1} parent=39 // pred_fallthru
          _
      $region40: #{tpu_custom_call.1} parent=5 // pred_fallthru
        _
      %p251 = scmp.le.s32.totalorder 1, %s17
      %p252 = scmp.lt.s32.totalorder %s17, 3
      %p253 = pnand %p251, %p252
      %p254 = pneg %p253
      // Predicated region
      $region45: #{tpu_custom_call.1} parent=5 // pred_check
        _
      $region46: #{tpu_custom_call.1} parent=5 // pred_check_branch
        %256 = sbr.rel (%p253) target = $region48
      $region47: #{tpu_custom_call.1} parent=5 // pred_region
        %s257 = ssub.s32 %s17, 1
        // Predicated region
        $region49: #{tpu_custom_call.1} parent=47 // pred_check
          %p258 = pneg %p148
        $region50: #{tpu_custom_call.1} parent=47 // pred_check_branch
          %260 = sbr.rel (%p258) target = $region52
        $region51: #{tpu_custom_call.1} parent=47 // pred_region
          %261 = dma.done [#allocation3], 2048
        $region52: #{tpu_custom_call.1} parent=47 // pred_fallthru
          _
        %s262 = smul.u32 32, %s22
        %p263 = scmp.lt.s32.totalorder %s262, 63
        %s264 = scalar_select %p263, %s262, 63
        %s265 = smul.addr %s264, 8
        %s266 = scalar_lea.vmem %s0, %s265
        %p267 = pneg %p43
        %p268 = pneg %p40
        %p269 = pneg %p64
        %p270 = pneg %p61
        %p271 = pneg %p85
        %p272 = pneg %p82
        %p273 = pneg %p106
        %p274 = pneg %p103
        %p275 = pneg %p127
        %p276 = pneg %p124
        %p277 = pneg %p148
        %p278 = pneg %p145
        %p279 = pneg %p169
        %p280 = pneg %p166
        %p281 = pneg %p195
        %p282 = pneg %p192
        %s283 = sand.u32 %s182, 1
        %s284 = scalar_lea.sflag [#allocation4], %s283
        %s285 = sand.u32 %s182, 1
        %s286 = smul.addr %s285, 256
        %s287 = scalar_lea.vmem [#allocation5], %s286
        %s288 = smul.u32 32, %s22
        %p289 = scmp.lt.s32.totalorder %s288, 63
        %s290 = scalar_select %p289, %s288, 63
        %s291 = smul.addr %s290, 8
        %s292 = scalar_lea.vmem %s0, %s291
        %s293 = smul.u32 32, %s22
        %s294 = smul.u32 32, %s22
        %v296 = vld [vmem:[%s292] sm:$0xff]
        %v297 = vld [vmem:[%s292 + $0x8] sm:$0xff]
        %v298 = vld [vmem:[%s292 + $0x10] sm:$0xff]
        %v299 = vld [vmem:[%s292 + $0x18] sm:$0xff]
        %v300 = vld [vmem:[%s292 + $0x20] sm:$0xff]
        %v301 = vld [vmem:[%s292 + $0x28] sm:$0xff]
        %v302 = vld [vmem:[%s292 + $0x30] sm:$0xff]
        %v303 = vld [vmem:[%s292 + $0x38] sm:$0xff]
        %v304 = vld [vmem:[%s292 + $0x40] sm:$0xff]
        %v305 = vld [vmem:[%s292 + $0x48] sm:$0xff]
        %v306 = vld [vmem:[%s292 + $0x50] sm:$0xff]
        %v307 = vld [vmem:[%s292 + $0x58] sm:$0xff]
        %v308 = vld [vmem:[%s292 + $0x60] sm:$0xff]
        %v309 = vld [vmem:[%s292 + $0x68] sm:$0xff]
        %v310 = vld [vmem:[%s292 + $0x70] sm:$0xff]
        %v311 = vld [vmem:[%s292 + $0x78] sm:$0xff]
        %v312 = vld [vmem:[%s292 + $0x80] sm:$0xff]
        %v313 = vld [vmem:[%s292 + $0x88] sm:$0xff]
        %v314 = vld [vmem:[%s292 + $0x90] sm:$0xff]
        %v315 = vld [vmem:[%s292 + $0x98] sm:$0xff]
        %v316 = vld [vmem:[%s292 + $0xa0] sm:$0xff]
        %v317 = vld [vmem:[%s292 + $0xa8] sm:$0xff]
        %v318 = vld [vmem:[%s292 + $0xb0] sm:$0xff]
        %v319 = vld [vmem:[%s292 + $0xb8] sm:$0xff]
        %v320 = vld [vmem:[%s292 + $0xc0] sm:$0xff]
        %v321 = vld [vmem:[%s292 + $0xc8] sm:$0xff]
        %v322 = vld [vmem:[%s292 + $0xd0] sm:$0xff]
        %v323 = vld [vmem:[%s292 + $0xd8] sm:$0xff]
        %v324 = vld [vmem:[%s292 + $0xe0] sm:$0xff]
        %v325 = vld [vmem:[%s292 + $0xe8] sm:$0xff]
        %v326 = vld [vmem:[%s292 + $0xf0] sm:$0xff]
        %v327 = vld [vmem:[%s292 + $0xf8] sm:$0xff]
        %v328 = vld [vmem:[%s1] sm:$0xff]
        %v329 = vld [vmem:[%s1 + $0x8] sm:$0xf]
        %331 = vset.pattern.permute.xlu0 0
        %332 = vperm.xlu0 %331, %v296
        %v333 = vpop.permute.xlu0 %332
        %336 = vset.pattern.permute.xlu0 0
        %337 = vperm.xlu0 %336, %v297
        %v338 = vpop.permute.xlu0 %337
        %341 = vset.pattern.permute.xlu0 0
        %342 = vperm.xlu0 %341, %v298
        %v343 = vpop.permute.xlu0 %342
        %346 = vset.pattern.permute.xlu0 0
        %347 = vperm.xlu0 %346, %v299
        %v348 = vpop.permute.xlu0 %347
        %351 = vset.pattern.permute.xlu0 0
        %352 = vperm.xlu0 %351, %v300
        %v353 = vpop.permute.xlu0 %352
        %356 = vset.pattern.permute.xlu0 0
        %357 = vperm.xlu0 %356, %v301
        %v358 = vpop.permute.xlu0 %357
        %361 = vset.pattern.permute.xlu0 0
        %362 = vperm.xlu0 %361, %v302
        %v363 = vpop.permute.xlu0 %362
        %366 = vset.pattern.permute.xlu0 0
        %367 = vperm.xlu0 %366, %v303
        %v368 = vpop.permute.xlu0 %367
        %371 = vset.pattern.permute.xlu0 0
        %372 = vperm.xlu0 %371, %v304
        %v373 = vpop.permute.xlu0 %372
        %376 = vset.pattern.permute.xlu0 0
        %377 = vperm.xlu0 %376, %v305
        %v378 = vpop.permute.xlu0 %377
        %381 = vset.pattern.permute.xlu0 0
        %382 = vperm.xlu0 %381, %v306
        %v383 = vpop.permute.xlu0 %382
        %386 = vset.pattern.permute.xlu0 0
        %387 = vperm.xlu0 %386, %v307
        %v388 = vpop.permute.xlu0 %387
        %391 = vset.pattern.permute.xlu0 0
        %392 = vperm.xlu0 %391, %v308
        %v393 = vpop.permute.xlu0 %392
        %396 = vset.pattern.permute.xlu0 0
        %397 = vperm.xlu0 %396, %v309
        %v398 = vpop.permute.xlu0 %397
        %401 = vset.pattern.permute.xlu0 0
        %402 = vperm.xlu0 %401, %v310
        %v403 = vpop.permute.xlu0 %402
        %406 = vset.pattern.permute.xlu0 0
        %407 = vperm.xlu0 %406, %v311
        %v408 = vpop.permute.xlu0 %407
        %411 = vset.pattern.permute.xlu0 0
        %412 = vperm.xlu0 %411, %v312
        %v413 = vpop.permute.xlu0 %412
        %416 = vset.pattern.permute.xlu0 0
        %417 = vperm.xlu0 %416, %v313
        %v418 = vpop.permute.xlu0 %417
        %421 = vset.pattern.permute.xlu0 0
        %422 = vperm.xlu0 %421, %v314
        %v423 = vpop.permute.xlu0 %422
        %426 = vset.pattern.permute.xlu0 0
        %427 = vperm.xlu0 %426, %v315
        %v428 = vpop.permute.xlu0 %427
        %431 = vset.pattern.permute.xlu0 0
        %432 = vperm.xlu0 %431, %v316
        %v433 = vpop.permute.xlu0 %432
        %436 = vset.pattern.permute.xlu0 0
        %437 = vperm.xlu0 %436, %v317
        %v438 = vpop.permute.xlu0 %437
        %441 = vset.pattern.permute.xlu0 0
        %442 = vperm.xlu0 %441, %v318
        %v443 = vpop.permute.xlu0 %442
        %446 = vset.pattern.permute.xlu0 0
        %447 = vperm.xlu0 %446, %v319
        %v448 = vpop.permute.xlu0 %447
        %451 = vset.pattern.permute.xlu0 0
        %452 = vperm.xlu0 %451, %v320
        %v453 = vpop.permute.xlu0 %452
        %456 = vset.pattern.permute.xlu0 0
        %457 = vperm.xlu0 %456, %v321
        %v458 = vpop.permute.xlu0 %457
        %461 = vset.pattern.permute.xlu0 0
        %462 = vperm.xlu0 %461, %v322
        %v463 = vpop.permute.xlu0 %462
        %466 = vset.pattern.permute.xlu0 0
        %467 = vperm.xlu0 %466, %v323
        %v468 = vpop.permute.xlu0 %467
        %471 = vset.pattern.permute.xlu0 0
        %472 = vperm.xlu0 %471, %v324
        %v473 = vpop.permute.xlu0 %472
        %476 = vset.pattern.permute.xlu0 0
        %477 = vperm.xlu0 %476, %v325
        %v478 = vpop.permute.xlu0 %477
        %481 = vset.pattern.permute.xlu0 0
        %482 = vperm.xlu0 %481, %v326
        %v483 = vpop.permute.xlu0 %482
        %486 = vset.pattern.permute.xlu0 0
        %487 = vperm.xlu0 %486, %v327
        %v488 = vpop.permute.xlu0 %487
        %v492 = vlaneseq
        %v493 = vshrl.u32 %v492, 7
        %v494 = vsub.s32 0, %v493
        %v495 = vrot.slane %v328, %v494
        %v496 = vlaneseq
        %v497 = vshrl.u32 %v496, 7
        %v498 = vsub.s32 2, %v497
        %v499 = vrot.slane %v328, %v498
        %v500 = vlaneseq
        %v501 = vshrl.u32 %v500, 7
        %v502 = vsub.s32 4, %v501
        %v503 = vrot.slane %v328, %v502
        %v504 = vlaneseq
        %v505 = vshrl.u32 %v504, 7
        %v506 = vsub.s32 6, %v505
        %v507 = vrot.slane %v328, %v506
        %v508 = vlaneseq
        %v509 = vshrl.u32 %v508, 7
        %v510 = vsub.s32 0, %v509
        %v511 = vrot.slane %v329, %v510
        %v512 = vlaneseq
        %v513 = vshrl.u32 %v512, 7
        %v514 = vsub.s32 2, %v513
        %v515 = vrot.slane %v329, %v514
        %v522 = vlaneseq
        %v523 = vshrl.u32 %v522, 7
        %v524 = vsub.s32 0, %v523
        %v525 = vrot.slane %v495, %v524
        %v526 = vlaneseq
        %v527 = vshrl.u32 %v526, 7
        %v528 = vsub.s32 0, %v527
        %v529 = vrot.slane %v499, %v528
        %v530 = vlaneseq
        %v531 = vshrl.u32 %v530, 7
        %v532 = vsub.s32 0, %v531
        %v533 = vrot.slane %v503, %v532
        %v534 = vlaneseq
        %v535 = vshrl.u32 %v534, 7
        %v536 = vsub.s32 0, %v535
        %v537 = vrot.slane %v507, %v536
        %v538 = vlaneseq
        %v539 = vshrl.u32 %v538, 7
        %v540 = vsub.s32 0, %v539
        %v541 = vrot.slane %v511, %v540
        %v542 = vlaneseq
        %v543 = vshrl.u32 %v542, 7
        %v544 = vsub.s32 0, %v543
        %v545 = vrot.slane %v515, %v544
        %v546 = vmul.f32 %v333, %v525
        %v547 = vmul.f32 %v333, %v529
        %v548 = vmul.f32 %v333, %v533
        %v549 = vmul.f32 %v333, %v537
        %v550 = vmul.f32 %v333, %v541
        %v551 = vmul.f32 %v333, %v545
        %v552 = vmul.f32 %v338, %v525
        %v553 = vmul.f32 %v338, %v529
        %v554 = vmul.f32 %v338, %v533
        %v555 = vmul.f32 %v338, %v537
        %v556 = vmul.f32 %v338, %v541
        %v557 = vmul.f32 %v338, %v545
        %v558 = vmul.f32 %v343, %v525
        %v559 = vmul.f32 %v343, %v529
        %v560 = vmul.f32 %v343, %v533
        %v561 = vmul.f32 %v343, %v537
        %v562 = vmul.f32 %v343, %v541
        %v563 = vmul.f32 %v343, %v545
        %v564 = vmul.f32 %v348, %v525
        %v565 = vmul.f32 %v348, %v529
        %v566 = vmul.f32 %v348, %v533
        %v567 = vmul.f32 %v348, %v537
        %v568 = vmul.f32 %v348, %v541
        %v569 = vmul.f32 %v348, %v545
        %v570 = vmul.f32 %v353, %v525
        %v571 = vmul.f32 %v353, %v529
        %v572 = vmul.f32 %v353, %v533
        %v573 = vmul.f32 %v353, %v537
        %v574 = vmul.f32 %v353, %v541
        %v575 = vmul.f32 %v353, %v545
        %v576 = vmul.f32 %v358, %v525
        %v577 = vmul.f32 %v358, %v529
        %v578 = vmul.f32 %v358, %v533
        %v579 = vmul.f32 %v358, %v537
        %v580 = vmul.f32 %v358, %v541
        %v581 = vmul.f32 %v358, %v545
        %v582 = vmul.f32 %v363, %v525
        %v583 = vmul.f32 %v363, %v529
        %v584 = vmul.f32 %v363, %v533
        %v585 = vmul.f32 %v363, %v537
        %v586 = vmul.f32 %v363, %v541
        %v587 = vmul.f32 %v363, %v545
        %v588 = vmul.f32 %v368, %v525
        %v589 = vmul.f32 %v368, %v529
        %v590 = vmul.f32 %v368, %v533
        %v591 = vmul.f32 %v368, %v537
        %v592 = vmul.f32 %v368, %v541
        %v593 = vmul.f32 %v368, %v545
        %v594 = vmul.f32 %v373, %v525
        %v595 = vmul.f32 %v373, %v529
        %v596 = vmul.f32 %v373, %v533
        %v597 = vmul.f32 %v373, %v537
        %v598 = vmul.f32 %v373, %v541
        %v599 = vmul.f32 %v373, %v545
        %v600 = vmul.f32 %v378, %v525
        %v601 = vmul.f32 %v378, %v529
        %v602 = vmul.f32 %v378, %v533
        %v603 = vmul.f32 %v378, %v537
        %v604 = vmul.f32 %v378, %v541
        %v605 = vmul.f32 %v378, %v545
        %v606 = vmul.f32 %v383, %v525
        %v607 = vmul.f32 %v383, %v529
        %v608 = vmul.f32 %v383, %v533
        %v609 = vmul.f32 %v383, %v537
        %v610 = vmul.f32 %v383, %v541
        %v611 = vmul.f32 %v383, %v545
        %v612 = vmul.f32 %v388, %v525
        %v613 = vmul.f32 %v388, %v529
        %v614 = vmul.f32 %v388, %v533
        %v615 = vmul.f32 %v388, %v537
        %v616 = vmul.f32 %v388, %v541
        %v617 = vmul.f32 %v388, %v545
        %v618 = vmul.f32 %v393, %v525
        %v619 = vmul.f32 %v393, %v529
        %v620 = vmul.f32 %v393, %v533
        %v621 = vmul.f32 %v393, %v537
        %v622 = vmul.f32 %v393, %v541
        %v623 = vmul.f32 %v393, %v545
        %v624 = vmul.f32 %v398, %v525
        %v625 = vmul.f32 %v398, %v529
        %v626 = vmul.f32 %v398, %v533
        %v627 = vmul.f32 %v398, %v537
        %v628 = vmul.f32 %v398, %v541
        %v629 = vmul.f32 %v398, %v545
        %v630 = vmul.f32 %v403, %v525
        %v631 = vmul.f32 %v403, %v529
        %v632 = vmul.f32 %v403, %v533
        %v633 = vmul.f32 %v403, %v537
        %v634 = vmul.f32 %v403, %v541
        %v635 = vmul.f32 %v403, %v545
        %v636 = vmul.f32 %v408, %v525
        %v637 = vmul.f32 %v408, %v529
        %v638 = vmul.f32 %v408, %v533
        %v639 = vmul.f32 %v408, %v537
        %v640 = vmul.f32 %v408, %v541
        %v641 = vmul.f32 %v408, %v545
        %v642 = vmul.f32 %v413, %v525
        %v643 = vmul.f32 %v413, %v529
        %v644 = vmul.f32 %v413, %v533
        %v645 = vmul.f32 %v413, %v537
        %v646 = vmul.f32 %v413, %v541
        %v647 = vmul.f32 %v413, %v545
        %v648 = vmul.f32 %v418, %v525
        %v649 = vmul.f32 %v418, %v529
        %v650 = vmul.f32 %v418, %v533
        %v651 = vmul.f32 %v418, %v537
        %v652 = vmul.f32 %v418, %v541
        %v653 = vmul.f32 %v418, %v545
        %v654 = vmul.f32 %v423, %v525
        %v655 = vmul.f32 %v423, %v529
        %v656 = vmul.f32 %v423, %v533
        %v657 = vmul.f32 %v423, %v537
        %v658 = vmul.f32 %v423, %v541
        %v659 = vmul.f32 %v423, %v545
        %v660 = vmul.f32 %v428, %v525
        %v661 = vmul.f32 %v428, %v529
        %v662 = vmul.f32 %v428, %v533
        %v663 = vmul.f32 %v428, %v537
        %v664 = vmul.f32 %v428, %v541
        %v665 = vmul.f32 %v428, %v545
        %v666 = vmul.f32 %v433, %v525
        %v667 = vmul.f32 %v433, %v529
        %v668 = vmul.f32 %v433, %v533
        %v669 = vmul.f32 %v433, %v537
        %v670 = vmul.f32 %v433, %v541
        %v671 = vmul.f32 %v433, %v545
        %v672 = vmul.f32 %v438, %v525
        %v673 = vmul.f32 %v438, %v529
        %v674 = vmul.f32 %v438, %v533
        %v675 = vmul.f32 %v438, %v537
        %v676 = vmul.f32 %v438, %v541
        %v677 = vmul.f32 %v438, %v545
        %v678 = vmul.f32 %v443, %v525
        %v679 = vmul.f32 %v443, %v529
        %v680 = vmul.f32 %v443, %v533
        %v681 = vmul.f32 %v443, %v537
        %v682 = vmul.f32 %v443, %v541
        %v683 = vmul.f32 %v443, %v545
        %v684 = vmul.f32 %v448, %v525
        %v685 = vmul.f32 %v448, %v529
        %v686 = vmul.f32 %v448, %v533
        %v687 = vmul.f32 %v448, %v537
        %v688 = vmul.f32 %v448, %v541
        %v689 = vmul.f32 %v448, %v545
        %v690 = vmul.f32 %v453, %v525
        %v691 = vmul.f32 %v453, %v529
        %v692 = vmul.f32 %v453, %v533
        %v693 = vmul.f32 %v453, %v537
        %v694 = vmul.f32 %v453, %v541
        %v695 = vmul.f32 %v453, %v545
        %v696 = vmul.f32 %v458, %v525
        %v697 = vmul.f32 %v458, %v529
        %v698 = vmul.f32 %v458, %v533
        %v699 = vmul.f32 %v458, %v537
        %v700 = vmul.f32 %v458, %v541
        %v701 = vmul.f32 %v458, %v545
        %v702 = vmul.f32 %v463, %v525
        %v703 = vmul.f32 %v463, %v529
        %v704 = vmul.f32 %v463, %v533
        %v705 = vmul.f32 %v463, %v537
        %v706 = vmul.f32 %v463, %v541
        %v707 = vmul.f32 %v463, %v545
        %v708 = vmul.f32 %v468, %v525
        %v709 = vmul.f32 %v468, %v529
        %v710 = vmul.f32 %v468, %v533
        %v711 = vmul.f32 %v468, %v537
        %v712 = vmul.f32 %v468, %v541
        %v713 = vmul.f32 %v468, %v545
        %v714 = vmul.f32 %v473, %v525
        %v715 = vmul.f32 %v473, %v529
        %v716 = vmul.f32 %v473, %v533
        %v717 = vmul.f32 %v473, %v537
        %v718 = vmul.f32 %v473, %v541
        %v719 = vmul.f32 %v473, %v545
        %v720 = vmul.f32 %v478, %v525
        %v721 = vmul.f32 %v478, %v529
        %v722 = vmul.f32 %v478, %v533
        %v723 = vmul.f32 %v478, %v537
        %v724 = vmul.f32 %v478, %v541
        %v725 = vmul.f32 %v478, %v545
        %v726 = vmul.f32 %v483, %v525
        %v727 = vmul.f32 %v483, %v529
        %v728 = vmul.f32 %v483, %v533
        %v729 = vmul.f32 %v483, %v537
        %v730 = vmul.f32 %v483, %v541
        %v731 = vmul.f32 %v483, %v545
        %v732 = vmul.f32 %v488, %v525
        %v733 = vmul.f32 %v488, %v529
        %v734 = vmul.f32 %v488, %v533
        %v735 = vmul.f32 %v488, %v537
        %v736 = vmul.f32 %v488, %v541
        %v737 = vmul.f32 %v488, %v545
        %738 = vset.pattern.permute.xlu0 1
        %739 = vperm.xlu0 %738, %v296
        %v740 = vpop.permute.xlu0 %739
        %742 = vset.pattern.permute.xlu0 1
        %743 = vperm.xlu0 %742, %v297
        %v744 = vpop.permute.xlu0 %743
        %746 = vset.pattern.permute.xlu0 1
        %747 = vperm.xlu0 %746, %v298
        %v748 = vpop.permute.xlu0 %747
        %750 = vset.pattern.permute.xlu0 1
        %751 = vperm.xlu0 %750, %v299
        %v752 = vpop.permute.xlu0 %751
        %754 = vset.pattern.permute.xlu0 1
        %755 = vperm.xlu0 %754, %v300
        %v756 = vpop.permute.xlu0 %755
        %758 = vset.pattern.permute.xlu0 1
        %759 = vperm.xlu0 %758, %v301
        %v760 = vpop.permute.xlu0 %759
        %762 = vset.pattern.permute.xlu0 1
        %763 = vperm.xlu0 %762, %v302
        %v764 = vpop.permute.xlu0 %763
        %766 = vset.pattern.permute.xlu0 1
        %767 = vperm.xlu0 %766, %v303
        %v768 = vpop.permute.xlu0 %767
        %770 = vset.pattern.permute.xlu0 1
        %771 = vperm.xlu0 %770, %v304
        %v772 = vpop.permute.xlu0 %771
        %774 = vset.pattern.permute.xlu0 1
        %775 = vperm.xlu0 %774, %v305
        %v776 = vpop.permute.xlu0 %775
        %778 = vset.pattern.permute.xlu0 1
        %779 = vperm.xlu0 %778, %v306
        %v780 = vpop.permute.xlu0 %779
        %782 = vset.pattern.permute.xlu0 1
        %783 = vperm.xlu0 %782, %v307
        %v784 = vpop.permute.xlu0 %783
        %786 = vset.pattern.permute.xlu0 1
        %787 = vperm.xlu0 %786, %v308
        %v788 = vpop.permute.xlu0 %787
        %790 = vset.pattern.permute.xlu0 1
        %791 = vperm.xlu0 %790, %v309
        %v792 = vpop.permute.xlu0 %791
        %794 = vset.pattern.permute.xlu0 1
        %795 = vperm.xlu0 %794, %v310
        %v796 = vpop.permute.xlu0 %795
        %798 = vset.pattern.permute.xlu0 1
        %799 = vperm.xlu0 %798, %v311
        %v800 = vpop.permute.xlu0 %799
        %802 = vset.pattern.permute.xlu0 1
        %803 = vperm.xlu0 %802, %v312
        %v804 = vpop.permute.xlu0 %803
        %806 = vset.pattern.permute.xlu0 1
        %807 = vperm.xlu0 %806, %v313
        %v808 = vpop.permute.xlu0 %807
        %810 = vset.pattern.permute.xlu0 1
        %811 = vperm.xlu0 %810, %v314
        %v812 = vpop.permute.xlu0 %811
        %814 = vset.pattern.permute.xlu0 1
        %815 = vperm.xlu0 %814, %v315
        %v816 = vpop.permute.xlu0 %815
        %818 = vset.pattern.permute.xlu0 1
        %819 = vperm.xlu0 %818, %v316
        %v820 = vpop.permute.xlu0 %819
        %822 = vset.pattern.permute.xlu0 1
        %823 = vperm.xlu0 %822, %v317
        %v824 = vpop.permute.xlu0 %823
        %826 = vset.pattern.permute.xlu0 1
        %827 = vperm.xlu0 %826, %v318
        %v828 = vpop.permute.xlu0 %827
        %830 = vset.pattern.permute.xlu0 1
        %831 = vperm.xlu0 %830, %v319
        %v832 = vpop.permute.xlu0 %831
        %834 = vset.pattern.permute.xlu0 1
        %835 = vperm.xlu0 %834, %v320
        %v836 = vpop.permute.xlu0 %835
        %838 = vset.pattern.permute.xlu0 1
        %839 = vperm.xlu0 %838, %v321
        %v840 = vpop.permute.xlu0 %839
        %842 = vset.pattern.permute.xlu0 1
        %843 = vperm.xlu0 %842, %v322
        %v844 = vpop.permute.xlu0 %843
        %846 = vset.pattern.permute.xlu0 1
        %847 = vperm.xlu0 %846, %v323
        %v848 = vpop.permute.xlu0 %847
        %850 = vset.pattern.permute.xlu0 1
        %851 = vperm.xlu0 %850, %v324
        %v852 = vpop.permute.xlu0 %851
        %854 = vset.pattern.permute.xlu0 1
        %855 = vperm.xlu0 %854, %v325
        %v856 = vpop.permute.xlu0 %855
        %858 = vset.pattern.permute.xlu0 1
        %859 = vperm.xlu0 %858, %v326
        %v860 = vpop.permute.xlu0 %859
        %862 = vset.pattern.permute.xlu0 1
        %863 = vperm.xlu0 %862, %v327
        %v864 = vpop.permute.xlu0 %863
        %v866 = vlaneseq
        %v867 = vshrl.u32 %v866, 7
        %v868 = vsub.s32 1, %v867
        %v869 = vrot.slane %v328, %v868
        %v870 = vlaneseq
        %v871 = vshrl.u32 %v870, 7
        %v872 = vsub.s32 3, %v871
        %v873 = vrot.slane %v328, %v872
        %v874 = vlaneseq
        %v875 = vshrl.u32 %v874, 7
        %v876 = vsub.s32 5, %v875
        %v877 = vrot.slane %v328, %v876
        %v878 = vlaneseq
        %v879 = vshrl.u32 %v878, 7
        %v880 = vsub.s32 7, %v879
        %v881 = vrot.slane %v328, %v880
        %v882 = vlaneseq
        %v883 = vshrl.u32 %v882, 7
        %v884 = vsub.s32 1, %v883
        %v885 = vrot.slane %v329, %v884
        %v886 = vlaneseq
        %v887 = vshrl.u32 %v886, 7
        %v888 = vsub.s32 3, %v887
        %v889 = vrot.slane %v329, %v888
        %v896 = vlaneseq
        %v897 = vshrl.u32 %v896, 7
        %v898 = vsub.s32 1, %v897
        %v899 = vrot.slane %v869, %v898
        %v900 = vlaneseq
        %v901 = vshrl.u32 %v900, 7
        %v902 = vsub.s32 1, %v901
        %v903 = vrot.slane %v873, %v902
        %v904 = vlaneseq
        %v905 = vshrl.u32 %v904, 7
        %v906 = vsub.s32 1, %v905
        %v907 = vrot.slane %v877, %v906
        %v908 = vlaneseq
        %v909 = vshrl.u32 %v908, 7
        %v910 = vsub.s32 1, %v909
        %v911 = vrot.slane %v881, %v910
        %v912 = vlaneseq
        %v913 = vshrl.u32 %v912, 7
        %v914 = vsub.s32 1, %v913
        %v915 = vrot.slane %v885, %v914
        %v916 = vlaneseq
        %v917 = vshrl.u32 %v916, 7
        %v918 = vsub.s32 1, %v917
        %v919 = vrot.slane %v889, %v918
        %v920 = vmul.f32 %v740, %v899
        %v921 = vmul.f32 %v740, %v903
        %v922 = vmul.f32 %v740, %v907
        %v923 = vmul.f32 %v740, %v911
        %v924 = vmul.f32 %v740, %v915
        %v925 = vmul.f32 %v740, %v919
        %v926 = vmul.f32 %v744, %v899
        %v927 = vmul.f32 %v744, %v903
        %v928 = vmul.f32 %v744, %v907
        %v929 = vmul.f32 %v744, %v911
        %v930 = vmul.f32 %v744, %v915
        %v931 = vmul.f32 %v744, %v919
        %v932 = vmul.f32 %v748, %v899
        %v933 = vmul.f32 %v748, %v903
        %v934 = vmul.f32 %v748, %v907
        %v935 = vmul.f32 %v748, %v911
        %v936 = vmul.f32 %v748, %v915
        %v937 = vmul.f32 %v748, %v919
        %v938 = vmul.f32 %v752, %v899
        %v939 = vmul.f32 %v752, %v903
        %v940 = vmul.f32 %v752, %v907
        %v941 = vmul.f32 %v752, %v911
        %v942 = vmul.f32 %v752, %v915
        %v943 = vmul.f32 %v752, %v919
        %v944 = vmul.f32 %v756, %v899
        %v945 = vmul.f32 %v756, %v903
        %v946 = vmul.f32 %v756, %v907
        %v947 = vmul.f32 %v756, %v911
        %v948 = vmul.f32 %v756, %v915
        %v949 = vmul.f32 %v756, %v919
        %v950 = vmul.f32 %v760, %v899
        %v951 = vmul.f32 %v760, %v903
        %v952 = vmul.f32 %v760, %v907
        %v953 = vmul.f32 %v760, %v911
        %v954 = vmul.f32 %v760, %v915
        %v955 = vmul.f32 %v760, %v919
        %v956 = vmul.f32 %v764, %v899
        %v957 = vmul.f32 %v764, %v903
        %v958 = vmul.f32 %v764, %v907
        %v959 = vmul.f32 %v764, %v911
        %v960 = vmul.f32 %v764, %v915
        %v961 = vmul.f32 %v764, %v919
        %v962 = vmul.f32 %v768, %v899
        %v963 = vmul.f32 %v768, %v903
        %v964 = vmul.f32 %v768, %v907
        %v965 = vmul.f32 %v768, %v911
        %v966 = vmul.f32 %v768, %v915
        %v967 = vmul.f32 %v768, %v919
        %v968 = vmul.f32 %v772, %v899
        %v969 = vmul.f32 %v772, %v903
        %v970 = vmul.f32 %v772, %v907
        %v971 = vmul.f32 %v772, %v911
        %v972 = vmul.f32 %v772, %v915
        %v973 = vmul.f32 %v772, %v919
        %v974 = vmul.f32 %v776, %v899
        %v975 = vmul.f32 %v776, %v903
        %v976 = vmul.f32 %v776, %v907
        %v977 = vmul.f32 %v776, %v911
        %v978 = vmul.f32 %v776, %v915
        %v979 = vmul.f32 %v776, %v919
        %v980 = vmul.f32 %v780, %v899
        %v981 = vmul.f32 %v780, %v903
        %v982 = vmul.f32 %v780, %v907
        %v983 = vmul.f32 %v780, %v911
        %v984 = vmul.f32 %v780, %v915
        %v985 = vmul.f32 %v780, %v919
        %v986 = vmul.f32 %v784, %v899
        %v987 = vmul.f32 %v784, %v903
        %v988 = vmul.f32 %v784, %v907
        %v989 = vmul.f32 %v784, %v911
        %v990 = vmul.f32 %v784, %v915
        %v991 = vmul.f32 %v784, %v919
        %v992 = vmul.f32 %v788, %v899
        %v993 = vmul.f32 %v788, %v903
        %v994 = vmul.f32 %v788, %v907
        %v995 = vmul.f32 %v788, %v911
        %v996 = vmul.f32 %v788, %v915
        %v997 = vmul.f32 %v788, %v919
        %v998 = vmul.f32 %v792, %v899
        %v999 = vmul.f32 %v792, %v903
        %v1000 = vmul.f32 %v792, %v907
        %v1001 = vmul.f32 %v792, %v911
        %v1002 = vmul.f32 %v792, %v915
        %v1003 = vmul.f32 %v792, %v919
        %v1004 = vmul.f32 %v796, %v899
        %v1005 = vmul.f32 %v796, %v903
        %v1006 = vmul.f32 %v796, %v907
        %v1007 = vmul.f32 %v796, %v911
        %v1008 = vmul.f32 %v796, %v915
        %v1009 = vmul.f32 %v796, %v919
        %v1010 = vmul.f32 %v800, %v899
        %v1011 = vmul.f32 %v800, %v903
        %v1012 = vmul.f32 %v800, %v907
        %v1013 = vmul.f32 %v800, %v911
        %v1014 = vmul.f32 %v800, %v915
        %v1015 = vmul.f32 %v800, %v919
        %v1016 = vmul.f32 %v804, %v899
        %v1017 = vmul.f32 %v804, %v903
        %v1018 = vmul.f32 %v804, %v907
        %v1019 = vmul.f32 %v804, %v911
        %v1020 = vmul.f32 %v804, %v915
        %v1021 = vmul.f32 %v804, %v919
        %v1022 = vmul.f32 %v808, %v899
        %v1023 = vmul.f32 %v808, %v903
        %v1024 = vmul.f32 %v808, %v907
        %v1025 = vmul.f32 %v808, %v911
        %v1026 = vmul.f32 %v808, %v915
        %v1027 = vmul.f32 %v808, %v919
        %v1028 = vmul.f32 %v812, %v899
        %v1029 = vmul.f32 %v812, %v903
        %v1030 = vmul.f32 %v812, %v907
        %v1031 = vmul.f32 %v812, %v911
        %v1032 = vmul.f32 %v812, %v915
        %v1033 = vmul.f32 %v812, %v919
        %v1034 = vmul.f32 %v816, %v899
        %v1035 = vmul.f32 %v816, %v903
        %v1036 = vmul.f32 %v816, %v907
        %v1037 = vmul.f32 %v816, %v911
        %v1038 = vmul.f32 %v816, %v915
        %v1039 = vmul.f32 %v816, %v919
        %v1040 = vmul.f32 %v820, %v899
        %v1041 = vmul.f32 %v820, %v903
        %v1042 = vmul.f32 %v820, %v907
        %v1043 = vmul.f32 %v820, %v911
        %v1044 = vmul.f32 %v820, %v915
        %v1045 = vmul.f32 %v820, %v919
        %v1046 = vmul.f32 %v824, %v899
        %v1047 = vmul.f32 %v824, %v903
        %v1048 = vmul.f32 %v824, %v907
        %v1049 = vmul.f32 %v824, %v911
        %v1050 = vmul.f32 %v824, %v915
        %v1051 = vmul.f32 %v824, %v919
        %v1052 = vmul.f32 %v828, %v899
        %v1053 = vmul.f32 %v828, %v903
        %v1054 = vmul.f32 %v828, %v907
        %v1055 = vmul.f32 %v828, %v911
        %v1056 = vmul.f32 %v828, %v915
        %v1057 = vmul.f32 %v828, %v919
        %v1058 = vmul.f32 %v832, %v899
        %v1059 = vmul.f32 %v832, %v903
        %v1060 = vmul.f32 %v832, %v907
        %v1061 = vmul.f32 %v832, %v911
        %v1062 = vmul.f32 %v832, %v915
        %v1063 = vmul.f32 %v832, %v919
        %v1064 = vmul.f32 %v836, %v899
        %v1065 = vmul.f32 %v836, %v903
        %v1066 = vmul.f32 %v836, %v907
        %v1067 = vmul.f32 %v836, %v911
        %v1068 = vmul.f32 %v836, %v915
        %v1069 = vmul.f32 %v836, %v919
        %v1070 = vmul.f32 %v840, %v899
        %v1071 = vmul.f32 %v840, %v903
        %v1072 = vmul.f32 %v840, %v907
        %v1073 = vmul.f32 %v840, %v911
        %v1074 = vmul.f32 %v840, %v915
        %v1075 = vmul.f32 %v840, %v919
        %v1076 = vmul.f32 %v844, %v899
        %v1077 = vmul.f32 %v844, %v903
        %v1078 = vmul.f32 %v844, %v907
        %v1079 = vmul.f32 %v844, %v911
        %v1080 = vmul.f32 %v844, %v915
        %v1081 = vmul.f32 %v844, %v919
        %v1082 = vmul.f32 %v848, %v899
        %v1083 = vmul.f32 %v848, %v903
        %v1084 = vmul.f32 %v848, %v907
        %v1085 = vmul.f32 %v848, %v911
        %v1086 = vmul.f32 %v848, %v915
        %v1087 = vmul.f32 %v848, %v919
        %v1088 = vmul.f32 %v852, %v899
        %v1089 = vmul.f32 %v852, %v903
        %v1090 = vmul.f32 %v852, %v907
        %v1091 = vmul.f32 %v852, %v911
        %v1092 = vmul.f32 %v852, %v915
        %v1093 = vmul.f32 %v852, %v919
        %v1094 = vmul.f32 %v856, %v899
        %v1095 = vmul.f32 %v856, %v903
        %v1096 = vmul.f32 %v856, %v907
        %v1097 = vmul.f32 %v856, %v911
        %v1098 = vmul.f32 %v856, %v915
        %v1099 = vmul.f32 %v856, %v919
        %v1100 = vmul.f32 %v860, %v899
        %v1101 = vmul.f32 %v860, %v903
        %v1102 = vmul.f32 %v860, %v907
        %v1103 = vmul.f32 %v860, %v911
        %v1104 = vmul.f32 %v860, %v915
        %v1105 = vmul.f32 %v860, %v919
        %v1106 = vmul.f32 %v864, %v899
        %v1107 = vmul.f32 %v864, %v903
        %v1108 = vmul.f32 %v864, %v907
        %v1109 = vmul.f32 %v864, %v911
        %v1110 = vmul.f32 %v864, %v915
        %v1111 = vmul.f32 %v864, %v919
        %v1112 = vadd.f32 %v546, %v920
        %v1113 = vadd.f32 %v547, %v921
        %v1114 = vadd.f32 %v548, %v922
        %v1115 = vadd.f32 %v549, %v923
        %v1116 = vadd.f32 %v550, %v924
        %v1117 = vadd.f32 %v551, %v925
        %v1118 = vadd.f32 %v552, %v926
        %v1119 = vadd.f32 %v553, %v927
        %v1120 = vadd.f32 %v554, %v928
        %v1121 = vadd.f32 %v555, %v929
        %v1122 = vadd.f32 %v556, %v930
        %v1123 = vadd.f32 %v557, %v931
        %v1124 = vadd.f32 %v558, %v932
        %v1125 = vadd.f32 %v559, %v933
        %v1126 = vadd.f32 %v560, %v934
        %v1127 = vadd.f32 %v561, %v935
        %v1128 = vadd.f32 %v562, %v936
        %v1129 = vadd.f32 %v563, %v937
        %v1130 = vadd.f32 %v564, %v938
        %v1131 = vadd.f32 %v565, %v939
        %v1132 = vadd.f32 %v566, %v940
        %v1133 = vadd.f32 %v567, %v941
        %v1134 = vadd.f32 %v568, %v942
        %v1135 = vadd.f32 %v569, %v943
        %v1136 = vadd.f32 %v570, %v944
        %v1137 = vadd.f32 %v571, %v945
        %v1138 = vadd.f32 %v572, %v946
        %v1139 = vadd.f32 %v573, %v947
        %v1140 = vadd.f32 %v574, %v948
        %v1141 = vadd.f32 %v575, %v949
        %v1142 = vadd.f32 %v576, %v950
        %v1143 = vadd.f32 %v577, %v951
        %v1144 = vadd.f32 %v578, %v952
        %v1145 = vadd.f32 %v579, %v953
        %v1146 = vadd.f32 %v580, %v954
        %v1147 = vadd.f32 %v581, %v955
        %v1148 = vadd.f32 %v582, %v956
        %v1149 = vadd.f32 %v583, %v957
        %v1150 = vadd.f32 %v584, %v958
        %v1151 = vadd.f32 %v585, %v959
        %v1152 = vadd.f32 %v586, %v960
        %v1153 = vadd.f32 %v587, %v961
        %v1154 = vadd.f32 %v588, %v962
        %v1155 = vadd.f32 %v589, %v963
        %v1156 = vadd.f32 %v590, %v964
        %v1157 = vadd.f32 %v591, %v965
        %v1158 = vadd.f32 %v592, %v966
        %v1159 = vadd.f32 %v593, %v967
        %v1160 = vadd.f32 %v594, %v968
        %v1161 = vadd.f32 %v595, %v969
        %v1162 = vadd.f32 %v596, %v970
        %v1163 = vadd.f32 %v597, %v971
        %v1164 = vadd.f32 %v598, %v972
        %v1165 = vadd.f32 %v599, %v973
        %v1166 = vadd.f32 %v600, %v974
        %v1167 = vadd.f32 %v601, %v975
        %v1168 = vadd.f32 %v602, %v976
        %v1169 = vadd.f32 %v603, %v977
        %v1170 = vadd.f32 %v604, %v978
        %v1171 = vadd.f32 %v605, %v979
        %v1172 = vadd.f32 %v606, %v980
        %v1173 = vadd.f32 %v607, %v981
        %v1174 = vadd.f32 %v608, %v982
        %v1175 = vadd.f32 %v609, %v983
        %v1176 = vadd.f32 %v610, %v984
        %v1177 = vadd.f32 %v611, %v985
        %v1178 = vadd.f32 %v612, %v986
        %v1179 = vadd.f32 %v613, %v987
        %v1180 = vadd.f32 %v614, %v988
        %v1181 = vadd.f32 %v615, %v989
        %v1182 = vadd.f32 %v616, %v990
        %v1183 = vadd.f32 %v617, %v991
        %v1184 = vadd.f32 %v618, %v992
        %v1185 = vadd.f32 %v619, %v993
        %v1186 = vadd.f32 %v620, %v994
        %v1187 = vadd.f32 %v621, %v995
        %v1188 = vadd.f32 %v622, %v996
        %v1189 = vadd.f32 %v623, %v997
        %v1190 = vadd.f32 %v624, %v998
        %v1191 = vadd.f32 %v625, %v999
        %v1192 = vadd.f32 %v626, %v1000
        %v1193 = vadd.f32 %v627, %v1001
        %v1194 = vadd.f32 %v628, %v1002
        %v1195 = vadd.f32 %v629, %v1003
        %v1196 = vadd.f32 %v630, %v1004
        %v1197 = vadd.f32 %v631, %v1005
        %v1198 = vadd.f32 %v632, %v1006
        %v1199 = vadd.f32 %v633, %v1007
        %v1200 = vadd.f32 %v634, %v1008
        %v1201 = vadd.f32 %v635, %v1009
        %v1202 = vadd.f32 %v636, %v1010
        %v1203 = vadd.f32 %v637, %v1011
        %v1204 = vadd.f32 %v638, %v1012
        %v1205 = vadd.f32 %v639, %v1013
        %v1206 = vadd.f32 %v640, %v1014
        %v1207 = vadd.f32 %v641, %v1015
        %v1208 = vadd.f32 %v642, %v1016
        %v1209 = vadd.f32 %v643, %v1017
        %v1210 = vadd.f32 %v644, %v1018
        %v1211 = vadd.f32 %v645, %v1019
        %v1212 = vadd.f32 %v646, %v1020
        %v1213 = vadd.f32 %v647, %v1021
        %v1214 = vadd.f32 %v648, %v1022
        %v1215 = vadd.f32 %v649, %v1023
        %v1216 = vadd.f32 %v650, %v1024
        %v1217 = vadd.f32 %v651, %v1025
        %v1218 = vadd.f32 %v652, %v1026
        %v1219 = vadd.f32 %v653, %v1027
        %v1220 = vadd.f32 %v654, %v1028
        %v1221 = vadd.f32 %v655, %v1029
        %v1222 = vadd.f32 %v656, %v1030
        %v1223 = vadd.f32 %v657, %v1031
        %v1224 = vadd.f32 %v658, %v1032
        %v1225 = vadd.f32 %v659, %v1033
        %v1226 = vadd.f32 %v660, %v1034
        %v1227 = vadd.f32 %v661, %v1035
        %v1228 = vadd.f32 %v662, %v1036
        %v1229 = vadd.f32 %v663, %v1037
        %v1230 = vadd.f32 %v664, %v1038
        %v1231 = vadd.f32 %v665, %v1039
        %v1232 = vadd.f32 %v666, %v1040
        %v1233 = vadd.f32 %v667, %v1041
        %v1234 = vadd.f32 %v668, %v1042
        %v1235 = vadd.f32 %v669, %v1043
        %v1236 = vadd.f32 %v670, %v1044
        %v1237 = vadd.f32 %v671, %v1045
        %v1238 = vadd.f32 %v672, %v1046
        %v1239 = vadd.f32 %v673, %v1047
        %v1240 = vadd.f32 %v674, %v1048
        %v1241 = vadd.f32 %v675, %v1049
        %v1242 = vadd.f32 %v676, %v1050
        %v1243 = vadd.f32 %v677, %v1051
        %v1244 = vadd.f32 %v678, %v1052
        %v1245 = vadd.f32 %v679, %v1053
        %v1246 = vadd.f32 %v680, %v1054
        %v1247 = vadd.f32 %v681, %v1055
        %v1248 = vadd.f32 %v682, %v1056
        %v1249 = vadd.f32 %v683, %v1057
        %v1250 = vadd.f32 %v684, %v1058
        %v1251 = vadd.f32 %v685, %v1059
        %v1252 = vadd.f32 %v686, %v1060
        %v1253 = vadd.f32 %v687, %v1061
        %v1254 = vadd.f32 %v688, %v1062
        %v1255 = vadd.f32 %v689, %v1063
        %v1256 = vadd.f32 %v690, %v1064
        %v1257 = vadd.f32 %v691, %v1065
        %v1258 = vadd.f32 %v692, %v1066
        %v1259 = vadd.f32 %v693, %v1067
        %v1260 = vadd.f32 %v694, %v1068
        %v1261 = vadd.f32 %v695, %v1069
        %v1262 = vadd.f32 %v696, %v1070
        %v1263 = vadd.f32 %v697, %v1071
        %v1264 = vadd.f32 %v698, %v1072
        %v1265 = vadd.f32 %v699, %v1073
        %v1266 = vadd.f32 %v700, %v1074
        %v1267 = vadd.f32 %v701, %v1075
        %v1268 = vadd.f32 %v702, %v1076
        %v1269 = vadd.f32 %v703, %v1077
        %v1270 = vadd.f32 %v704, %v1078
        %v1271 = vadd.f32 %v705, %v1079
        %v1272 = vadd.f32 %v706, %v1080
        %v1273 = vadd.f32 %v707, %v1081
        %v1274 = vadd.f32 %v708, %v1082
        %v1275 = vadd.f32 %v709, %v1083
        %v1276 = vadd.f32 %v710, %v1084
        %v1277 = vadd.f32 %v711, %v1085
        %v1278 = vadd.f32 %v712, %v1086
        %v1279 = vadd.f32 %v713, %v1087
        %v1280 = vadd.f32 %v714, %v1088
        %v1281 = vadd.f32 %v715, %v1089
        %v1282 = vadd.f32 %v716, %v1090
        %v1283 = vadd.f32 %v717, %v1091
        %v1284 = vadd.f32 %v718, %v1092
        %v1285 = vadd.f32 %v719, %v1093
        %v1286 = vadd.f32 %v720, %v1094
        %v1287 = vadd.f32 %v721, %v1095
        %v1288 = vadd.f32 %v722, %v1096
        %v1289 = vadd.f32 %v723, %v1097
        %v1290 = vadd.f32 %v724, %v1098
        %v1291 = vadd.f32 %v725, %v1099
        %v1292 = vadd.f32 %v726, %v1100
        %v1293 = vadd.f32 %v727, %v1101
        %v1294 = vadd.f32 %v728, %v1102
        %v1295 = vadd.f32 %v729, %v1103
        %v1296 = vadd.f32 %v730, %v1104
        %v1297 = vadd.f32 %v731, %v1105
        %v1298 = vadd.f32 %v732, %v1106
        %v1299 = vadd.f32 %v733, %v1107
        %v1300 = vadd.f32 %v734, %v1108
        %v1301 = vadd.f32 %v735, %v1109
        %v1302 = vadd.f32 %v736, %v1110
        %v1303 = vadd.f32 %v737, %v1111
        %v1304 = vld [vmem:[%s2] sm:$0x3f]
        %v1306 = vlaneseq
        %v1307 = vshrl.u32 %v1306, 7
        %v1308 = vsub.s32 0, %v1307
        %v1309 = vrot.slane %v1304, %v1308
        %v1310 = vlaneseq
        %v1311 = vshrl.u32 %v1310, 7
        %v1312 = vsub.s32 1, %v1311
        %v1313 = vrot.slane %v1304, %v1312
        %v1314 = vlaneseq
        %v1315 = vshrl.u32 %v1314, 7
        %v1316 = vsub.s32 2, %v1315
        %v1317 = vrot.slane %v1304, %v1316
        %v1318 = vlaneseq
        %v1319 = vshrl.u32 %v1318, 7
        %v1320 = vsub.s32 3, %v1319
        %v1321 = vrot.slane %v1304, %v1320
        %v1322 = vlaneseq
        %v1323 = vshrl.u32 %v1322, 7
        %v1324 = vsub.s32 4, %v1323
        %v1325 = vrot.slane %v1304, %v1324
        %v1326 = vlaneseq
        %v1327 = vshrl.u32 %v1326, 7
        %v1328 = vsub.s32 5, %v1327
        %v1329 = vrot.slane %v1304, %v1328
        %v1336 = vadd.f32 %v1112, %v1309
        %v1337 = vadd.f32 %v1113, %v1313
        %v1338 = vadd.f32 %v1114, %v1317
        %v1339 = vadd.f32 %v1115, %v1321
        %v1340 = vadd.f32 %v1116, %v1325
        %v1341 = vadd.f32 %v1117, %v1329
        %v1342 = vadd.f32 %v1118, %v1309
        %v1343 = vadd.f32 %v1119, %v1313
        %v1344 = vadd.f32 %v1120, %v1317
        %v1345 = vadd.f32 %v1121, %v1321
        %v1346 = vadd.f32 %v1122, %v1325
        %v1347 = vadd.f32 %v1123, %v1329
        %v1348 = vadd.f32 %v1124, %v1309
        %v1349 = vadd.f32 %v1125, %v1313
        %v1350 = vadd.f32 %v1126, %v1317
        %v1351 = vadd.f32 %v1127, %v1321
        %v1352 = vadd.f32 %v1128, %v1325
        %v1353 = vadd.f32 %v1129, %v1329
        %v1354 = vadd.f32 %v1130, %v1309
        %v1355 = vadd.f32 %v1131, %v1313
        %v1356 = vadd.f32 %v1132, %v1317
        %v1357 = vadd.f32 %v1133, %v1321
        %v1358 = vadd.f32 %v1134, %v1325
        %v1359 = vadd.f32 %v1135, %v1329
        %v1360 = vadd.f32 %v1136, %v1309
        %v1361 = vadd.f32 %v1137, %v1313
        %v1362 = vadd.f32 %v1138, %v1317
        %v1363 = vadd.f32 %v1139, %v1321
        %v1364 = vadd.f32 %v1140, %v1325
        %v1365 = vadd.f32 %v1141, %v1329
        %v1366 = vadd.f32 %v1142, %v1309
        %v1367 = vadd.f32 %v1143, %v1313
        %v1368 = vadd.f32 %v1144, %v1317
        %v1369 = vadd.f32 %v1145, %v1321
        %v1370 = vadd.f32 %v1146, %v1325
        %v1371 = vadd.f32 %v1147, %v1329
        %v1372 = vadd.f32 %v1148, %v1309
        %v1373 = vadd.f32 %v1149, %v1313
        %v1374 = vadd.f32 %v1150, %v1317
        %v1375 = vadd.f32 %v1151, %v1321
        %v1376 = vadd.f32 %v1152, %v1325
        %v1377 = vadd.f32 %v1153, %v1329
        %v1378 = vadd.f32 %v1154, %v1309
        %v1379 = vadd.f32 %v1155, %v1313
        %v1380 = vadd.f32 %v1156, %v1317
        %v1381 = vadd.f32 %v1157, %v1321
        %v1382 = vadd.f32 %v1158, %v1325
        %v1383 = vadd.f32 %v1159, %v1329
        %v1384 = vadd.f32 %v1160, %v1309
        %v1385 = vadd.f32 %v1161, %v1313
        %v1386 = vadd.f32 %v1162, %v1317
        %v1387 = vadd.f32 %v1163, %v1321
        %v1388 = vadd.f32 %v1164, %v1325
        %v1389 = vadd.f32 %v1165, %v1329
        %v1390 = vadd.f32 %v1166, %v1309
        %v1391 = vadd.f32 %v1167, %v1313
        %v1392 = vadd.f32 %v1168, %v1317
        %v1393 = vadd.f32 %v1169, %v1321
        %v1394 = vadd.f32 %v1170, %v1325
        %v1395 = vadd.f32 %v1171, %v1329
        %v1396 = vadd.f32 %v1172, %v1309
        %v1397 = vadd.f32 %v1173, %v1313
        %v1398 = vadd.f32 %v1174, %v1317
        %v1399 = vadd.f32 %v1175, %v1321
        %v1400 = vadd.f32 %v1176, %v1325
        %v1401 = vadd.f32 %v1177, %v1329
        %v1402 = vadd.f32 %v1178, %v1309
        %v1403 = vadd.f32 %v1179, %v1313
        %v1404 = vadd.f32 %v1180, %v1317
        %v1405 = vadd.f32 %v1181, %v1321
        %v1406 = vadd.f32 %v1182, %v1325
        %v1407 = vadd.f32 %v1183, %v1329
        %v1408 = vadd.f32 %v1184, %v1309
        %v1409 = vadd.f32 %v1185, %v1313
        %v1410 = vadd.f32 %v1186, %v1317
        %v1411 = vadd.f32 %v1187, %v1321
        %v1412 = vadd.f32 %v1188, %v1325
        %v1413 = vadd.f32 %v1189, %v1329
        %v1414 = vadd.f32 %v1190, %v1309
        %v1415 = vadd.f32 %v1191, %v1313
        %v1416 = vadd.f32 %v1192, %v1317
        %v1417 = vadd.f32 %v1193, %v1321
        %v1418 = vadd.f32 %v1194, %v1325
        %v1419 = vadd.f32 %v1195, %v1329
        %v1420 = vadd.f32 %v1196, %v1309
        %v1421 = vadd.f32 %v1197, %v1313
        %v1422 = vadd.f32 %v1198, %v1317
        %v1423 = vadd.f32 %v1199, %v1321
        %v1424 = vadd.f32 %v1200, %v1325
        %v1425 = vadd.f32 %v1201, %v1329
        %v1426 = vadd.f32 %v1202, %v1309
        %v1427 = vadd.f32 %v1203, %v1313
        %v1428 = vadd.f32 %v1204, %v1317
        %v1429 = vadd.f32 %v1205, %v1321
        %v1430 = vadd.f32 %v1206, %v1325
        %v1431 = vadd.f32 %v1207, %v1329
        %v1432 = vadd.f32 %v1208, %v1309
        %v1433 = vadd.f32 %v1209, %v1313
        %v1434 = vadd.f32 %v1210, %v1317
        %v1435 = vadd.f32 %v1211, %v1321
        %v1436 = vadd.f32 %v1212, %v1325
        %v1437 = vadd.f32 %v1213, %v1329
        %v1438 = vadd.f32 %v1214, %v1309
        %v1439 = vadd.f32 %v1215, %v1313
        %v1440 = vadd.f32 %v1216, %v1317
        %v1441 = vadd.f32 %v1217, %v1321
        %v1442 = vadd.f32 %v1218, %v1325
        %v1443 = vadd.f32 %v1219, %v1329
        %v1444 = vadd.f32 %v1220, %v1309
        %v1445 = vadd.f32 %v1221, %v1313
        %v1446 = vadd.f32 %v1222, %v1317
        %v1447 = vadd.f32 %v1223, %v1321
        %v1448 = vadd.f32 %v1224, %v1325
        %v1449 = vadd.f32 %v1225, %v1329
        %v1450 = vadd.f32 %v1226, %v1309
        %v1451 = vadd.f32 %v1227, %v1313
        %v1452 = vadd.f32 %v1228, %v1317
        %v1453 = vadd.f32 %v1229, %v1321
        %v1454 = vadd.f32 %v1230, %v1325
        %v1455 = vadd.f32 %v1231, %v1329
        %v1456 = vadd.f32 %v1232, %v1309
        %v1457 = vadd.f32 %v1233, %v1313
        %v1458 = vadd.f32 %v1234, %v1317
        %v1459 = vadd.f32 %v1235, %v1321
        %v1460 = vadd.f32 %v1236, %v1325
        %v1461 = vadd.f32 %v1237, %v1329
        %v1462 = vadd.f32 %v1238, %v1309
        %v1463 = vadd.f32 %v1239, %v1313
        %v1464 = vadd.f32 %v1240, %v1317
        %v1465 = vadd.f32 %v1241, %v1321
        %v1466 = vadd.f32 %v1242, %v1325
        %v1467 = vadd.f32 %v1243, %v1329
        %v1468 = vadd.f32 %v1244, %v1309
        %v1469 = vadd.f32 %v1245, %v1313
        %v1470 = vadd.f32 %v1246, %v1317
        %v1471 = vadd.f32 %v1247, %v1321
        %v1472 = vadd.f32 %v1248, %v1325
        %v1473 = vadd.f32 %v1249, %v1329
        %v1474 = vadd.f32 %v1250, %v1309
        %v1475 = vadd.f32 %v1251, %v1313
        %v1476 = vadd.f32 %v1252, %v1317
        %v1477 = vadd.f32 %v1253, %v1321
        %v1478 = vadd.f32 %v1254, %v1325
        %v1479 = vadd.f32 %v1255, %v1329
        %v1480 = vadd.f32 %v1256, %v1309
        %v1481 = vadd.f32 %v1257, %v1313
        %v1482 = vadd.f32 %v1258, %v1317
        %v1483 = vadd.f32 %v1259, %v1321
        %v1484 = vadd.f32 %v1260, %v1325
        %v1485 = vadd.f32 %v1261, %v1329
        %v1486 = vadd.f32 %v1262, %v1309
        %v1487 = vadd.f32 %v1263, %v1313
        %v1488 = vadd.f32 %v1264, %v1317
        %v1489 = vadd.f32 %v1265, %v1321
        %v1490 = vadd.f32 %v1266, %v1325
        %v1491 = vadd.f32 %v1267, %v1329
        %v1492 = vadd.f32 %v1268, %v1309
        %v1493 = vadd.f32 %v1269, %v1313
        %v1494 = vadd.f32 %v1270, %v1317
        %v1495 = vadd.f32 %v1271, %v1321
        %v1496 = vadd.f32 %v1272, %v1325
        %v1497 = vadd.f32 %v1273, %v1329
        %v1498 = vadd.f32 %v1274, %v1309
        %v1499 = vadd.f32 %v1275, %v1313
        %v1500 = vadd.f32 %v1276, %v1317
        %v1501 = vadd.f32 %v1277, %v1321
        %v1502 = vadd.f32 %v1278, %v1325
        %v1503 = vadd.f32 %v1279, %v1329
        %v1504 = vadd.f32 %v1280, %v1309
        %v1505 = vadd.f32 %v1281, %v1313
        %v1506 = vadd.f32 %v1282, %v1317
        %v1507 = vadd.f32 %v1283, %v1321
        %v1508 = vadd.f32 %v1284, %v1325
        %v1509 = vadd.f32 %v1285, %v1329
        %v1510 = vadd.f32 %v1286, %v1309
        %v1511 = vadd.f32 %v1287, %v1313
        %v1512 = vadd.f32 %v1288, %v1317
        %v1513 = vadd.f32 %v1289, %v1321
        %v1514 = vadd.f32 %v1290, %v1325
        %v1515 = vadd.f32 %v1291, %v1329
        %v1516 = vadd.f32 %v1292, %v1309
        %v1517 = vadd.f32 %v1293, %v1313
        %v1518 = vadd.f32 %v1294, %v1317
        %v1519 = vadd.f32 %v1295, %v1321
        %v1520 = vadd.f32 %v1296, %v1325
        %v1521 = vadd.f32 %v1297, %v1329
        %v1522 = vadd.f32 %v1298, %v1309
        %v1523 = vadd.f32 %v1299, %v1313
        %v1524 = vadd.f32 %v1300, %v1317
        %v1525 = vadd.f32 %v1301, %v1321
        %v1526 = vadd.f32 %v1302, %v1325
        %v1527 = vadd.f32 %v1303, %v1329
        %v1528 = vmul.f32 %v1336, 0.15915494
        %v1529 = vmul.f32 %v1337, 0.15915494
        %v1530 = vmul.f32 %v1338, 0.15915494
        %v1531 = vmul.f32 %v1339, 0.15915494
        %v1532 = vmul.f32 %v1340, 0.15915494
        %v1533 = vmul.f32 %v1341, 0.15915494
        %v1534 = vmul.f32 %v1342, 0.15915494
        %v1535 = vmul.f32 %v1343, 0.15915494
        %v1536 = vmul.f32 %v1344, 0.15915494
        %v1537 = vmul.f32 %v1345, 0.15915494
        %v1538 = vmul.f32 %v1346, 0.15915494
        %v1539 = vmul.f32 %v1347, 0.15915494
        %v1540 = vmul.f32 %v1348, 0.15915494
        %v1541 = vmul.f32 %v1349, 0.15915494
        %v1542 = vmul.f32 %v1350, 0.15915494
        %v1543 = vmul.f32 %v1351, 0.15915494
        %v1544 = vmul.f32 %v1352, 0.15915494
        %v1545 = vmul.f32 %v1353, 0.15915494
        %v1546 = vmul.f32 %v1354, 0.15915494
        %v1547 = vmul.f32 %v1355, 0.15915494
        %v1548 = vmul.f32 %v1356, 0.15915494
        %v1549 = vmul.f32 %v1357, 0.15915494
        %v1550 = vmul.f32 %v1358, 0.15915494
        %v1551 = vmul.f32 %v1359, 0.15915494
        %v1552 = vmul.f32 %v1360, 0.15915494
        %v1553 = vmul.f32 %v1361, 0.15915494
        %v1554 = vmul.f32 %v1362, 0.15915494
        %v1555 = vmul.f32 %v1363, 0.15915494
        %v1556 = vmul.f32 %v1364, 0.15915494
        %v1557 = vmul.f32 %v1365, 0.15915494
        %v1558 = vmul.f32 %v1366, 0.15915494
        %v1559 = vmul.f32 %v1367, 0.15915494
        %v1560 = vmul.f32 %v1368, 0.15915494
        %v1561 = vmul.f32 %v1369, 0.15915494
        %v1562 = vmul.f32 %v1370, 0.15915494
        %v1563 = vmul.f32 %v1371, 0.15915494
        %v1564 = vmul.f32 %v1372, 0.15915494
        %v1565 = vmul.f32 %v1373, 0.15915494
        %v1566 = vmul.f32 %v1374, 0.15915494
        %v1567 = vmul.f32 %v1375, 0.15915494
        %v1568 = vmul.f32 %v1376, 0.15915494
        %v1569 = vmul.f32 %v1377, 0.15915494
        %v1570 = vmul.f32 %v1378, 0.15915494
        %v1571 = vmul.f32 %v1379, 0.15915494
        %v1572 = vmul.f32 %v1380, 0.15915494
        %v1573 = vmul.f32 %v1381, 0.15915494
        %v1574 = vmul.f32 %v1382, 0.15915494
        %v1575 = vmul.f32 %v1383, 0.15915494
        %v1576 = vmul.f32 %v1384, 0.15915494
        %v1577 = vmul.f32 %v1385, 0.15915494
        %v1578 = vmul.f32 %v1386, 0.15915494
        %v1579 = vmul.f32 %v1387, 0.15915494
        %v1580 = vmul.f32 %v1388, 0.15915494
        %v1581 = vmul.f32 %v1389, 0.15915494
        %v1582 = vmul.f32 %v1390, 0.15915494
        %v1583 = vmul.f32 %v1391, 0.15915494
        %v1584 = vmul.f32 %v1392, 0.15915494
        %v1585 = vmul.f32 %v1393, 0.15915494
        %v1586 = vmul.f32 %v1394, 0.15915494
        %v1587 = vmul.f32 %v1395, 0.15915494
        %v1588 = vmul.f32 %v1396, 0.15915494
        %v1589 = vmul.f32 %v1397, 0.15915494
        %v1590 = vmul.f32 %v1398, 0.15915494
        %v1591 = vmul.f32 %v1399, 0.15915494
        %v1592 = vmul.f32 %v1400, 0.15915494
        %v1593 = vmul.f32 %v1401, 0.15915494
        %v1594 = vmul.f32 %v1402, 0.15915494
        %v1595 = vmul.f32 %v1403, 0.15915494
        %v1596 = vmul.f32 %v1404, 0.15915494
        %v1597 = vmul.f32 %v1405, 0.15915494
        %v1598 = vmul.f32 %v1406, 0.15915494
        %v1599 = vmul.f32 %v1407, 0.15915494
        %v1600 = vmul.f32 %v1408, 0.15915494
        %v1601 = vmul.f32 %v1409, 0.15915494
        %v1602 = vmul.f32 %v1410, 0.15915494
        %v1603 = vmul.f32 %v1411, 0.15915494
        %v1604 = vmul.f32 %v1412, 0.15915494
        %v1605 = vmul.f32 %v1413, 0.15915494
        %v1606 = vmul.f32 %v1414, 0.15915494
        %v1607 = vmul.f32 %v1415, 0.15915494
        %v1608 = vmul.f32 %v1416, 0.15915494
        %v1609 = vmul.f32 %v1417, 0.15915494
        %v1610 = vmul.f32 %v1418, 0.15915494
        %v1611 = vmul.f32 %v1419, 0.15915494
        %v1612 = vmul.f32 %v1420, 0.15915494
        %v1613 = vmul.f32 %v1421, 0.15915494
        %v1614 = vmul.f32 %v1422, 0.15915494
        %v1615 = vmul.f32 %v1423, 0.15915494
        %v1616 = vmul.f32 %v1424, 0.15915494
        %v1617 = vmul.f32 %v1425, 0.15915494
        %v1618 = vmul.f32 %v1426, 0.15915494
        %v1619 = vmul.f32 %v1427, 0.15915494
        %v1620 = vmul.f32 %v1428, 0.15915494
        %v1621 = vmul.f32 %v1429, 0.15915494
        %v1622 = vmul.f32 %v1430, 0.15915494
        %v1623 = vmul.f32 %v1431, 0.15915494
        %v1624 = vmul.f32 %v1432, 0.15915494
        %v1625 = vmul.f32 %v1433, 0.15915494
        %v1626 = vmul.f32 %v1434, 0.15915494
        %v1627 = vmul.f32 %v1435, 0.15915494
        %v1628 = vmul.f32 %v1436, 0.15915494
        %v1629 = vmul.f32 %v1437, 0.15915494
        %v1630 = vmul.f32 %v1438, 0.15915494
        %v1631 = vmul.f32 %v1439, 0.15915494
        %v1632 = vmul.f32 %v1440, 0.15915494
        %v1633 = vmul.f32 %v1441, 0.15915494
        %v1634 = vmul.f32 %v1442, 0.15915494
        %v1635 = vmul.f32 %v1443, 0.15915494
        %v1636 = vmul.f32 %v1444, 0.15915494
        %v1637 = vmul.f32 %v1445, 0.15915494
        %v1638 = vmul.f32 %v1446, 0.15915494
        %v1639 = vmul.f32 %v1447, 0.15915494
        %v1640 = vmul.f32 %v1448, 0.15915494
        %v1641 = vmul.f32 %v1449, 0.15915494
        %v1642 = vmul.f32 %v1450, 0.15915494
        %v1643 = vmul.f32 %v1451, 0.15915494
        %v1644 = vmul.f32 %v1452, 0.15915494
        %v1645 = vmul.f32 %v1453, 0.15915494
        %v1646 = vmul.f32 %v1454, 0.15915494
        %v1647 = vmul.f32 %v1455, 0.15915494
        %v1648 = vmul.f32 %v1456, 0.15915494
        %v1649 = vmul.f32 %v1457, 0.15915494
        %v1650 = vmul.f32 %v1458, 0.15915494
        %v1651 = vmul.f32 %v1459, 0.15915494
        %v1652 = vmul.f32 %v1460, 0.15915494
        %v1653 = vmul.f32 %v1461, 0.15915494
        %v1654 = vmul.f32 %v1462, 0.15915494
        %v1655 = vmul.f32 %v1463, 0.15915494
        %v1656 = vmul.f32 %v1464, 0.15915494
        %v1657 = vmul.f32 %v1465, 0.15915494
        %v1658 = vmul.f32 %v1466, 0.15915494
        %v1659 = vmul.f32 %v1467, 0.15915494
        %v1660 = vmul.f32 %v1468, 0.15915494
        %v1661 = vmul.f32 %v1469, 0.15915494
        %v1662 = vmul.f32 %v1470, 0.15915494
        %v1663 = vmul.f32 %v1471, 0.15915494
        %v1664 = vmul.f32 %v1472, 0.15915494
        %v1665 = vmul.f32 %v1473, 0.15915494
        %v1666 = vmul.f32 %v1474, 0.15915494
        %v1667 = vmul.f32 %v1475, 0.15915494
        %v1668 = vmul.f32 %v1476, 0.15915494
        %v1669 = vmul.f32 %v1477, 0.15915494
        %v1670 = vmul.f32 %v1478, 0.15915494
        %v1671 = vmul.f32 %v1479, 0.15915494
        %v1672 = vmul.f32 %v1480, 0.15915494
        %v1673 = vmul.f32 %v1481, 0.15915494
        %v1674 = vmul.f32 %v1482, 0.15915494
        %v1675 = vmul.f32 %v1483, 0.15915494
        %v1676 = vmul.f32 %v1484, 0.15915494
        %v1677 = vmul.f32 %v1485, 0.15915494
        %v1678 = vmul.f32 %v1486, 0.15915494
        %v1679 = vmul.f32 %v1487, 0.15915494
        %v1680 = vmul.f32 %v1488, 0.15915494
        %v1681 = vmul.f32 %v1489, 0.15915494
        %v1682 = vmul.f32 %v1490, 0.15915494
        %v1683 = vmul.f32 %v1491, 0.15915494
        %v1684 = vmul.f32 %v1492, 0.15915494
        %v1685 = vmul.f32 %v1493, 0.15915494
        %v1686 = vmul.f32 %v1494, 0.15915494
        %v1687 = vmul.f32 %v1495, 0.15915494
        %v1688 = vmul.f32 %v1496, 0.15915494
        %v1689 = vmul.f32 %v1497, 0.15915494
        %v1690 = vmul.f32 %v1498, 0.15915494
        %v1691 = vmul.f32 %v1499, 0.15915494
        %v1692 = vmul.f32 %v1500, 0.15915494
        %v1693 = vmul.f32 %v1501, 0.15915494
        %v1694 = vmul.f32 %v1502, 0.15915494
        %v1695 = vmul.f32 %v1503, 0.15915494
        %v1696 = vmul.f32 %v1504, 0.15915494
        %v1697 = vmul.f32 %v1505, 0.15915494
        %v1698 = vmul.f32 %v1506, 0.15915494
        %v1699 = vmul.f32 %v1507, 0.15915494
        %v1700 = vmul.f32 %v1508, 0.15915494
        %v1701 = vmul.f32 %v1509, 0.15915494
        %v1702 = vmul.f32 %v1510, 0.15915494
        %v1703 = vmul.f32 %v1511, 0.15915494
        %v1704 = vmul.f32 %v1512, 0.15915494
        %v1705 = vmul.f32 %v1513, 0.15915494
        %v1706 = vmul.f32 %v1514, 0.15915494
        %v1707 = vmul.f32 %v1515, 0.15915494
        %v1708 = vmul.f32 %v1516, 0.15915494
        %v1709 = vmul.f32 %v1517, 0.15915494
        %v1710 = vmul.f32 %v1518, 0.15915494
        %v1711 = vmul.f32 %v1519, 0.15915494
        %v1712 = vmul.f32 %v1520, 0.15915494
        %v1713 = vmul.f32 %v1521, 0.15915494
        %v1714 = vmul.f32 %v1522, 0.15915494
        %v1715 = vmul.f32 %v1523, 0.15915494
        %v1716 = vmul.f32 %v1524, 0.15915494
        %v1717 = vmul.f32 %v1525, 0.15915494
        %v1718 = vmul.f32 %v1526, 0.15915494
        %v1719 = vmul.f32 %v1527, 0.15915494
        %v1720 = vadd.f32 %v1528, 0.5
        %v1721 = vadd.f32 %v1529, 0.5
        %v1722 = vadd.f32 %v1530, 0.5
        %v1723 = vadd.f32 %v1531, 0.5
        %v1724 = vadd.f32 %v1532, 0.5
        %v1725 = vadd.f32 %v1533, 0.5
        %v1726 = vadd.f32 %v1534, 0.5
        %v1727 = vadd.f32 %v1535, 0.5
        %v1728 = vadd.f32 %v1536, 0.5
        %v1729 = vadd.f32 %v1537, 0.5
        %v1730 = vadd.f32 %v1538, 0.5
        %v1731 = vadd.f32 %v1539, 0.5
        %v1732 = vadd.f32 %v1540, 0.5
        %v1733 = vadd.f32 %v1541, 0.5
        %v1734 = vadd.f32 %v1542, 0.5
        %v1735 = vadd.f32 %v1543, 0.5
        %v1736 = vadd.f32 %v1544, 0.5
        %v1737 = vadd.f32 %v1545, 0.5
        %v1738 = vadd.f32 %v1546, 0.5
        %v1739 = vadd.f32 %v1547, 0.5
        %v1740 = vadd.f32 %v1548, 0.5
        %v1741 = vadd.f32 %v1549, 0.5
        %v1742 = vadd.f32 %v1550, 0.5
        %v1743 = vadd.f32 %v1551, 0.5
        %v1744 = vadd.f32 %v1552, 0.5
        %v1745 = vadd.f32 %v1553, 0.5
        %v1746 = vadd.f32 %v1554, 0.5
        %v1747 = vadd.f32 %v1555, 0.5
        %v1748 = vadd.f32 %v1556, 0.5
        %v1749 = vadd.f32 %v1557, 0.5
        %v1750 = vadd.f32 %v1558, 0.5
        %v1751 = vadd.f32 %v1559, 0.5
        %v1752 = vadd.f32 %v1560, 0.5
        %v1753 = vadd.f32 %v1561, 0.5
        %v1754 = vadd.f32 %v1562, 0.5
        %v1755 = vadd.f32 %v1563, 0.5
        %v1756 = vadd.f32 %v1564, 0.5
        %v1757 = vadd.f32 %v1565, 0.5
        %v1758 = vadd.f32 %v1566, 0.5
        %v1759 = vadd.f32 %v1567, 0.5
        %v1760 = vadd.f32 %v1568, 0.5
        %v1761 = vadd.f32 %v1569, 0.5
        %v1762 = vadd.f32 %v1570, 0.5
        %v1763 = vadd.f32 %v1571, 0.5
        %v1764 = vadd.f32 %v1572, 0.5
        %v1765 = vadd.f32 %v1573, 0.5
        %v1766 = vadd.f32 %v1574, 0.5
        %v1767 = vadd.f32 %v1575, 0.5
        %v1768 = vadd.f32 %v1576, 0.5
        %v1769 = vadd.f32 %v1577, 0.5
        %v1770 = vadd.f32 %v1578, 0.5
        %v1771 = vadd.f32 %v1579, 0.5
        %v1772 = vadd.f32 %v1580, 0.5
        %v1773 = vadd.f32 %v1581, 0.5
        %v1774 = vadd.f32 %v1582, 0.5
        %v1775 = vadd.f32 %v1583, 0.5
        %v1776 = vadd.f32 %v1584, 0.5
        %v1777 = vadd.f32 %v1585, 0.5
        %v1778 = vadd.f32 %v1586, 0.5
        %v1779 = vadd.f32 %v1587, 0.5
        %v1780 = vadd.f32 %v1588, 0.5
        %v1781 = vadd.f32 %v1589, 0.5
        %v1782 = vadd.f32 %v1590, 0.5
        %v1783 = vadd.f32 %v1591, 0.5
        %v1784 = vadd.f32 %v1592, 0.5
        %v1785 = vadd.f32 %v1593, 0.5
        %v1786 = vadd.f32 %v1594, 0.5
        %v1787 = vadd.f32 %v1595, 0.5
        %v1788 = vadd.f32 %v1596, 0.5
        %v1789 = vadd.f32 %v1597, 0.5
        %v1790 = vadd.f32 %v1598, 0.5
        %v1791 = vadd.f32 %v1599, 0.5
        %v1792 = vadd.f32 %v1600, 0.5
        %v1793 = vadd.f32 %v1601, 0.5
        %v1794 = vadd.f32 %v1602, 0.5
        %v1795 = vadd.f32 %v1603, 0.5
        %v1796 = vadd.f32 %v1604, 0.5
        %v1797 = vadd.f32 %v1605, 0.5
        %v1798 = vadd.f32 %v1606, 0.5
        %v1799 = vadd.f32 %v1607, 0.5
        %v1800 = vadd.f32 %v1608, 0.5
        %v1801 = vadd.f32 %v1609, 0.5
        %v1802 = vadd.f32 %v1610, 0.5
        %v1803 = vadd.f32 %v1611, 0.5
        %v1804 = vadd.f32 %v1612, 0.5
        %v1805 = vadd.f32 %v1613, 0.5
        %v1806 = vadd.f32 %v1614, 0.5
        %v1807 = vadd.f32 %v1615, 0.5
        %v1808 = vadd.f32 %v1616, 0.5
        %v1809 = vadd.f32 %v1617, 0.5
        %v1810 = vadd.f32 %v1618, 0.5
        %v1811 = vadd.f32 %v1619, 0.5
        %v1812 = vadd.f32 %v1620, 0.5
        %v1813 = vadd.f32 %v1621, 0.5
        %v1814 = vadd.f32 %v1622, 0.5
        %v1815 = vadd.f32 %v1623, 0.5
        %v1816 = vadd.f32 %v1624, 0.5
        %v1817 = vadd.f32 %v1625, 0.5
        %v1818 = vadd.f32 %v1626, 0.5
        %v1819 = vadd.f32 %v1627, 0.5
        %v1820 = vadd.f32 %v1628, 0.5
        %v1821 = vadd.f32 %v1629, 0.5
        %v1822 = vadd.f32 %v1630, 0.5
        %v1823 = vadd.f32 %v1631, 0.5
        %v1824 = vadd.f32 %v1632, 0.5
        %v1825 = vadd.f32 %v1633, 0.5
        %v1826 = vadd.f32 %v1634, 0.5
        %v1827 = vadd.f32 %v1635, 0.5
        %v1828 = vadd.f32 %v1636, 0.5
        %v1829 = vadd.f32 %v1637, 0.5
        %v1830 = vadd.f32 %v1638, 0.5
        %v1831 = vadd.f32 %v1639, 0.5
        %v1832 = vadd.f32 %v1640, 0.5
        %v1833 = vadd.f32 %v1641, 0.5
        %v1834 = vadd.f32 %v1642, 0.5
        %v1835 = vadd.f32 %v1643, 0.5
        %v1836 = vadd.f32 %v1644, 0.5
        %v1837 = vadd.f32 %v1645, 0.5
        %v1838 = vadd.f32 %v1646, 0.5
        %v1839 = vadd.f32 %v1647, 0.5
        %v1840 = vadd.f32 %v1648, 0.5
        %v1841 = vadd.f32 %v1649, 0.5
        %v1842 = vadd.f32 %v1650, 0.5
        %v1843 = vadd.f32 %v1651, 0.5
        %v1844 = vadd.f32 %v1652, 0.5
        %v1845 = vadd.f32 %v1653, 0.5
        %v1846 = vadd.f32 %v1654, 0.5
        %v1847 = vadd.f32 %v1655, 0.5
        %v1848 = vadd.f32 %v1656, 0.5
        %v1849 = vadd.f32 %v1657, 0.5
        %v1850 = vadd.f32 %v1658, 0.5
        %v1851 = vadd.f32 %v1659, 0.5
        %v1852 = vadd.f32 %v1660, 0.5
        %v1853 = vadd.f32 %v1661, 0.5
        %v1854 = vadd.f32 %v1662, 0.5
        %v1855 = vadd.f32 %v1663, 0.5
        %v1856 = vadd.f32 %v1664, 0.5
        %v1857 = vadd.f32 %v1665, 0.5
        %v1858 = vadd.f32 %v1666, 0.5
        %v1859 = vadd.f32 %v1667, 0.5
        %v1860 = vadd.f32 %v1668, 0.5
        %v1861 = vadd.f32 %v1669, 0.5
        %v1862 = vadd.f32 %v1670, 0.5
        %v1863 = vadd.f32 %v1671, 0.5
        %v1864 = vadd.f32 %v1672, 0.5
        %v1865 = vadd.f32 %v1673, 0.5
        %v1866 = vadd.f32 %v1674, 0.5
        %v1867 = vadd.f32 %v1675, 0.5
        %v1868 = vadd.f32 %v1676, 0.5
        %v1869 = vadd.f32 %v1677, 0.5
        %v1870 = vadd.f32 %v1678, 0.5
        %v1871 = vadd.f32 %v1679, 0.5
        %v1872 = vadd.f32 %v1680, 0.5
        %v1873 = vadd.f32 %v1681, 0.5
        %v1874 = vadd.f32 %v1682, 0.5
        %v1875 = vadd.f32 %v1683, 0.5
        %v1876 = vadd.f32 %v1684, 0.5
        %v1877 = vadd.f32 %v1685, 0.5
        %v1878 = vadd.f32 %v1686, 0.5
        %v1879 = vadd.f32 %v1687, 0.5
        %v1880 = vadd.f32 %v1688, 0.5
        %v1881 = vadd.f32 %v1689, 0.5
        %v1882 = vadd.f32 %v1690, 0.5
        %v1883 = vadd.f32 %v1691, 0.5
        %v1884 = vadd.f32 %v1692, 0.5
        %v1885 = vadd.f32 %v1693, 0.5
        %v1886 = vadd.f32 %v1694, 0.5
        %v1887 = vadd.f32 %v1695, 0.5
        %v1888 = vadd.f32 %v1696, 0.5
        %v1889 = vadd.f32 %v1697, 0.5
        %v1890 = vadd.f32 %v1698, 0.5
        %v1891 = vadd.f32 %v1699, 0.5
        %v1892 = vadd.f32 %v1700, 0.5
        %v1893 = vadd.f32 %v1701, 0.5
        %v1894 = vadd.f32 %v1702, 0.5
        %v1895 = vadd.f32 %v1703, 0.5
        %v1896 = vadd.f32 %v1704, 0.5
        %v1897 = vadd.f32 %v1705, 0.5
        %v1898 = vadd.f32 %v1706, 0.5
        %v1899 = vadd.f32 %v1707, 0.5
        %v1900 = vadd.f32 %v1708, 0.5
        %v1901 = vadd.f32 %v1709, 0.5
        %v1902 = vadd.f32 %v1710, 0.5
        %v1903 = vadd.f32 %v1711, 0.5
        %v1904 = vadd.f32 %v1712, 0.5
        %v1905 = vadd.f32 %v1713, 0.5
        %v1906 = vadd.f32 %v1714, 0.5
        %v1907 = vadd.f32 %v1715, 0.5
        %v1908 = vadd.f32 %v1716, 0.5
        %v1909 = vadd.f32 %v1717, 0.5
        %v1910 = vadd.f32 %v1718, 0.5
        %v1911 = vadd.f32 %v1719, 0.5
        %v1912 = vfloor.f32 %v1720
        %v1913 = vfloor.f32 %v1721
        %v1914 = vfloor.f32 %v1722
        %v1915 = vfloor.f32 %v1723
        %v1916 = vfloor.f32 %v1724
        %v1917 = vfloor.f32 %v1725
        %v1918 = vfloor.f32 %v1726
        %v1919 = vfloor.f32 %v1727
        %v1920 = vfloor.f32 %v1728
        %v1921 = vfloor.f32 %v1729
        %v1922 = vfloor.f32 %v1730
        %v1923 = vfloor.f32 %v1731
        %v1924 = vfloor.f32 %v1732
        %v1925 = vfloor.f32 %v1733
        %v1926 = vfloor.f32 %v1734
        %v1927 = vfloor.f32 %v1735
        %v1928 = vfloor.f32 %v1736
        %v1929 = vfloor.f32 %v1737
        %v1930 = vfloor.f32 %v1738
        %v1931 = vfloor.f32 %v1739
        %v1932 = vfloor.f32 %v1740
        %v1933 = vfloor.f32 %v1741
        %v1934 = vfloor.f32 %v1742
        %v1935 = vfloor.f32 %v1743
        %v1936 = vfloor.f32 %v1744
        %v1937 = vfloor.f32 %v1745
        %v1938 = vfloor.f32 %v1746
        %v1939 = vfloor.f32 %v1747
        %v1940 = vfloor.f32 %v1748
        %v1941 = vfloor.f32 %v1749
        %v1942 = vfloor.f32 %v1750
        %v1943 = vfloor.f32 %v1751
        %v1944 = vfloor.f32 %v1752
        %v1945 = vfloor.f32 %v1753
        %v1946 = vfloor.f32 %v1754
        %v1947 = vfloor.f32 %v1755
        %v1948 = vfloor.f32 %v1756
        %v1949 = vfloor.f32 %v1757
        %v1950 = vfloor.f32 %v1758
        %v1951 = vfloor.f32 %v1759
        %v1952 = vfloor.f32 %v1760
        %v1953 = vfloor.f32 %v1761
        %v1954 = vfloor.f32 %v1762
        %v1955 = vfloor.f32 %v1763
        %v1956 = vfloor.f32 %v1764
        %v1957 = vfloor.f32 %v1765
        %v1958 = vfloor.f32 %v1766
        %v1959 = vfloor.f32 %v1767
        %v1960 = vfloor.f32 %v1768
        %v1961 = vfloor.f32 %v1769
        %v1962 = vfloor.f32 %v1770
        %v1963 = vfloor.f32 %v1771
        %v1964 = vfloor.f32 %v1772
        %v1965 = vfloor.f32 %v1773
        %v1966 = vfloor.f32 %v1774
        %v1967 = vfloor.f32 %v1775
        %v1968 = vfloor.f32 %v1776
        %v1969 = vfloor.f32 %v1777
        %v1970 = vfloor.f32 %v1778
        %v1971 = vfloor.f32 %v1779
        %v1972 = vfloor.f32 %v1780
        %v1973 = vfloor.f32 %v1781
        %v1974 = vfloor.f32 %v1782
        %v1975 = vfloor.f32 %v1783
        %v1976 = vfloor.f32 %v1784
        %v1977 = vfloor.f32 %v1785
        %v1978 = vfloor.f32 %v1786
        %v1979 = vfloor.f32 %v1787
        %v1980 = vfloor.f32 %v1788
        %v1981 = vfloor.f32 %v1789
        %v1982 = vfloor.f32 %v1790
        %v1983 = vfloor.f32 %v1791
        %v1984 = vfloor.f32 %v1792
        %v1985 = vfloor.f32 %v1793
        %v1986 = vfloor.f32 %v1794
        %v1987 = vfloor.f32 %v1795
        %v1988 = vfloor.f32 %v1796
        %v1989 = vfloor.f32 %v1797
        %v1990 = vfloor.f32 %v1798
        %v1991 = vfloor.f32 %v1799
        %v1992 = vfloor.f32 %v1800
        %v1993 = vfloor.f32 %v1801
        %v1994 = vfloor.f32 %v1802
        %v1995 = vfloor.f32 %v1803
        %v1996 = vfloor.f32 %v1804
        %v1997 = vfloor.f32 %v1805
        %v1998 = vfloor.f32 %v1806
        %v1999 = vfloor.f32 %v1807
        %v2000 = vfloor.f32 %v1808
        %v2001 = vfloor.f32 %v1809
        %v2002 = vfloor.f32 %v1810
        %v2003 = vfloor.f32 %v1811
        %v2004 = vfloor.f32 %v1812
        %v2005 = vfloor.f32 %v1813
        %v2006 = vfloor.f32 %v1814
        %v2007 = vfloor.f32 %v1815
        %v2008 = vfloor.f32 %v1816
        %v2009 = vfloor.f32 %v1817
        %v2010 = vfloor.f32 %v1818
        %v2011 = vfloor.f32 %v1819
        %v2012 = vfloor.f32 %v1820
        %v2013 = vfloor.f32 %v1821
        %v2014 = vfloor.f32 %v1822
        %v2015 = vfloor.f32 %v1823
        %v2016 = vfloor.f32 %v1824
        %v2017 = vfloor.f32 %v1825
        %v2018 = vfloor.f32 %v1826
        %v2019 = vfloor.f32 %v1827
        %v2020 = vfloor.f32 %v1828
        %v2021 = vfloor.f32 %v1829
        %v2022 = vfloor.f32 %v1830
        %v2023 = vfloor.f32 %v1831
        %v2024 = vfloor.f32 %v1832
        %v2025 = vfloor.f32 %v1833
        %v2026 = vfloor.f32 %v1834
        %v2027 = vfloor.f32 %v1835
        %v2028 = vfloor.f32 %v1836
        %v2029 = vfloor.f32 %v1837
        %v2030 = vfloor.f32 %v1838
        %v2031 = vfloor.f32 %v1839
        %v2032 = vfloor.f32 %v1840
        %v2033 = vfloor.f32 %v1841
        %v2034 = vfloor.f32 %v1842
        %v2035 = vfloor.f32 %v1843
        %v2036 = vfloor.f32 %v1844
        %v2037 = vfloor.f32 %v1845
        %v2038 = vfloor.f32 %v1846
        %v2039 = vfloor.f32 %v1847
        %v2040 = vfloor.f32 %v1848
        %v2041 = vfloor.f32 %v1849
        %v2042 = vfloor.f32 %v1850
        %v2043 = vfloor.f32 %v1851
        %v2044 = vfloor.f32 %v1852
        %v2045 = vfloor.f32 %v1853
        %v2046 = vfloor.f32 %v1854
        %v2047 = vfloor.f32 %v1855
        %v2048 = vfloor.f32 %v1856
        %v2049 = vfloor.f32 %v1857
        %v2050 = vfloor.f32 %v1858
        %v2051 = vfloor.f32 %v1859
        %v2052 = vfloor.f32 %v1860
        %v2053 = vfloor.f32 %v1861
        %v2054 = vfloor.f32 %v1862
        %v2055 = vfloor.f32 %v1863
        %v2056 = vfloor.f32 %v1864
        %v2057 = vfloor.f32 %v1865
        %v2058 = vfloor.f32 %v1866
        %v2059 = vfloor.f32 %v1867
        %v2060 = vfloor.f32 %v1868
        %v2061 = vfloor.f32 %v1869
        %v2062 = vfloor.f32 %v1870
        %v2063 = vfloor.f32 %v1871
        %v2064 = vfloor.f32 %v1872
        %v2065 = vfloor.f32 %v1873
        %v2066 = vfloor.f32 %v1874
        %v2067 = vfloor.f32 %v1875
        %v2068 = vfloor.f32 %v1876
        %v2069 = vfloor.f32 %v1877
        %v2070 = vfloor.f32 %v1878
        %v2071 = vfloor.f32 %v1879
        %v2072 = vfloor.f32 %v1880
        %v2073 = vfloor.f32 %v1881
        %v2074 = vfloor.f32 %v1882
        %v2075 = vfloor.f32 %v1883
        %v2076 = vfloor.f32 %v1884
        %v2077 = vfloor.f32 %v1885
        %v2078 = vfloor.f32 %v1886
        %v2079 = vfloor.f32 %v1887
        %v2080 = vfloor.f32 %v1888
        %v2081 = vfloor.f32 %v1889
        %v2082 = vfloor.f32 %v1890
        %v2083 = vfloor.f32 %v1891
        %v2084 = vfloor.f32 %v1892
        %v2085 = vfloor.f32 %v1893
        %v2086 = vfloor.f32 %v1894
        %v2087 = vfloor.f32 %v1895
        %v2088 = vfloor.f32 %v1896
        %v2089 = vfloor.f32 %v1897
        %v2090 = vfloor.f32 %v1898
        %v2091 = vfloor.f32 %v1899
        %v2092 = vfloor.f32 %v1900
        %v2093 = vfloor.f32 %v1901
        %v2094 = vfloor.f32 %v1902
        %v2095 = vfloor.f32 %v1903
        %v2096 = vfloor.f32 %v1904
        %v2097 = vfloor.f32 %v1905
        %v2098 = vfloor.f32 %v1906
        %v2099 = vfloor.f32 %v1907
        %v2100 = vfloor.f32 %v1908
        %v2101 = vfloor.f32 %v1909
        %v2102 = vfloor.f32 %v1910
        %v2103 = vfloor.f32 %v1911
        %v2104 = vmul.f32 %v1912, 6.2831855
        %v2105 = vmul.f32 %v1913, 6.2831855
        %v2106 = vmul.f32 %v1914, 6.2831855
        %v2107 = vmul.f32 %v1915, 6.2831855
        %v2108 = vmul.f32 %v1916, 6.2831855
        %v2109 = vmul.f32 %v1917, 6.2831855
        %v2110 = vmul.f32 %v1918, 6.2831855
        %v2111 = vmul.f32 %v1919, 6.2831855
        %v2112 = vmul.f32 %v1920, 6.2831855
        %v2113 = vmul.f32 %v1921, 6.2831855
        %v2114 = vmul.f32 %v1922, 6.2831855
        %v2115 = vmul.f32 %v1923, 6.2831855
        %v2116 = vmul.f32 %v1924, 6.2831855
        %v2117 = vmul.f32 %v1925, 6.2831855
        %v2118 = vmul.f32 %v1926, 6.2831855
        %v2119 = vmul.f32 %v1927, 6.2831855
        %v2120 = vmul.f32 %v1928, 6.2831855
        %v2121 = vmul.f32 %v1929, 6.2831855
        %v2122 = vmul.f32 %v1930, 6.2831855
        %v2123 = vmul.f32 %v1931, 6.2831855
        %v2124 = vmul.f32 %v1932, 6.2831855
        %v2125 = vmul.f32 %v1933, 6.2831855
        %v2126 = vmul.f32 %v1934, 6.2831855
        %v2127 = vmul.f32 %v1935, 6.2831855
        %v2128 = vmul.f32 %v1936, 6.2831855
        %v2129 = vmul.f32 %v1937, 6.2831855
        %v2130 = vmul.f32 %v1938, 6.2831855
        %v2131 = vmul.f32 %v1939, 6.2831855
        %v2132 = vmul.f32 %v1940, 6.2831855
        %v2133 = vmul.f32 %v1941, 6.2831855
        %v2134 = vmul.f32 %v1942, 6.2831855
        %v2135 = vmul.f32 %v1943, 6.2831855
        %v2136 = vmul.f32 %v1944, 6.2831855
        %v2137 = vmul.f32 %v1945, 6.2831855
        %v2138 = vmul.f32 %v1946, 6.2831855
        %v2139 = vmul.f32 %v1947, 6.2831855
        %v2140 = vmul.f32 %v1948, 6.2831855
        %v2141 = vmul.f32 %v1949, 6.2831855
        %v2142 = vmul.f32 %v1950, 6.2831855
        %v2143 = vmul.f32 %v1951, 6.2831855
        %v2144 = vmul.f32 %v1952, 6.2831855
        %v2145 = vmul.f32 %v1953, 6.2831855
        %v2146 = vmul.f32 %v1954, 6.2831855
        %v2147 = vmul.f32 %v1955, 6.2831855
        %v2148 = vmul.f32 %v1956, 6.2831855
        %v2149 = vmul.f32 %v1957, 6.2831855
        %v2150 = vmul.f32 %v1958, 6.2831855
        %v2151 = vmul.f32 %v1959, 6.2831855
        %v2152 = vmul.f32 %v1960, 6.2831855
        %v2153 = vmul.f32 %v1961, 6.2831855
        %v2154 = vmul.f32 %v1962, 6.2831855
        %v2155 = vmul.f32 %v1963, 6.2831855
        %v2156 = vmul.f32 %v1964, 6.2831855
        %v2157 = vmul.f32 %v1965, 6.2831855
        %v2158 = vmul.f32 %v1966, 6.2831855
        %v2159 = vmul.f32 %v1967, 6.2831855
        %v2160 = vmul.f32 %v1968, 6.2831855
        %v2161 = vmul.f32 %v1969, 6.2831855
        %v2162 = vmul.f32 %v1970, 6.2831855
        %v2163 = vmul.f32 %v1971, 6.2831855
        %v2164 = vmul.f32 %v1972, 6.2831855
        %v2165 = vmul.f32 %v1973, 6.2831855
        %v2166 = vmul.f32 %v1974, 6.2831855
        %v2167 = vmul.f32 %v1975, 6.2831855
        %v2168 = vmul.f32 %v1976, 6.2831855
        %v2169 = vmul.f32 %v1977, 6.2831855
        %v2170 = vmul.f32 %v1978, 6.2831855
        %v2171 = vmul.f32 %v1979, 6.2831855
        %v2172 = vmul.f32 %v1980, 6.2831855
        %v2173 = vmul.f32 %v1981, 6.2831855
        %v2174 = vmul.f32 %v1982, 6.2831855
        %v2175 = vmul.f32 %v1983, 6.2831855
        %v2176 = vmul.f32 %v1984, 6.2831855
        %v2177 = vmul.f32 %v1985, 6.2831855
        %v2178 = vmul.f32 %v1986, 6.2831855
        %v2179 = vmul.f32 %v1987, 6.2831855
        %v2180 = vmul.f32 %v1988, 6.2831855
        %v2181 = vmul.f32 %v1989, 6.2831855
        %v2182 = vmul.f32 %v1990, 6.2831855
        %v2183 = vmul.f32 %v1991, 6.2831855
        %v2184 = vmul.f32 %v1992, 6.2831855
        %v2185 = vmul.f32 %v1993, 6.2831855
        %v2186 = vmul.f32 %v1994, 6.2831855
        %v2187 = vmul.f32 %v1995, 6.2831855
        %v2188 = vmul.f32 %v1996, 6.2831855
        %v2189 = vmul.f32 %v1997, 6.2831855
        %v2190 = vmul.f32 %v1998, 6.2831855
        %v2191 = vmul.f32 %v1999, 6.2831855
        %v2192 = vmul.f32 %v2000, 6.2831855
        %v2193 = vmul.f32 %v2001, 6.2831855
        %v2194 = vmul.f32 %v2002, 6.2831855
        %v2195 = vmul.f32 %v2003, 6.2831855
        %v2196 = vmul.f32 %v2004, 6.2831855
        %v2197 = vmul.f32 %v2005, 6.2831855
        %v2198 = vmul.f32 %v2006, 6.2831855
        %v2199 = vmul.f32 %v2007, 6.2831855
        %v2200 = vmul.f32 %v2008, 6.2831855
        %v2201 = vmul.f32 %v2009, 6.2831855
        %v2202 = vmul.f32 %v2010, 6.2831855
        %v2203 = vmul.f32 %v2011, 6.2831855
        %v2204 = vmul.f32 %v2012, 6.2831855
        %v2205 = vmul.f32 %v2013, 6.2831855
        %v2206 = vmul.f32 %v2014, 6.2831855
        %v2207 = vmul.f32 %v2015, 6.2831855
        %v2208 = vmul.f32 %v2016, 6.2831855
        %v2209 = vmul.f32 %v2017, 6.2831855
        %v2210 = vmul.f32 %v2018, 6.2831855
        %v2211 = vmul.f32 %v2019, 6.2831855
        %v2212 = vmul.f32 %v2020, 6.2831855
        %v2213 = vmul.f32 %v2021, 6.2831855
        %v2214 = vmul.f32 %v2022, 6.2831855
        %v2215 = vmul.f32 %v2023, 6.2831855
        %v2216 = vmul.f32 %v2024, 6.2831855
        %v2217 = vmul.f32 %v2025, 6.2831855
        %v2218 = vmul.f32 %v2026, 6.2831855
        %v2219 = vmul.f32 %v2027, 6.2831855
        %v2220 = vmul.f32 %v2028, 6.2831855
        %v2221 = vmul.f32 %v2029, 6.2831855
        %v2222 = vmul.f32 %v2030, 6.2831855
        %v2223 = vmul.f32 %v2031, 6.2831855
        %v2224 = vmul.f32 %v2032, 6.2831855
        %v2225 = vmul.f32 %v2033, 6.2831855
        %v2226 = vmul.f32 %v2034, 6.2831855
        %v2227 = vmul.f32 %v2035, 6.2831855
        %v2228 = vmul.f32 %v2036, 6.2831855
        %v2229 = vmul.f32 %v2037, 6.2831855
        %v2230 = vmul.f32 %v2038, 6.2831855
        %v2231 = vmul.f32 %v2039, 6.2831855
        %v2232 = vmul.f32 %v2040, 6.2831855
        %v2233 = vmul.f32 %v2041, 6.2831855
        %v2234 = vmul.f32 %v2042, 6.2831855
        %v2235 = vmul.f32 %v2043, 6.2831855
        %v2236 = vmul.f32 %v2044, 6.2831855
        %v2237 = vmul.f32 %v2045, 6.2831855
        %v2238 = vmul.f32 %v2046, 6.2831855
        %v2239 = vmul.f32 %v2047, 6.2831855
        %v2240 = vmul.f32 %v2048, 6.2831855
        %v2241 = vmul.f32 %v2049, 6.2831855
        %v2242 = vmul.f32 %v2050, 6.2831855
        %v2243 = vmul.f32 %v2051, 6.2831855
        %v2244 = vmul.f32 %v2052, 6.2831855
        %v2245 = vmul.f32 %v2053, 6.2831855
        %v2246 = vmul.f32 %v2054, 6.2831855
        %v2247 = vmul.f32 %v2055, 6.2831855
        %v2248 = vmul.f32 %v2056, 6.2831855
        %v2249 = vmul.f32 %v2057, 6.2831855
        %v2250 = vmul.f32 %v2058, 6.2831855
        %v2251 = vmul.f32 %v2059, 6.2831855
        %v2252 = vmul.f32 %v2060, 6.2831855
        %v2253 = vmul.f32 %v2061, 6.2831855
        %v2254 = vmul.f32 %v2062, 6.2831855
        %v2255 = vmul.f32 %v2063, 6.2831855
        %v2256 = vmul.f32 %v2064, 6.2831855
        %v2257 = vmul.f32 %v2065, 6.2831855
        %v2258 = vmul.f32 %v2066, 6.2831855
        %v2259 = vmul.f32 %v2067, 6.2831855
        %v2260 = vmul.f32 %v2068, 6.2831855
        %v2261 = vmul.f32 %v2069, 6.2831855
        %v2262 = vmul.f32 %v2070, 6.2831855
        %v2263 = vmul.f32 %v2071, 6.2831855
        %v2264 = vmul.f32 %v2072, 6.2831855
        %v2265 = vmul.f32 %v2073, 6.2831855
        %v2266 = vmul.f32 %v2074, 6.2831855
        %v2267 = vmul.f32 %v2075, 6.2831855
        %v2268 = vmul.f32 %v2076, 6.2831855
        %v2269 = vmul.f32 %v2077, 6.2831855
        %v2270 = vmul.f32 %v2078, 6.2831855
        %v2271 = vmul.f32 %v2079, 6.2831855
        %v2272 = vmul.f32 %v2080, 6.2831855
        %v2273 = vmul.f32 %v2081, 6.2831855
        %v2274 = vmul.f32 %v2082, 6.2831855
        %v2275 = vmul.f32 %v2083, 6.2831855
        %v2276 = vmul.f32 %v2084, 6.2831855
        %v2277 = vmul.f32 %v2085, 6.2831855
        %v2278 = vmul.f32 %v2086, 6.2831855
        %v2279 = vmul.f32 %v2087, 6.2831855
        %v2280 = vmul.f32 %v2088, 6.2831855
        %v2281 = vmul.f32 %v2089, 6.2831855
        %v2282 = vmul.f32 %v2090, 6.2831855
        %v2283 = vmul.f32 %v2091, 6.2831855
        %v2284 = vmul.f32 %v2092, 6.2831855
        %v2285 = vmul.f32 %v2093, 6.2831855
        %v2286 = vmul.f32 %v2094, 6.2831855
        %v2287 = vmul.f32 %v2095, 6.2831855
        %v2288 = vmul.f32 %v2096, 6.2831855
        %v2289 = vmul.f32 %v2097, 6.2831855
        %v2290 = vmul.f32 %v2098, 6.2831855
        %v2291 = vmul.f32 %v2099, 6.2831855
        %v2292 = vmul.f32 %v2100, 6.2831855
        %v2293 = vmul.f32 %v2101, 6.2831855
        %v2294 = vmul.f32 %v2102, 6.2831855
        %v2295 = vmul.f32 %v2103, 6.2831855
        %v2296 = vsub.f32 %v1336, %v2104
        %v2297 = vsub.f32 %v1337, %v2105
        %v2298 = vsub.f32 %v1338, %v2106
        %v2299 = vsub.f32 %v1339, %v2107
        %v2300 = vsub.f32 %v1340, %v2108
        %v2301 = vsub.f32 %v1341, %v2109
        %v2302 = vsub.f32 %v1342, %v2110
        %v2303 = vsub.f32 %v1343, %v2111
        %v2304 = vsub.f32 %v1344, %v2112
        %v2305 = vsub.f32 %v1345, %v2113
        %v2306 = vsub.f32 %v1346, %v2114
        %v2307 = vsub.f32 %v1347, %v2115
        %v2308 = vsub.f32 %v1348, %v2116
        %v2309 = vsub.f32 %v1349, %v2117
        %v2310 = vsub.f32 %v1350, %v2118
        %v2311 = vsub.f32 %v1351, %v2119
        %v2312 = vsub.f32 %v1352, %v2120
        %v2313 = vsub.f32 %v1353, %v2121
        %v2314 = vsub.f32 %v1354, %v2122
        %v2315 = vsub.f32 %v1355, %v2123
        %v2316 = vsub.f32 %v1356, %v2124
        %v2317 = vsub.f32 %v1357, %v2125
        %v2318 = vsub.f32 %v1358, %v2126
        %v2319 = vsub.f32 %v1359, %v2127
        %v2320 = vsub.f32 %v1360, %v2128
        %v2321 = vsub.f32 %v1361, %v2129
        %v2322 = vsub.f32 %v1362, %v2130
        %v2323 = vsub.f32 %v1363, %v2131
        %v2324 = vsub.f32 %v1364, %v2132
        %v2325 = vsub.f32 %v1365, %v2133
        %v2326 = vsub.f32 %v1366, %v2134
        %v2327 = vsub.f32 %v1367, %v2135
        %v2328 = vsub.f32 %v1368, %v2136
        %v2329 = vsub.f32 %v1369, %v2137
        %v2330 = vsub.f32 %v1370, %v2138
        %v2331 = vsub.f32 %v1371, %v2139
        %v2332 = vsub.f32 %v1372, %v2140
        %v2333 = vsub.f32 %v1373, %v2141
        %v2334 = vsub.f32 %v1374, %v2142
        %v2335 = vsub.f32 %v1375, %v2143
        %v2336 = vsub.f32 %v1376, %v2144
        %v2337 = vsub.f32 %v1377, %v2145
        %v2338 = vsub.f32 %v1378, %v2146
        %v2339 = vsub.f32 %v1379, %v2147
        %v2340 = vsub.f32 %v1380, %v2148
        %v2341 = vsub.f32 %v1381, %v2149
        %v2342 = vsub.f32 %v1382, %v2150
        %v2343 = vsub.f32 %v1383, %v2151
        %v2344 = vsub.f32 %v1384, %v2152
        %v2345 = vsub.f32 %v1385, %v2153
        %v2346 = vsub.f32 %v1386, %v2154
        %v2347 = vsub.f32 %v1387, %v2155
        %v2348 = vsub.f32 %v1388, %v2156
        %v2349 = vsub.f32 %v1389, %v2157
        %v2350 = vsub.f32 %v1390, %v2158
        %v2351 = vsub.f32 %v1391, %v2159
        %v2352 = vsub.f32 %v1392, %v2160
        %v2353 = vsub.f32 %v1393, %v2161
        %v2354 = vsub.f32 %v1394, %v2162
        %v2355 = vsub.f32 %v1395, %v2163
        %v2356 = vsub.f32 %v1396, %v2164
        %v2357 = vsub.f32 %v1397, %v2165
        %v2358 = vsub.f32 %v1398, %v2166
        %v2359 = vsub.f32 %v1399, %v2167
        %v2360 = vsub.f32 %v1400, %v2168
        %v2361 = vsub.f32 %v1401, %v2169
        %v2362 = vsub.f32 %v1402, %v2170
        %v2363 = vsub.f32 %v1403, %v2171
        %v2364 = vsub.f32 %v1404, %v2172
        %v2365 = vsub.f32 %v1405, %v2173
        %v2366 = vsub.f32 %v1406, %v2174
        %v2367 = vsub.f32 %v1407, %v2175
        %v2368 = vsub.f32 %v1408, %v2176
        %v2369 = vsub.f32 %v1409, %v2177
        %v2370 = vsub.f32 %v1410, %v2178
        %v2371 = vsub.f32 %v1411, %v2179
        %v2372 = vsub.f32 %v1412, %v2180
        %v2373 = vsub.f32 %v1413, %v2181
        %v2374 = vsub.f32 %v1414, %v2182
        %v2375 = vsub.f32 %v1415, %v2183
        %v2376 = vsub.f32 %v1416, %v2184
        %v2377 = vsub.f32 %v1417, %v2185
        %v2378 = vsub.f32 %v1418, %v2186
        %v2379 = vsub.f32 %v1419, %v2187
        %v2380 = vsub.f32 %v1420, %v2188
        %v2381 = vsub.f32 %v1421, %v2189
        %v2382 = vsub.f32 %v1422, %v2190
        %v2383 = vsub.f32 %v1423, %v2191
        %v2384 = vsub.f32 %v1424, %v2192
        %v2385 = vsub.f32 %v1425, %v2193
        %v2386 = vsub.f32 %v1426, %v2194
        %v2387 = vsub.f32 %v1427, %v2195
        %v2388 = vsub.f32 %v1428, %v2196
        %v2389 = vsub.f32 %v1429, %v2197
        %v2390 = vsub.f32 %v1430, %v2198
        %v2391 = vsub.f32 %v1431, %v2199
        %v2392 = vsub.f32 %v1432, %v2200
        %v2393 = vsub.f32 %v1433, %v2201
        %v2394 = vsub.f32 %v1434, %v2202
        %v2395 = vsub.f32 %v1435, %v2203
        %v2396 = vsub.f32 %v1436, %v2204
        %v2397 = vsub.f32 %v1437, %v2205
        %v2398 = vsub.f32 %v1438, %v2206
        %v2399 = vsub.f32 %v1439, %v2207
        %v2400 = vsub.f32 %v1440, %v2208
        %v2401 = vsub.f32 %v1441, %v2209
        %v2402 = vsub.f32 %v1442, %v2210
        %v2403 = vsub.f32 %v1443, %v2211
        %v2404 = vsub.f32 %v1444, %v2212
        %v2405 = vsub.f32 %v1445, %v2213
        %v2406 = vsub.f32 %v1446, %v2214
        %v2407 = vsub.f32 %v1447, %v2215
        %v2408 = vsub.f32 %v1448, %v2216
        %v2409 = vsub.f32 %v1449, %v2217
        %v2410 = vsub.f32 %v1450, %v2218
        %v2411 = vsub.f32 %v1451, %v2219
        %v2412 = vsub.f32 %v1452, %v2220
        %v2413 = vsub.f32 %v1453, %v2221
        %v2414 = vsub.f32 %v1454, %v2222
        %v2415 = vsub.f32 %v1455, %v2223
        %v2416 = vsub.f32 %v1456, %v2224
        %v2417 = vsub.f32 %v1457, %v2225
        %v2418 = vsub.f32 %v1458, %v2226
        %v2419 = vsub.f32 %v1459, %v2227
        %v2420 = vsub.f32 %v1460, %v2228
        %v2421 = vsub.f32 %v1461, %v2229
        %v2422 = vsub.f32 %v1462, %v2230
        %v2423 = vsub.f32 %v1463, %v2231
        %v2424 = vsub.f32 %v1464, %v2232
        %v2425 = vsub.f32 %v1465, %v2233
        %v2426 = vsub.f32 %v1466, %v2234
        %v2427 = vsub.f32 %v1467, %v2235
        %v2428 = vsub.f32 %v1468, %v2236
        %v2429 = vsub.f32 %v1469, %v2237
        %v2430 = vsub.f32 %v1470, %v2238
        %v2431 = vsub.f32 %v1471, %v2239
        %v2432 = vsub.f32 %v1472, %v2240
        %v2433 = vsub.f32 %v1473, %v2241
        %v2434 = vsub.f32 %v1474, %v2242
        %v2435 = vsub.f32 %v1475, %v2243
        %v2436 = vsub.f32 %v1476, %v2244
        %v2437 = vsub.f32 %v1477, %v2245
        %v2438 = vsub.f32 %v1478, %v2246
        %v2439 = vsub.f32 %v1479, %v2247
        %v2440 = vsub.f32 %v1480, %v2248
        %v2441 = vsub.f32 %v1481, %v2249
        %v2442 = vsub.f32 %v1482, %v2250
        %v2443 = vsub.f32 %v1483, %v2251
        %v2444 = vsub.f32 %v1484, %v2252
        %v2445 = vsub.f32 %v1485, %v2253
        %v2446 = vsub.f32 %v1486, %v2254
        %v2447 = vsub.f32 %v1487, %v2255
        %v2448 = vsub.f32 %v1488, %v2256
        %v2449 = vsub.f32 %v1489, %v2257
        %v2450 = vsub.f32 %v1490, %v2258
        %v2451 = vsub.f32 %v1491, %v2259
        %v2452 = vsub.f32 %v1492, %v2260
        %v2453 = vsub.f32 %v1493, %v2261
        %v2454 = vsub.f32 %v1494, %v2262
        %v2455 = vsub.f32 %v1495, %v2263
        %v2456 = vsub.f32 %v1496, %v2264
        %v2457 = vsub.f32 %v1497, %v2265
        %v2458 = vsub.f32 %v1498, %v2266
        %v2459 = vsub.f32 %v1499, %v2267
        %v2460 = vsub.f32 %v1500, %v2268
        %v2461 = vsub.f32 %v1501, %v2269
        %v2462 = vsub.f32 %v1502, %v2270
        %v2463 = vsub.f32 %v1503, %v2271
        %v2464 = vsub.f32 %v1504, %v2272
        %v2465 = vsub.f32 %v1505, %v2273
        %v2466 = vsub.f32 %v1506, %v2274
        %v2467 = vsub.f32 %v1507, %v2275
        %v2468 = vsub.f32 %v1508, %v2276
        %v2469 = vsub.f32 %v1509, %v2277
        %v2470 = vsub.f32 %v1510, %v2278
        %v2471 = vsub.f32 %v1511, %v2279
        %v2472 = vsub.f32 %v1512, %v2280
        %v2473 = vsub.f32 %v1513, %v2281
        %v2474 = vsub.f32 %v1514, %v2282
        %v2475 = vsub.f32 %v1515, %v2283
        %v2476 = vsub.f32 %v1516, %v2284
        %v2477 = vsub.f32 %v1517, %v2285
        %v2478 = vsub.f32 %v1518, %v2286
        %v2479 = vsub.f32 %v1519, %v2287
        %v2480 = vsub.f32 %v1520, %v2288
        %v2481 = vsub.f32 %v1521, %v2289
        %v2482 = vsub.f32 %v1522, %v2290
        %v2483 = vsub.f32 %v1523, %v2291
        %v2484 = vsub.f32 %v1524, %v2292
        %v2485 = vsub.f32 %v1525, %v2293
        %v2486 = vsub.f32 %v1526, %v2294
        %v2487 = vsub.f32 %v1527, %v2295
        %v2488 = vmul.f32 %v2296, %v2296
        %v2489 = vmul.f32 %v2297, %v2297
        %v2490 = vmul.f32 %v2298, %v2298
        %v2491 = vmul.f32 %v2299, %v2299
        %v2492 = vmul.f32 %v2300, %v2300
        %v2493 = vmul.f32 %v2301, %v2301
        %v2494 = vmul.f32 %v2302, %v2302
        %v2495 = vmul.f32 %v2303, %v2303
        %v2496 = vmul.f32 %v2304, %v2304
        %v2497 = vmul.f32 %v2305, %v2305
        %v2498 = vmul.f32 %v2306, %v2306
        %v2499 = vmul.f32 %v2307, %v2307
        %v2500 = vmul.f32 %v2308, %v2308
        %v2501 = vmul.f32 %v2309, %v2309
        %v2502 = vmul.f32 %v2310, %v2310
        %v2503 = vmul.f32 %v2311, %v2311
        %v2504 = vmul.f32 %v2312, %v2312
        %v2505 = vmul.f32 %v2313, %v2313
        %v2506 = vmul.f32 %v2314, %v2314
        %v2507 = vmul.f32 %v2315, %v2315
        %v2508 = vmul.f32 %v2316, %v2316
        %v2509 = vmul.f32 %v2317, %v2317
        %v2510 = vmul.f32 %v2318, %v2318
        %v2511 = vmul.f32 %v2319, %v2319
        %v2512 = vmul.f32 %v2320, %v2320
        %v2513 = vmul.f32 %v2321, %v2321
        %v2514 = vmul.f32 %v2322, %v2322
        %v2515 = vmul.f32 %v2323, %v2323
        %v2516 = vmul.f32 %v2324, %v2324
        %v2517 = vmul.f32 %v2325, %v2325
        %v2518 = vmul.f32 %v2326, %v2326
        %v2519 = vmul.f32 %v2327, %v2327
        %v2520 = vmul.f32 %v2328, %v2328
        %v2521 = vmul.f32 %v2329, %v2329
        %v2522 = vmul.f32 %v2330, %v2330
        %v2523 = vmul.f32 %v2331, %v2331
        %v2524 = vmul.f32 %v2332, %v2332
        %v2525 = vmul.f32 %v2333, %v2333
        %v2526 = vmul.f32 %v2334, %v2334
        %v2527 = vmul.f32 %v2335, %v2335
        %v2528 = vmul.f32 %v2336, %v2336
        %v2529 = vmul.f32 %v2337, %v2337
        %v2530 = vmul.f32 %v2338, %v2338
        %v2531 = vmul.f32 %v2339, %v2339
        %v2532 = vmul.f32 %v2340, %v2340
        %v2533 = vmul.f32 %v2341, %v2341
        %v2534 = vmul.f32 %v2342, %v2342
        %v2535 = vmul.f32 %v2343, %v2343
        %v2536 = vmul.f32 %v2344, %v2344
        %v2537 = vmul.f32 %v2345, %v2345
        %v2538 = vmul.f32 %v2346, %v2346
        %v2539 = vmul.f32 %v2347, %v2347
        %v2540 = vmul.f32 %v2348, %v2348
        %v2541 = vmul.f32 %v2349, %v2349
        %v2542 = vmul.f32 %v2350, %v2350
        %v2543 = vmul.f32 %v2351, %v2351
        %v2544 = vmul.f32 %v2352, %v2352
        %v2545 = vmul.f32 %v2353, %v2353
        %v2546 = vmul.f32 %v2354, %v2354
        %v2547 = vmul.f32 %v2355, %v2355
        %v2548 = vmul.f32 %v2356, %v2356
        %v2549 = vmul.f32 %v2357, %v2357
        %v2550 = vmul.f32 %v2358, %v2358
        %v2551 = vmul.f32 %v2359, %v2359
        %v2552 = vmul.f32 %v2360, %v2360
        %v2553 = vmul.f32 %v2361, %v2361
        %v2554 = vmul.f32 %v2362, %v2362
        %v2555 = vmul.f32 %v2363, %v2363
        %v2556 = vmul.f32 %v2364, %v2364
        %v2557 = vmul.f32 %v2365, %v2365
        %v2558 = vmul.f32 %v2366, %v2366
        %v2559 = vmul.f32 %v2367, %v2367
        %v2560 = vmul.f32 %v2368, %v2368
        %v2561 = vmul.f32 %v2369, %v2369
        %v2562 = vmul.f32 %v2370, %v2370
        %v2563 = vmul.f32 %v2371, %v2371
        %v2564 = vmul.f32 %v2372, %v2372
        %v2565 = vmul.f32 %v2373, %v2373
        %v2566 = vmul.f32 %v2374, %v2374
        %v2567 = vmul.f32 %v2375, %v2375
        %v2568 = vmul.f32 %v2376, %v2376
        %v2569 = vmul.f32 %v2377, %v2377
        %v2570 = vmul.f32 %v2378, %v2378
        %v2571 = vmul.f32 %v2379, %v2379
        %v2572 = vmul.f32 %v2380, %v2380
        %v2573 = vmul.f32 %v2381, %v2381
        %v2574 = vmul.f32 %v2382, %v2382
        %v2575 = vmul.f32 %v2383, %v2383
        %v2576 = vmul.f32 %v2384, %v2384
        %v2577 = vmul.f32 %v2385, %v2385
        %v2578 = vmul.f32 %v2386, %v2386
        %v2579 = vmul.f32 %v2387, %v2387
        %v2580 = vmul.f32 %v2388, %v2388
        %v2581 = vmul.f32 %v2389, %v2389
        %v2582 = vmul.f32 %v2390, %v2390
        %v2583 = vmul.f32 %v2391, %v2391
        %v2584 = vmul.f32 %v2392, %v2392
        %v2585 = vmul.f32 %v2393, %v2393
        %v2586 = vmul.f32 %v2394, %v2394
        %v2587 = vmul.f32 %v2395, %v2395
        %v2588 = vmul.f32 %v2396, %v2396
        %v2589 = vmul.f32 %v2397, %v2397
        %v2590 = vmul.f32 %v2398, %v2398
        %v2591 = vmul.f32 %v2399, %v2399
        %v2592 = vmul.f32 %v2400, %v2400
        %v2593 = vmul.f32 %v2401, %v2401
        %v2594 = vmul.f32 %v2402, %v2402
        %v2595 = vmul.f32 %v2403, %v2403
        %v2596 = vmul.f32 %v2404, %v2404
        %v2597 = vmul.f32 %v2405, %v2405
        %v2598 = vmul.f32 %v2406, %v2406
        %v2599 = vmul.f32 %v2407, %v2407
        %v2600 = vmul.f32 %v2408, %v2408
        %v2601 = vmul.f32 %v2409, %v2409
        %v2602 = vmul.f32 %v2410, %v2410
        %v2603 = vmul.f32 %v2411, %v2411
        %v2604 = vmul.f32 %v2412, %v2412
        %v2605 = vmul.f32 %v2413, %v2413
        %v2606 = vmul.f32 %v2414, %v2414
        %v2607 = vmul.f32 %v2415, %v2415
        %v2608 = vmul.f32 %v2416, %v2416
        %v2609 = vmul.f32 %v2417, %v2417
        %v2610 = vmul.f32 %v2418, %v2418
        %v2611 = vmul.f32 %v2419, %v2419
        %v2612 = vmul.f32 %v2420, %v2420
        %v2613 = vmul.f32 %v2421, %v2421
        %v2614 = vmul.f32 %v2422, %v2422
        %v2615 = vmul.f32 %v2423, %v2423
        %v2616 = vmul.f32 %v2424, %v2424
        %v2617 = vmul.f32 %v2425, %v2425
        %v2618 = vmul.f32 %v2426, %v2426
        %v2619 = vmul.f32 %v2427, %v2427
        %v2620 = vmul.f32 %v2428, %v2428
        %v2621 = vmul.f32 %v2429, %v2429
        %v2622 = vmul.f32 %v2430, %v2430
        %v2623 = vmul.f32 %v2431, %v2431
        %v2624 = vmul.f32 %v2432, %v2432
        %v2625 = vmul.f32 %v2433, %v2433
        %v2626 = vmul.f32 %v2434, %v2434
        %v2627 = vmul.f32 %v2435, %v2435
        %v2628 = vmul.f32 %v2436, %v2436
        %v2629 = vmul.f32 %v2437, %v2437
        %v2630 = vmul.f32 %v2438, %v2438
        %v2631 = vmul.f32 %v2439, %v2439
        %v2632 = vmul.f32 %v2440, %v2440
        %v2633 = vmul.f32 %v2441, %v2441
        %v2634 = vmul.f32 %v2442, %v2442
        %v2635 = vmul.f32 %v2443, %v2443
        %v2636 = vmul.f32 %v2444, %v2444
        %v2637 = vmul.f32 %v2445, %v2445
        %v2638 = vmul.f32 %v2446, %v2446
        %v2639 = vmul.f32 %v2447, %v2447
        %v2640 = vmul.f32 %v2448, %v2448
        %v2641 = vmul.f32 %v2449, %v2449
        %v2642 = vmul.f32 %v2450, %v2450
        %v2643 = vmul.f32 %v2451, %v2451
        %v2644 = vmul.f32 %v2452, %v2452
        %v2645 = vmul.f32 %v2453, %v2453
        %v2646 = vmul.f32 %v2454, %v2454
        %v2647 = vmul.f32 %v2455, %v2455
        %v2648 = vmul.f32 %v2456, %v2456
        %v2649 = vmul.f32 %v2457, %v2457
        %v2650 = vmul.f32 %v2458, %v2458
        %v2651 = vmul.f32 %v2459, %v2459
        %v2652 = vmul.f32 %v2460, %v2460
        %v2653 = vmul.f32 %v2461, %v2461
        %v2654 = vmul.f32 %v2462, %v2462
        %v2655 = vmul.f32 %v2463, %v2463
        %v2656 = vmul.f32 %v2464, %v2464
        %v2657 = vmul.f32 %v2465, %v2465
        %v2658 = vmul.f32 %v2466, %v2466
        %v2659 = vmul.f32 %v2467, %v2467
        %v2660 = vmul.f32 %v2468, %v2468
        %v2661 = vmul.f32 %v2469, %v2469
        %v2662 = vmul.f32 %v2470, %v2470
        %v2663 = vmul.f32 %v2471, %v2471
        %v2664 = vmul.f32 %v2472, %v2472
        %v2665 = vmul.f32 %v2473, %v2473
        %v2666 = vmul.f32 %v2474, %v2474
        %v2667 = vmul.f32 %v2475, %v2475
        %v2668 = vmul.f32 %v2476, %v2476
        %v2669 = vmul.f32 %v2477, %v2477
        %v2670 = vmul.f32 %v2478, %v2478
        %v2671 = vmul.f32 %v2479, %v2479
        %v2672 = vmul.f32 %v2480, %v2480
        %v2673 = vmul.f32 %v2481, %v2481
        %v2674 = vmul.f32 %v2482, %v2482
        %v2675 = vmul.f32 %v2483, %v2483
        %v2676 = vmul.f32 %v2484, %v2484
        %v2677 = vmul.f32 %v2485, %v2485
        %v2678 = vmul.f32 %v2486, %v2486
        %v2679 = vmul.f32 %v2487, %v2487
        %v2680 = vmul.f32 %v2488, 2.1730025e-06
        %v2681 = vmul.f32 %v2489, 2.1730025e-06
        %v2682 = vmul.f32 %v2490, 2.1730025e-06
        %v2683 = vmul.f32 %v2491, 2.1730025e-06
        %v2684 = vmul.f32 %v2492, 2.1730025e-06
        %v2685 = vmul.f32 %v2493, 2.1730025e-06
        %v2686 = vmul.f32 %v2494, 2.1730025e-06
        %v2687 = vmul.f32 %v2495, 2.1730025e-06
        %v2688 = vmul.f32 %v2496, 2.1730025e-06
        %v2689 = vmul.f32 %v2497, 2.1730025e-06
        %v2690 = vmul.f32 %v2498, 2.1730025e-06
        %v2691 = vmul.f32 %v2499, 2.1730025e-06
        %v2692 = vmul.f32 %v2500, 2.1730025e-06
        %v2693 = vmul.f32 %v2501, 2.1730025e-06
        %v2694 = vmul.f32 %v2502, 2.1730025e-06
        %v2695 = vmul.f32 %v2503, 2.1730025e-06
        %v2696 = vmul.f32 %v2504, 2.1730025e-06
        %v2697 = vmul.f32 %v2505, 2.1730025e-06
        %v2698 = vmul.f32 %v2506, 2.1730025e-06
        %v2699 = vmul.f32 %v2507, 2.1730025e-06
        %v2700 = vmul.f32 %v2508, 2.1730025e-06
        %v2701 = vmul.f32 %v2509, 2.1730025e-06
        %v2702 = vmul.f32 %v2510, 2.1730025e-06
        %v2703 = vmul.f32 %v2511, 2.1730025e-06
        %v2704 = vmul.f32 %v2512, 2.1730025e-06
        %v2705 = vmul.f32 %v2513, 2.1730025e-06
        %v2706 = vmul.f32 %v2514, 2.1730025e-06
        %v2707 = vmul.f32 %v2515, 2.1730025e-06
        %v2708 = vmul.f32 %v2516, 2.1730025e-06
        %v2709 = vmul.f32 %v2517, 2.1730025e-06
        %v2710 = vmul.f32 %v2518, 2.1730025e-06
        %v2711 = vmul.f32 %v2519, 2.1730025e-06
        %v2712 = vmul.f32 %v2520, 2.1730025e-06
        %v2713 = vmul.f32 %v2521, 2.1730025e-06
        %v2714 = vmul.f32 %v2522, 2.1730025e-06
        %v2715 = vmul.f32 %v2523, 2.1730025e-06
        %v2716 = vmul.f32 %v2524, 2.1730025e-06
        %v2717 = vmul.f32 %v2525, 2.1730025e-06
        %v2718 = vmul.f32 %v2526, 2.1730025e-06
        %v2719 = vmul.f32 %v2527, 2.1730025e-06
        %v2720 = vmul.f32 %v2528, 2.1730025e-06
        %v2721 = vmul.f32 %v2529, 2.1730025e-06
        %v2722 = vmul.f32 %v2530, 2.1730025e-06
        %v2723 = vmul.f32 %v2531, 2.1730025e-06
        %v2724 = vmul.f32 %v2532, 2.1730025e-06
        %v2725 = vmul.f32 %v2533, 2.1730025e-06
        %v2726 = vmul.f32 %v2534, 2.1730025e-06
        %v2727 = vmul.f32 %v2535, 2.1730025e-06
        %v2728 = vmul.f32 %v2536, 2.1730025e-06
        %v2729 = vmul.f32 %v2537, 2.1730025e-06
        %v2730 = vmul.f32 %v2538, 2.1730025e-06
        %v2731 = vmul.f32 %v2539, 2.1730025e-06
        %v2732 = vmul.f32 %v2540, 2.1730025e-06
        %v2733 = vmul.f32 %v2541, 2.1730025e-06
        %v2734 = vmul.f32 %v2542, 2.1730025e-06
        %v2735 = vmul.f32 %v2543, 2.1730025e-06
        %v2736 = vmul.f32 %v2544, 2.1730025e-06
        %v2737 = vmul.f32 %v2545, 2.1730025e-06
        %v2738 = vmul.f32 %v2546, 2.1730025e-06
        %v2739 = vmul.f32 %v2547, 2.1730025e-06
        %v2740 = vmul.f32 %v2548, 2.1730025e-06
        %v2741 = vmul.f32 %v2549, 2.1730025e-06
        %v2742 = vmul.f32 %v2550, 2.1730025e-06
        %v2743 = vmul.f32 %v2551, 2.1730025e-06
        %v2744 = vmul.f32 %v2552, 2.1730025e-06
        %v2745 = vmul.f32 %v2553, 2.1730025e-06
        %v2746 = vmul.f32 %v2554, 2.1730025e-06
        %v2747 = vmul.f32 %v2555, 2.1730025e-06
        %v2748 = vmul.f32 %v2556, 2.1730025e-06
        %v2749 = vmul.f32 %v2557, 2.1730025e-06
        %v2750 = vmul.f32 %v2558, 2.1730025e-06
        %v2751 = vmul.f32 %v2559, 2.1730025e-06
        %v2752 = vmul.f32 %v2560, 2.1730025e-06
        %v2753 = vmul.f32 %v2561, 2.1730025e-06
        %v2754 = vmul.f32 %v2562, 2.1730025e-06
        %v2755 = vmul.f32 %v2563, 2.1730025e-06
        %v2756 = vmul.f32 %v2564, 2.1730025e-06
        %v2757 = vmul.f32 %v2565, 2.1730025e-06
        %v2758 = vmul.f32 %v2566, 2.1730025e-06
        %v2759 = vmul.f32 %v2567, 2.1730025e-06
        %v2760 = vmul.f32 %v2568, 2.1730025e-06
        %v2761 = vmul.f32 %v2569, 2.1730025e-06
        %v2762 = vmul.f32 %v2570, 2.1730025e-06
        %v2763 = vmul.f32 %v2571, 2.1730025e-06
        %v2764 = vmul.f32 %v2572, 2.1730025e-06
        %v2765 = vmul.f32 %v2573, 2.1730025e-06
        %v2766 = vmul.f32 %v2574, 2.1730025e-06
        %v2767 = vmul.f32 %v2575, 2.1730025e-06
        %v2768 = vmul.f32 %v2576, 2.1730025e-06
        %v2769 = vmul.f32 %v2577, 2.1730025e-06
        %v2770 = vmul.f32 %v2578, 2.1730025e-06
        %v2771 = vmul.f32 %v2579, 2.1730025e-06
        %v2772 = vmul.f32 %v2580, 2.1730025e-06
        %v2773 = vmul.f32 %v2581, 2.1730025e-06
        %v2774 = vmul.f32 %v2582, 2.1730025e-06
        %v2775 = vmul.f32 %v2583, 2.1730025e-06
        %v2776 = vmul.f32 %v2584, 2.1730025e-06
        %v2777 = vmul.f32 %v2585, 2.1730025e-06
        %v2778 = vmul.f32 %v2586, 2.1730025e-06
        %v2779 = vmul.f32 %v2587, 2.1730025e-06
        %v2780 = vmul.f32 %v2588, 2.1730025e-06
        %v2781 = vmul.f32 %v2589, 2.1730025e-06
        %v2782 = vmul.f32 %v2590, 2.1730025e-06
        %v2783 = vmul.f32 %v2591, 2.1730025e-06
        %v2784 = vmul.f32 %v2592, 2.1730025e-06
        %v2785 = vmul.f32 %v2593, 2.1730025e-06
        %v2786 = vmul.f32 %v2594, 2.1730025e-06
        %v2787 = vmul.f32 %v2595, 2.1730025e-06
        %v2788 = vmul.f32 %v2596, 2.1730025e-06
        %v2789 = vmul.f32 %v2597, 2.1730025e-06
        %v2790 = vmul.f32 %v2598, 2.1730025e-06
        %v2791 = vmul.f32 %v2599, 2.1730025e-06
        %v2792 = vmul.f32 %v2600, 2.1730025e-06
        %v2793 = vmul.f32 %v2601, 2.1730025e-06
        %v2794 = vmul.f32 %v2602, 2.1730025e-06
        %v2795 = vmul.f32 %v2603, 2.1730025e-06
        %v2796 = vmul.f32 %v2604, 2.1730025e-06
        %v2797 = vmul.f32 %v2605, 2.1730025e-06
        %v2798 = vmul.f32 %v2606, 2.1730025e-06
        %v2799 = vmul.f32 %v2607, 2.1730025e-06
        %v2800 = vmul.f32 %v2608, 2.1730025e-06
        %v2801 = vmul.f32 %v2609, 2.1730025e-06
        %v2802 = vmul.f32 %v2610, 2.1730025e-06
        %v2803 = vmul.f32 %v2611, 2.1730025e-06
        %v2804 = vmul.f32 %v2612, 2.1730025e-06
        %v2805 = vmul.f32 %v2613, 2.1730025e-06
        %v2806 = vmul.f32 %v2614, 2.1730025e-06
        %v2807 = vmul.f32 %v2615, 2.1730025e-06
        %v2808 = vmul.f32 %v2616, 2.1730025e-06
        %v2809 = vmul.f32 %v2617, 2.1730025e-06
        %v2810 = vmul.f32 %v2618, 2.1730025e-06
        %v2811 = vmul.f32 %v2619, 2.1730025e-06
        %v2812 = vmul.f32 %v2620, 2.1730025e-06
        %v2813 = vmul.f32 %v2621, 2.1730025e-06
        %v2814 = vmul.f32 %v2622, 2.1730025e-06
        %v2815 = vmul.f32 %v2623, 2.1730025e-06
        %v2816 = vmul.f32 %v2624, 2.1730025e-06
        %v2817 = vmul.f32 %v2625, 2.1730025e-06
        %v2818 = vmul.f32 %v2626, 2.1730025e-06
        %v2819 = vmul.f32 %v2627, 2.1730025e-06
        %v2820 = vmul.f32 %v2628, 2.1730025e-06
        %v2821 = vmul.f32 %v2629, 2.1730025e-06
        %v2822 = vmul.f32 %v2630, 2.1730025e-06
        %v2823 = vmul.f32 %v2631, 2.1730025e-06
        %v2824 = vmul.f32 %v2632, 2.1730025e-06
        %v2825 = vmul.f32 %v2633, 2.1730025e-06
        %v2826 = vmul.f32 %v2634, 2.1730025e-06
        %v2827 = vmul.f32 %v2635, 2.1730025e-06
        %v2828 = vmul.f32 %v2636, 2.1730025e-06
        %v2829 = vmul.f32 %v2637, 2.1730025e-06
        %v2830 = vmul.f32 %v2638, 2.1730025e-06
        %v2831 = vmul.f32 %v2639, 2.1730025e-06
        %v2832 = vmul.f32 %v2640, 2.1730025e-06
        %v2833 = vmul.f32 %v2641, 2.1730025e-06
        %v2834 = vmul.f32 %v2642, 2.1730025e-06
        %v2835 = vmul.f32 %v2643, 2.1730025e-06
        %v2836 = vmul.f32 %v2644, 2.1730025e-06
        %v2837 = vmul.f32 %v2645, 2.1730025e-06
        %v2838 = vmul.f32 %v2646, 2.1730025e-06
        %v2839 = vmul.f32 %v2647, 2.1730025e-06
        %v2840 = vmul.f32 %v2648, 2.1730025e-06
        %v2841 = vmul.f32 %v2649, 2.1730025e-06
        %v2842 = vmul.f32 %v2650, 2.1730025e-06
        %v2843 = vmul.f32 %v2651, 2.1730025e-06
        %v2844 = vmul.f32 %v2652, 2.1730025e-06
        %v2845 = vmul.f32 %v2653, 2.1730025e-06
        %v2846 = vmul.f32 %v2654, 2.1730025e-06
        %v2847 = vmul.f32 %v2655, 2.1730025e-06
        %v2848 = vmul.f32 %v2656, 2.1730025e-06
        %v2849 = vmul.f32 %v2657, 2.1730025e-06
        %v2850 = vmul.f32 %v2658, 2.1730025e-06
        %v2851 = vmul.f32 %v2659, 2.1730025e-06
        %v2852 = vmul.f32 %v2660, 2.1730025e-06
        %v2853 = vmul.f32 %v2661, 2.1730025e-06
        %v2854 = vmul.f32 %v2662, 2.1730025e-06
        %v2855 = vmul.f32 %v2663, 2.1730025e-06
        %v2856 = vmul.f32 %v2664, 2.1730025e-06
        %v2857 = vmul.f32 %v2665, 2.1730025e-06
        %v2858 = vmul.f32 %v2666, 2.1730025e-06
        %v2859 = vmul.f32 %v2667, 2.1730025e-06
        %v2860 = vmul.f32 %v2668, 2.1730025e-06
        %v2861 = vmul.f32 %v2669, 2.1730025e-06
        %v2862 = vmul.f32 %v2670, 2.1730025e-06
        %v2863 = vmul.f32 %v2671, 2.1730025e-06
        %v2864 = vmul.f32 %v2672, 2.1730025e-06
        %v2865 = vmul.f32 %v2673, 2.1730025e-06
        %v2866 = vmul.f32 %v2674, 2.1730025e-06
        %v2867 = vmul.f32 %v2675, 2.1730025e-06
        %v2868 = vmul.f32 %v2676, 2.1730025e-06
        %v2869 = vmul.f32 %v2677, 2.1730025e-06
        %v2870 = vmul.f32 %v2678, 2.1730025e-06
        %v2871 = vmul.f32 %v2679, 2.1730025e-06
        %v2872 = vadd.f32 %v2680, -0.00019315795
        %v2873 = vadd.f32 %v2681, -0.00019315795
        %v2874 = vadd.f32 %v2682, -0.00019315795
        %v2875 = vadd.f32 %v2683, -0.00019315795
        %v2876 = vadd.f32 %v2684, -0.00019315795
        %v2877 = vadd.f32 %v2685, -0.00019315795
        %v2878 = vadd.f32 %v2686, -0.00019315795
        %v2879 = vadd.f32 %v2687, -0.00019315795
        %v2880 = vadd.f32 %v2688, -0.00019315795
        %v2881 = vadd.f32 %v2689, -0.00019315795
        %v2882 = vadd.f32 %v2690, -0.00019315795
        %v2883 = vadd.f32 %v2691, -0.00019315795
        %v2884 = vadd.f32 %v2692, -0.00019315795
        %v2885 = vadd.f32 %v2693, -0.00019315795
        %v2886 = vadd.f32 %v2694, -0.00019315795
        %v2887 = vadd.f32 %v2695, -0.00019315795
        %v2888 = vadd.f32 %v2696, -0.00019315795
        %v2889 = vadd.f32 %v2697, -0.00019315795
        %v2890 = vadd.f32 %v2698, -0.00019315795
        %v2891 = vadd.f32 %v2699, -0.00019315795
        %v2892 = vadd.f32 %v2700, -0.00019315795
        %v2893 = vadd.f32 %v2701, -0.00019315795
        %v2894 = vadd.f32 %v2702, -0.00019315795
        %v2895 = vadd.f32 %v2703, -0.00019315795
        %v2896 = vadd.f32 %v2704, -0.00019315795
        %v2897 = vadd.f32 %v2705, -0.00019315795
        %v2898 = vadd.f32 %v2706, -0.00019315795
        %v2899 = vadd.f32 %v2707, -0.00019315795
        %v2900 = vadd.f32 %v2708, -0.00019315795
        %v2901 = vadd.f32 %v2709, -0.00019315795
        %v2902 = vadd.f32 %v2710, -0.00019315795
        %v2903 = vadd.f32 %v2711, -0.00019315795
        %v2904 = vadd.f32 %v2712, -0.00019315795
        %v2905 = vadd.f32 %v2713, -0.00019315795
        %v2906 = vadd.f32 %v2714, -0.00019315795
        %v2907 = vadd.f32 %v2715, -0.00019315795
        %v2908 = vadd.f32 %v2716, -0.00019315795
        %v2909 = vadd.f32 %v2717, -0.00019315795
        %v2910 = vadd.f32 %v2718, -0.00019315795
        %v2911 = vadd.f32 %v2719, -0.00019315795
        %v2912 = vadd.f32 %v2720, -0.00019315795
        %v2913 = vadd.f32 %v2721, -0.00019315795
        %v2914 = vadd.f32 %v2722, -0.00019315795
        %v2915 = vadd.f32 %v2723, -0.00019315795
        %v2916 = vadd.f32 %v2724, -0.00019315795
        %v2917 = vadd.f32 %v2725, -0.00019315795
        %v2918 = vadd.f32 %v2726, -0.00019315795
        %v2919 = vadd.f32 %v2727, -0.00019315795
        %v2920 = vadd.f32 %v2728, -0.00019315795
        %v2921 = vadd.f32 %v2729, -0.00019315795
        %v2922 = vadd.f32 %v2730, -0.00019315795
        %v2923 = vadd.f32 %v2731, -0.00019315795
        %v2924 = vadd.f32 %v2732, -0.00019315795
        %v2925 = vadd.f32 %v2733, -0.00019315795
        %v2926 = vadd.f32 %v2734, -0.00019315795
        %v2927 = vadd.f32 %v2735, -0.00019315795
        %v2928 = vadd.f32 %v2736, -0.00019315795
        %v2929 = vadd.f32 %v2737, -0.00019315795
        %v2930 = vadd.f32 %v2738, -0.00019315795
        %v2931 = vadd.f32 %v2739, -0.00019315795
        %v2932 = vadd.f32 %v2740, -0.00019315795
        %v2933 = vadd.f32 %v2741, -0.00019315795
        %v2934 = vadd.f32 %v2742, -0.00019315795
        %v2935 = vadd.f32 %v2743, -0.00019315795
        %v2936 = vadd.f32 %v2744, -0.00019315795
        %v2937 = vadd.f32 %v2745, -0.00019315795
        %v2938 = vadd.f32 %v2746, -0.00019315795
        %v2939 = vadd.f32 %v2747, -0.00019315795
        %v2940 = vadd.f32 %v2748, -0.00019315795
        %v2941 = vadd.f32 %v2749, -0.00019315795
        %v2942 = vadd.f32 %v2750, -0.00019315795
        %v2943 = vadd.f32 %v2751, -0.00019315795
        %v2944 = vadd.f32 %v2752, -0.00019315795
        %v2945 = vadd.f32 %v2753, -0.00019315795
        %v2946 = vadd.f32 %v2754, -0.00019315795
        %v2947 = vadd.f32 %v2755, -0.00019315795
        %v2948 = vadd.f32 %v2756, -0.00019315795
        %v2949 = vadd.f32 %v2757, -0.00019315795
        %v2950 = vadd.f32 %v2758, -0.00019315795
        %v2951 = vadd.f32 %v2759, -0.00019315795
        %v2952 = vadd.f32 %v2760, -0.00019315795
        %v2953 = vadd.f32 %v2761, -0.00019315795
        %v2954 = vadd.f32 %v2762, -0.00019315795
        %v2955 = vadd.f32 %v2763, -0.00019315795
        %v2956 = vadd.f32 %v2764, -0.00019315795
        %v2957 = vadd.f32 %v2765, -0.00019315795
        %v2958 = vadd.f32 %v2766, -0.00019315795
        %v2959 = vadd.f32 %v2767, -0.00019315795
        %v2960 = vadd.f32 %v2768, -0.00019315795
        %v2961 = vadd.f32 %v2769, -0.00019315795
        %v2962 = vadd.f32 %v2770, -0.00019315795
        %v2963 = vadd.f32 %v2771, -0.00019315795
        %v2964 = vadd.f32 %v2772, -0.00019315795
        %v2965 = vadd.f32 %v2773, -0.00019315795
        %v2966 = vadd.f32 %v2774, -0.00019315795
        %v2967 = vadd.f32 %v2775, -0.00019315795
        %v2968 = vadd.f32 %v2776, -0.00019315795
        %v2969 = vadd.f32 %v2777, -0.00019315795
        %v2970 = vadd.f32 %v2778, -0.00019315795
        %v2971 = vadd.f32 %v2779, -0.00019315795
        %v2972 = vadd.f32 %v2780, -0.00019315795
        %v2973 = vadd.f32 %v2781, -0.00019315795
        %v2974 = vadd.f32 %v2782, -0.00019315795
        %v2975 = vadd.f32 %v2783, -0.00019315795
        %v2976 = vadd.f32 %v2784, -0.00019315795
        %v2977 = vadd.f32 %v2785, -0.00019315795
        %v2978 = vadd.f32 %v2786, -0.00019315795
        %v2979 = vadd.f32 %v2787, -0.00019315795
        %v2980 = vadd.f32 %v2788, -0.00019315795
        %v2981 = vadd.f32 %v2789, -0.00019315795
        %v2982 = vadd.f32 %v2790, -0.00019315795
        %v2983 = vadd.f32 %v2791, -0.00019315795
        %v2984 = vadd.f32 %v2792, -0.00019315795
        %v2985 = vadd.f32 %v2793, -0.00019315795
        %v2986 = vadd.f32 %v2794, -0.00019315795
        %v2987 = vadd.f32 %v2795, -0.00019315795
        %v2988 = vadd.f32 %v2796, -0.00019315795
        %v2989 = vadd.f32 %v2797, -0.00019315795
        %v2990 = vadd.f32 %v2798, -0.00019315795
        %v2991 = vadd.f32 %v2799, -0.00019315795
        %v2992 = vadd.f32 %v2800, -0.00019315795
        %v2993 = vadd.f32 %v2801, -0.00019315795
        %v2994 = vadd.f32 %v2802, -0.00019315795
        %v2995 = vadd.f32 %v2803, -0.00019315795
        %v2996 = vadd.f32 %v2804, -0.00019315795
        %v2997 = vadd.f32 %v2805, -0.00019315795
        %v2998 = vadd.f32 %v2806, -0.00019315795
        %v2999 = vadd.f32 %v2807, -0.00019315795
        %v3000 = vadd.f32 %v2808, -0.00019315795
        %v3001 = vadd.f32 %v2809, -0.00019315795
        %v3002 = vadd.f32 %v2810, -0.00019315795
        %v3003 = vadd.f32 %v2811, -0.00019315795
        %v3004 = vadd.f32 %v2812, -0.00019315795
        %v3005 = vadd.f32 %v2813, -0.00019315795
        %v3006 = vadd.f32 %v2814, -0.00019315795
        %v3007 = vadd.f32 %v2815, -0.00019315795
        %v3008 = vadd.f32 %v2816, -0.00019315795
        %v3009 = vadd.f32 %v2817, -0.00019315795
        %v3010 = vadd.f32 %v2818, -0.00019315795
        %v3011 = vadd.f32 %v2819, -0.00019315795
        %v3012 = vadd.f32 %v2820, -0.00019315795
        %v3013 = vadd.f32 %v2821, -0.00019315795
        %v3014 = vadd.f32 %v2822, -0.00019315795
        %v3015 = vadd.f32 %v2823, -0.00019315795
        %v3016 = vadd.f32 %v2824, -0.00019315795
        %v3017 = vadd.f32 %v2825, -0.00019315795
        %v3018 = vadd.f32 %v2826, -0.00019315795
        %v3019 = vadd.f32 %v2827, -0.00019315795
        %v3020 = vadd.f32 %v2828, -0.00019315795
        %v3021 = vadd.f32 %v2829, -0.00019315795
        %v3022 = vadd.f32 %v2830, -0.00019315795
        %v3023 = vadd.f32 %v2831, -0.00019315795
        %v3024 = vadd.f32 %v2832, -0.00019315795
        %v3025 = vadd.f32 %v2833, -0.00019315795
        %v3026 = vadd.f32 %v2834, -0.00019315795
        %v3027 = vadd.f32 %v2835, -0.00019315795
        %v3028 = vadd.f32 %v2836, -0.00019315795
        %v3029 = vadd.f32 %v2837, -0.00019315795
        %v3030 = vadd.f32 %v2838, -0.00019315795
        %v3031 = vadd.f32 %v2839, -0.00019315795
        %v3032 = vadd.f32 %v2840, -0.00019315795
        %v3033 = vadd.f32 %v2841, -0.00019315795
        %v3034 = vadd.f32 %v2842, -0.00019315795
        %v3035 = vadd.f32 %v2843, -0.00019315795
        %v3036 = vadd.f32 %v2844, -0.00019315795
        %v3037 = vadd.f32 %v2845, -0.00019315795
        %v3038 = vadd.f32 %v2846, -0.00019315795
        %v3039 = vadd.f32 %v2847, -0.00019315795
        %v3040 = vadd.f32 %v2848, -0.00019315795
        %v3041 = vadd.f32 %v2849, -0.00019315795
        %v3042 = vadd.f32 %v2850, -0.00019315795
        %v3043 = vadd.f32 %v2851, -0.00019315795
        %v3044 = vadd.f32 %v2852, -0.00019315795
        %v3045 = vadd.f32 %v2853, -0.00019315795
        %v3046 = vadd.f32 %v2854, -0.00019315795
        %v3047 = vadd.f32 %v2855, -0.00019315795
        %v3048 = vadd.f32 %v2856, -0.00019315795
        %v3049 = vadd.f32 %v2857, -0.00019315795
        %v3050 = vadd.f32 %v2858, -0.00019315795
        %v3051 = vadd.f32 %v2859, -0.00019315795
        %v3052 = vadd.f32 %v2860, -0.00019315795
        %v3053 = vadd.f32 %v2861, -0.00019315795
        %v3054 = vadd.f32 %v2862, -0.00019315795
        %v3055 = vadd.f32 %v2863, -0.00019315795
        %v3056 = vadd.f32 %v2864, -0.00019315795
        %v3057 = vadd.f32 %v2865, -0.00019315795
        %v3058 = vadd.f32 %v2866, -0.00019315795
        %v3059 = vadd.f32 %v2867, -0.00019315795
        %v3060 = vadd.f32 %v2868, -0.00019315795
        %v3061 = vadd.f32 %v2869, -0.00019315795
        %v3062 = vadd.f32 %v2870, -0.00019315795
        %v3063 = vadd.f32 %v2871, -0.00019315795
        %v3064 = vmul.f32 %v2872, %v2488
        %v3065 = vmul.f32 %v2873, %v2489
        %v3066 = vmul.f32 %v2874, %v2490
        %v3067 = vmul.f32 %v2875, %v2491
        %v3068 = vmul.f32 %v2876, %v2492
        %v3069 = vmul.f32 %v2877, %v2493
        %v3070 = vmul.f32 %v2878, %v2494
        %v3071 = vmul.f32 %v2879, %v2495
        %v3072 = vmul.f32 %v2880, %v2496
        %v3073 = vmul.f32 %v2881, %v2497
        %v3074 = vmul.f32 %v2882, %v2498
        %v3075 = vmul.f32 %v2883, %v2499
        %v3076 = vmul.f32 %v2884, %v2500
        %v3077 = vmul.f32 %v2885, %v2501
        %v3078 = vmul.f32 %v2886, %v2502
        %v3079 = vmul.f32 %v2887, %v2503
        %v3080 = vmul.f32 %v2888, %v2504
        %v3081 = vmul.f32 %v2889, %v2505
        %v3082 = vmul.f32 %v2890, %v2506
        %v3083 = vmul.f32 %v2891, %v2507
        %v3084 = vmul.f32 %v2892, %v2508
        %v3085 = vmul.f32 %v2893, %v2509
        %v3086 = vmul.f32 %v2894, %v2510
        %v3087 = vmul.f32 %v2895, %v2511
        %v3088 = vmul.f32 %v2896, %v2512
        %v3089 = vmul.f32 %v2897, %v2513
        %v3090 = vmul.f32 %v2898, %v2514
        %v3091 = vmul.f32 %v2899, %v2515
        %v3092 = vmul.f32 %v2900, %v2516
        %v3093 = vmul.f32 %v2901, %v2517
        %v3094 = vmul.f32 %v2902, %v2518
        %v3095 = vmul.f32 %v2903, %v2519
        %v3096 = vmul.f32 %v2904, %v2520
        %v3097 = vmul.f32 %v2905, %v2521
        %v3098 = vmul.f32 %v2906, %v2522
        %v3099 = vmul.f32 %v2907, %v2523
        %v3100 = vmul.f32 %v2908, %v2524
        %v3101 = vmul.f32 %v2909, %v2525
        %v3102 = vmul.f32 %v2910, %v2526
        %v3103 = vmul.f32 %v2911, %v2527
        %v3104 = vmul.f32 %v2912, %v2528
        %v3105 = vmul.f32 %v2913, %v2529
        %v3106 = vmul.f32 %v2914, %v2530
        %v3107 = vmul.f32 %v2915, %v2531
        %v3108 = vmul.f32 %v2916, %v2532
        %v3109 = vmul.f32 %v2917, %v2533
        %v3110 = vmul.f32 %v2918, %v2534
        %v3111 = vmul.f32 %v2919, %v2535
        %v3112 = vmul.f32 %v2920, %v2536
        %v3113 = vmul.f32 %v2921, %v2537
        %v3114 = vmul.f32 %v2922, %v2538
        %v3115 = vmul.f32 %v2923, %v2539
        %v3116 = vmul.f32 %v2924, %v2540
        %v3117 = vmul.f32 %v2925, %v2541
        %v3118 = vmul.f32 %v2926, %v2542
        %v3119 = vmul.f32 %v2927, %v2543
        %v3120 = vmul.f32 %v2928, %v2544
        %v3121 = vmul.f32 %v2929, %v2545
        %v3122 = vmul.f32 %v2930, %v2546
        %v3123 = vmul.f32 %v2931, %v2547
        %v3124 = vmul.f32 %v2932, %v2548
        %v3125 = vmul.f32 %v2933, %v2549
        %v3126 = vmul.f32 %v2934, %v2550
        %v3127 = vmul.f32 %v2935, %v2551
        %v3128 = vmul.f32 %v2936, %v2552
        %v3129 = vmul.f32 %v2937, %v2553
        %v3130 = vmul.f32 %v2938, %v2554
        %v3131 = vmul.f32 %v2939, %v2555
        %v3132 = vmul.f32 %v2940, %v2556
        %v3133 = vmul.f32 %v2941, %v2557
        %v3134 = vmul.f32 %v2942, %v2558
        %v3135 = vmul.f32 %v2943, %v2559
        %v3136 = vmul.f32 %v2944, %v2560
        %v3137 = vmul.f32 %v2945, %v2561
        %v3138 = vmul.f32 %v2946, %v2562
        %v3139 = vmul.f32 %v2947, %v2563
        %v3140 = vmul.f32 %v2948, %v2564
        %v3141 = vmul.f32 %v2949, %v2565
        %v3142 = vmul.f32 %v2950, %v2566
        %v3143 = vmul.f32 %v2951, %v2567
        %v3144 = vmul.f32 %v2952, %v2568
        %v3145 = vmul.f32 %v2953, %v2569
        %v3146 = vmul.f32 %v2954, %v2570
        %v3147 = vmul.f32 %v2955, %v2571
        %v3148 = vmul.f32 %v2956, %v2572
        %v3149 = vmul.f32 %v2957, %v2573
        %v3150 = vmul.f32 %v2958, %v2574
        %v3151 = vmul.f32 %v2959, %v2575
        %v3152 = vmul.f32 %v2960, %v2576
        %v3153 = vmul.f32 %v2961, %v2577
        %v3154 = vmul.f32 %v2962, %v2578
        %v3155 = vmul.f32 %v2963, %v2579
        %v3156 = vmul.f32 %v2964, %v2580
        %v3157 = vmul.f32 %v2965, %v2581
        %v3158 = vmul.f32 %v2966, %v2582
        %v3159 = vmul.f32 %v2967, %v2583
        %v3160 = vmul.f32 %v2968, %v2584
        %v3161 = vmul.f32 %v2969, %v2585
        %v3162 = vmul.f32 %v2970, %v2586
        %v3163 = vmul.f32 %v2971, %v2587
        %v3164 = vmul.f32 %v2972, %v2588
        %v3165 = vmul.f32 %v2973, %v2589
        %v3166 = vmul.f32 %v2974, %v2590
        %v3167 = vmul.f32 %v2975, %v2591
        %v3168 = vmul.f32 %v2976, %v2592
        %v3169 = vmul.f32 %v2977, %v2593
        %v3170 = vmul.f32 %v2978, %v2594
        %v3171 = vmul.f32 %v2979, %v2595
        %v3172 = vmul.f32 %v2980, %v2596
        %v3173 = vmul.f32 %v2981, %v2597
        %v3174 = vmul.f32 %v2982, %v2598
        %v3175 = vmul.f32 %v2983, %v2599
        %v3176 = vmul.f32 %v2984, %v2600
        %v3177 = vmul.f32 %v2985, %v2601
        %v3178 = vmul.f32 %v2986, %v2602
        %v3179 = vmul.f32 %v2987, %v2603
        %v3180 = vmul.f32 %v2988, %v2604
        %v3181 = vmul.f32 %v2989, %v2605
        %v3182 = vmul.f32 %v2990, %v2606
        %v3183 = vmul.f32 %v2991, %v2607
        %v3184 = vmul.f32 %v2992, %v2608
        %v3185 = vmul.f32 %v2993, %v2609
        %v3186 = vmul.f32 %v2994, %v2610
        %v3187 = vmul.f32 %v2995, %v2611
        %v3188 = vmul.f32 %v2996, %v2612
        %v3189 = vmul.f32 %v2997, %v2613
        %v3190 = vmul.f32 %v2998, %v2614
        %v3191 = vmul.f32 %v2999, %v2615
        %v3192 = vmul.f32 %v3000, %v2616
        %v3193 = vmul.f32 %v3001, %v2617
        %v3194 = vmul.f32 %v3002, %v2618
        %v3195 = vmul.f32 %v3003, %v2619
        %v3196 = vmul.f32 %v3004, %v2620
        %v3197 = vmul.f32 %v3005, %v2621
        %v3198 = vmul.f32 %v3006, %v2622
        %v3199 = vmul.f32 %v3007, %v2623
        %v3200 = vmul.f32 %v3008, %v2624
        %v3201 = vmul.f32 %v3009, %v2625
        %v3202 = vmul.f32 %v3010, %v2626
        %v3203 = vmul.f32 %v3011, %v2627
        %v3204 = vmul.f32 %v3012, %v2628
        %v3205 = vmul.f32 %v3013, %v2629
        %v3206 = vmul.f32 %v3014, %v2630
        %v3207 = vmul.f32 %v3015, %v2631
        %v3208 = vmul.f32 %v3016, %v2632
        %v3209 = vmul.f32 %v3017, %v2633
        %v3210 = vmul.f32 %v3018, %v2634
        %v3211 = vmul.f32 %v3019, %v2635
        %v3212 = vmul.f32 %v3020, %v2636
        %v3213 = vmul.f32 %v3021, %v2637
        %v3214 = vmul.f32 %v3022, %v2638
        %v3215 = vmul.f32 %v3023, %v2639
        %v3216 = vmul.f32 %v3024, %v2640
        %v3217 = vmul.f32 %v3025, %v2641
        %v3218 = vmul.f32 %v3026, %v2642
        %v3219 = vmul.f32 %v3027, %v2643
        %v3220 = vmul.f32 %v3028, %v2644
        %v3221 = vmul.f32 %v3029, %v2645
        %v3222 = vmul.f32 %v3030, %v2646
        %v3223 = vmul.f32 %v3031, %v2647
        %v3224 = vmul.f32 %v3032, %v2648
        %v3225 = vmul.f32 %v3033, %v2649
        %v3226 = vmul.f32 %v3034, %v2650
        %v3227 = vmul.f32 %v3035, %v2651
        %v3228 = vmul.f32 %v3036, %v2652
        %v3229 = vmul.f32 %v3037, %v2653
        %v3230 = vmul.f32 %v3038, %v2654
        %v3231 = vmul.f32 %v3039, %v2655
        %v3232 = vmul.f32 %v3040, %v2656
        %v3233 = vmul.f32 %v3041, %v2657
        %v3234 = vmul.f32 %v3042, %v2658
        %v3235 = vmul.f32 %v3043, %v2659
        %v3236 = vmul.f32 %v3044, %v2660
        %v3237 = vmul.f32 %v3045, %v2661
        %v3238 = vmul.f32 %v3046, %v2662
        %v3239 = vmul.f32 %v3047, %v2663
        %v3240 = vmul.f32 %v3048, %v2664
        %v3241 = vmul.f32 %v3049, %v2665
        %v3242 = vmul.f32 %v3050, %v2666
        %v3243 = vmul.f32 %v3051, %v2667
        %v3244 = vmul.f32 %v3052, %v2668
        %v3245 = vmul.f32 %v3053, %v2669
        %v3246 = vmul.f32 %v3054, %v2670
        %v3247 = vmul.f32 %v3055, %v2671
        %v3248 = vmul.f32 %v3056, %v2672
        %v3249 = vmul.f32 %v3057, %v2673
        %v3250 = vmul.f32 %v3058, %v2674
        %v3251 = vmul.f32 %v3059, %v2675
        %v3252 = vmul.f32 %v3060, %v2676
        %v3253 = vmul.f32 %v3061, %v2677
        %v3254 = vmul.f32 %v3062, %v2678
        %v3255 = vmul.f32 %v3063, %v2679
        %v3256 = vadd.f32 %v3064, 0.008312359
        %v3257 = vadd.f32 %v3065, 0.008312359
        %v3258 = vadd.f32 %v3066, 0.008312359
        %v3259 = vadd.f32 %v3067, 0.008312359
        %v3260 = vadd.f32 %v3068, 0.008312359
        %v3261 = vadd.f32 %v3069, 0.008312359
        %v3262 = vadd.f32 %v3070, 0.008312359
        %v3263 = vadd.f32 %v3071, 0.008312359
        %v3264 = vadd.f32 %v3072, 0.008312359
        %v3265 = vadd.f32 %v3073, 0.008312359
        %v3266 = vadd.f32 %v3074, 0.008312359
        %v3267 = vadd.f32 %v3075, 0.008312359
        %v3268 = vadd.f32 %v3076, 0.008312359
        %v3269 = vadd.f32 %v3077, 0.008312359
        %v3270 = vadd.f32 %v3078, 0.008312359
        %v3271 = vadd.f32 %v3079, 0.008312359
        %v3272 = vadd.f32 %v3080, 0.008312359
        %v3273 = vadd.f32 %v3081, 0.008312359
        %v3274 = vadd.f32 %v3082, 0.008312359
        %v3275 = vadd.f32 %v3083, 0.008312359
        %v3276 = vadd.f32 %v3084, 0.008312359
        %v3277 = vadd.f32 %v3085, 0.008312359
        %v3278 = vadd.f32 %v3086, 0.008312359
        %v3279 = vadd.f32 %v3087, 0.008312359
        %v3280 = vadd.f32 %v3088, 0.008312359
        %v3281 = vadd.f32 %v3089, 0.008312359
        %v3282 = vadd.f32 %v3090, 0.008312359
        %v3283 = vadd.f32 %v3091, 0.008312359
        %v3284 = vadd.f32 %v3092, 0.008312359
        %v3285 = vadd.f32 %v3093, 0.008312359
        %v3286 = vadd.f32 %v3094, 0.008312359
        %v3287 = vadd.f32 %v3095, 0.008312359
        %v3288 = vadd.f32 %v3096, 0.008312359
        %v3289 = vadd.f32 %v3097, 0.008312359
        %v3290 = vadd.f32 %v3098, 0.008312359
        %v3291 = vadd.f32 %v3099, 0.008312359
        %v3292 = vadd.f32 %v3100, 0.008312359
        %v3293 = vadd.f32 %v3101, 0.008312359
        %v3294 = vadd.f32 %v3102, 0.008312359
        %v3295 = vadd.f32 %v3103, 0.008312359
        %v3296 = vadd.f32 %v3104, 0.008312359
        %v3297 = vadd.f32 %v3105, 0.008312359
        %v3298 = vadd.f32 %v3106, 0.008312359
        %v3299 = vadd.f32 %v3107, 0.008312359
        %v3300 = vadd.f32 %v3108, 0.008312359
        %v3301 = vadd.f32 %v3109, 0.008312359
        %v3302 = vadd.f32 %v3110, 0.008312359
        %v3303 = vadd.f32 %v3111, 0.008312359
        %v3304 = vadd.f32 %v3112, 0.008312359
        %v3305 = vadd.f32 %v3113, 0.008312359
        %v3306 = vadd.f32 %v3114, 0.008312359
        %v3307 = vadd.f32 %v3115, 0.008312359
        %v3308 = vadd.f32 %v3116, 0.008312359
        %v3309 = vadd.f32 %v3117, 0.008312359
        %v3310 = vadd.f32 %v3118, 0.008312359
        %v3311 = vadd.f32 %v3119, 0.008312359
        %v3312 = vadd.f32 %v3120, 0.008312359
        %v3313 = vadd.f32 %v3121, 0.008312359
        %v3314 = vadd.f32 %v3122, 0.008312359
        %v3315 = vadd.f32 %v3123, 0.008312359
        %v3316 = vadd.f32 %v3124, 0.008312359
        %v3317 = vadd.f32 %v3125, 0.008312359
        %v3318 = vadd.f32 %v3126, 0.008312359
        %v3319 = vadd.f32 %v3127, 0.008312359
        %v3320 = vadd.f32 %v3128, 0.008312359
        %v3321 = vadd.f32 %v3129, 0.008312359
        %v3322 = vadd.f32 %v3130, 0.008312359
        %v3323 = vadd.f32 %v3131, 0.008312359
        %v3324 = vadd.f32 %v3132, 0.008312359
        %v3325 = vadd.f32 %v3133, 0.008312359
        %v3326 = vadd.f32 %v3134, 0.008312359
        %v3327 = vadd.f32 %v3135, 0.008312359
        %v3328 = vadd.f32 %v3136, 0.008312359
        %v3329 = vadd.f32 %v3137, 0.008312359
        %v3330 = vadd.f32 %v3138, 0.008312359
        %v3331 = vadd.f32 %v3139, 0.008312359
        %v3332 = vadd.f32 %v3140, 0.008312359
        %v3333 = vadd.f32 %v3141, 0.008312359
        %v3334 = vadd.f32 %v3142, 0.008312359
        %v3335 = vadd.f32 %v3143, 0.008312359
        %v3336 = vadd.f32 %v3144, 0.008312359
        %v3337 = vadd.f32 %v3145, 0.008312359
        %v3338 = vadd.f32 %v3146, 0.008312359
        %v3339 = vadd.f32 %v3147, 0.008312359
        %v3340 = vadd.f32 %v3148, 0.008312359
        %v3341 = vadd.f32 %v3149, 0.008312359
        %v3342 = vadd.f32 %v3150, 0.008312359
        %v3343 = vadd.f32 %v3151, 0.008312359
        %v3344 = vadd.f32 %v3152, 0.008312359
        %v3345 = vadd.f32 %v3153, 0.008312359
        %v3346 = vadd.f32 %v3154, 0.008312359
        %v3347 = vadd.f32 %v3155, 0.008312359
        %v3348 = vadd.f32 %v3156, 0.008312359
        %v3349 = vadd.f32 %v3157, 0.008312359
        %v3350 = vadd.f32 %v3158, 0.008312359
        %v3351 = vadd.f32 %v3159, 0.008312359
        %v3352 = vadd.f32 %v3160, 0.008312359
        %v3353 = vadd.f32 %v3161, 0.008312359
        %v3354 = vadd.f32 %v3162, 0.008312359
        %v3355 = vadd.f32 %v3163, 0.008312359
        %v3356 = vadd.f32 %v3164, 0.008312359
        %v3357 = vadd.f32 %v3165, 0.008312359
        %v3358 = vadd.f32 %v3166, 0.008312359
        %v3359 = vadd.f32 %v3167, 0.008312359
        %v3360 = vadd.f32 %v3168, 0.008312359
        %v3361 = vadd.f32 %v3169, 0.008312359
        %v3362 = vadd.f32 %v3170, 0.008312359
        %v3363 = vadd.f32 %v3171, 0.008312359
        %v3364 = vadd.f32 %v3172, 0.008312359
        %v3365 = vadd.f32 %v3173, 0.008312359
        %v3366 = vadd.f32 %v3174, 0.008312359
        %v3367 = vadd.f32 %v3175, 0.008312359
        %v3368 = vadd.f32 %v3176, 0.008312359
        %v3369 = vadd.f32 %v3177, 0.008312359
        %v3370 = vadd.f32 %v3178, 0.008312359
        %v3371 = vadd.f32 %v3179, 0.008312359
        %v3372 = vadd.f32 %v3180, 0.008312359
        %v3373 = vadd.f32 %v3181, 0.008312359
        %v3374 = vadd.f32 %v3182, 0.008312359
        %v3375 = vadd.f32 %v3183, 0.008312359
        %v3376 = vadd.f32 %v3184, 0.008312359
        %v3377 = vadd.f32 %v3185, 0.008312359
        %v3378 = vadd.f32 %v3186, 0.008312359
        %v3379 = vadd.f32 %v3187, 0.008312359
        %v3380 = vadd.f32 %v3188, 0.008312359
        %v3381 = vadd.f32 %v3189, 0.008312359
        %v3382 = vadd.f32 %v3190, 0.008312359
        %v3383 = vadd.f32 %v3191, 0.008312359
        %v3384 = vadd.f32 %v3192, 0.008312359
        %v3385 = vadd.f32 %v3193, 0.008312359
        %v3386 = vadd.f32 %v3194, 0.008312359
        %v3387 = vadd.f32 %v3195, 0.008312359
        %v3388 = vadd.f32 %v3196, 0.008312359
        %v3389 = vadd.f32 %v3197, 0.008312359
        %v3390 = vadd.f32 %v3198, 0.008312359
        %v3391 = vadd.f32 %v3199, 0.008312359
        %v3392 = vadd.f32 %v3200, 0.008312359
        %v3393 = vadd.f32 %v3201, 0.008312359
        %v3394 = vadd.f32 %v3202, 0.008312359
        %v3395 = vadd.f32 %v3203, 0.008312359
        %v3396 = vadd.f32 %v3204, 0.008312359
        %v3397 = vadd.f32 %v3205, 0.008312359
        %v3398 = vadd.f32 %v3206, 0.008312359
        %v3399 = vadd.f32 %v3207, 0.008312359
        %v3400 = vadd.f32 %v3208, 0.008312359
        %v3401 = vadd.f32 %v3209, 0.008312359
        %v3402 = vadd.f32 %v3210, 0.008312359
        %v3403 = vadd.f32 %v3211, 0.008312359
        %v3404 = vadd.f32 %v3212, 0.008312359
        %v3405 = vadd.f32 %v3213, 0.008312359
        %v3406 = vadd.f32 %v3214, 0.008312359
        %v3407 = vadd.f32 %v3215, 0.008312359
        %v3408 = vadd.f32 %v3216, 0.008312359
        %v3409 = vadd.f32 %v3217, 0.008312359
        %v3410 = vadd.f32 %v3218, 0.008312359
        %v3411 = vadd.f32 %v3219, 0.008312359
        %v3412 = vadd.f32 %v3220, 0.008312359
        %v3413 = vadd.f32 %v3221, 0.008312359
        %v3414 = vadd.f32 %v3222, 0.008312359
        %v3415 = vadd.f32 %v3223, 0.008312359
        %v3416 = vadd.f32 %v3224, 0.008312359
        %v3417 = vadd.f32 %v3225, 0.008312359
        %v3418 = vadd.f32 %v3226, 0.008312359
        %v3419 = vadd.f32 %v3227, 0.008312359
        %v3420 = vadd.f32 %v3228, 0.008312359
        %v3421 = vadd.f32 %v3229, 0.008312359
        %v3422 = vadd.f32 %v3230, 0.008312359
        %v3423 = vadd.f32 %v3231, 0.008312359
        %v3424 = vadd.f32 %v3232, 0.008312359
        %v3425 = vadd.f32 %v3233, 0.008312359
        %v3426 = vadd.f32 %v3234, 0.008312359
        %v3427 = vadd.f32 %v3235, 0.008312359
        %v3428 = vadd.f32 %v3236, 0.008312359
        %v3429 = vadd.f32 %v3237, 0.008312359
        %v3430 = vadd.f32 %v3238, 0.008312359
        %v3431 = vadd.f32 %v3239, 0.008312359
        %v3432 = vadd.f32 %v3240, 0.008312359
        %v3433 = vadd.f32 %v3241, 0.008312359
        %v3434 = vadd.f32 %v3242, 0.008312359
        %v3435 = vadd.f32 %v3243, 0.008312359
        %v3436 = vadd.f32 %v3244, 0.008312359
        %v3437 = vadd.f32 %v3245, 0.008312359
        %v3438 = vadd.f32 %v3246, 0.008312359
        %v3439 = vadd.f32 %v3247, 0.008312359
        %v3440 = vadd.f32 %v3248, 0.008312359
        %v3441 = vadd.f32 %v3249, 0.008312359
        %v3442 = vadd.f32 %v3250, 0.008312359
        %v3443 = vadd.f32 %v3251, 0.008312359
        %v3444 = vadd.f32 %v3252, 0.008312359
        %v3445 = vadd.f32 %v3253, 0.008312359
        %v3446 = vadd.f32 %v3254, 0.008312359
        %v3447 = vadd.f32 %v3255, 0.008312359
        %v3448 = vmul.f32 %v3256, %v2488
        %v3449 = vmul.f32 %v3257, %v2489
        %v3450 = vmul.f32 %v3258, %v2490
        %v3451 = vmul.f32 %v3259, %v2491
        %v3452 = vmul.f32 %v3260, %v2492
        %v3453 = vmul.f32 %v3261, %v2493
        %v3454 = vmul.f32 %v3262, %v2494
        %v3455 = vmul.f32 %v3263, %v2495
        %v3456 = vmul.f32 %v3264, %v2496
        %v3457 = vmul.f32 %v3265, %v2497
        %v3458 = vmul.f32 %v3266, %v2498
        %v3459 = vmul.f32 %v3267, %v2499
        %v3460 = vmul.f32 %v3268, %v2500
        %v3461 = vmul.f32 %v3269, %v2501
        %v3462 = vmul.f32 %v3270, %v2502
        %v3463 = vmul.f32 %v3271, %v2503
        %v3464 = vmul.f32 %v3272, %v2504
        %v3465 = vmul.f32 %v3273, %v2505
        %v3466 = vmul.f32 %v3274, %v2506
        %v3467 = vmul.f32 %v3275, %v2507
        %v3468 = vmul.f32 %v3276, %v2508
        %v3469 = vmul.f32 %v3277, %v2509
        %v3470 = vmul.f32 %v3278, %v2510
        %v3471 = vmul.f32 %v3279, %v2511
        %v3472 = vmul.f32 %v3280, %v2512
        %v3473 = vmul.f32 %v3281, %v2513
        %v3474 = vmul.f32 %v3282, %v2514
        %v3475 = vmul.f32 %v3283, %v2515
        %v3476 = vmul.f32 %v3284, %v2516
        %v3477 = vmul.f32 %v3285, %v2517
        %v3478 = vmul.f32 %v3286, %v2518
        %v3479 = vmul.f32 %v3287, %v2519
        %v3480 = vmul.f32 %v3288, %v2520
        %v3481 = vmul.f32 %v3289, %v2521
        %v3482 = vmul.f32 %v3290, %v2522
        %v3483 = vmul.f32 %v3291, %v2523
        %v3484 = vmul.f32 %v3292, %v2524
        %v3485 = vmul.f32 %v3293, %v2525
        %v3486 = vmul.f32 %v3294, %v2526
        %v3487 = vmul.f32 %v3295, %v2527
        %v3488 = vmul.f32 %v3296, %v2528
        %v3489 = vmul.f32 %v3297, %v2529
        %v3490 = vmul.f32 %v3298, %v2530
        %v3491 = vmul.f32 %v3299, %v2531
        %v3492 = vmul.f32 %v3300, %v2532
        %v3493 = vmul.f32 %v3301, %v2533
        %v3494 = vmul.f32 %v3302, %v2534
        %v3495 = vmul.f32 %v3303, %v2535
        %v3496 = vmul.f32 %v3304, %v2536
        %v3497 = vmul.f32 %v3305, %v2537
        %v3498 = vmul.f32 %v3306, %v2538
        %v3499 = vmul.f32 %v3307, %v2539
        %v3500 = vmul.f32 %v3308, %v2540
        %v3501 = vmul.f32 %v3309, %v2541
        %v3502 = vmul.f32 %v3310, %v2542
        %v3503 = vmul.f32 %v3311, %v2543
        %v3504 = vmul.f32 %v3312, %v2544
        %v3505 = vmul.f32 %v3313, %v2545
        %v3506 = vmul.f32 %v3314, %v2546
        %v3507 = vmul.f32 %v3315, %v2547
        %v3508 = vmul.f32 %v3316, %v2548
        %v3509 = vmul.f32 %v3317, %v2549
        %v3510 = vmul.f32 %v3318, %v2550
        %v3511 = vmul.f32 %v3319, %v2551
        %v3512 = vmul.f32 %v3320, %v2552
        %v3513 = vmul.f32 %v3321, %v2553
        %v3514 = vmul.f32 %v3322, %v2554
        %v3515 = vmul.f32 %v3323, %v2555
        %v3516 = vmul.f32 %v3324, %v2556
        %v3517 = vmul.f32 %v3325, %v2557
        %v3518 = vmul.f32 %v3326, %v2558
        %v3519 = vmul.f32 %v3327, %v2559
        %v3520 = vmul.f32 %v3328, %v2560
        %v3521 = vmul.f32 %v3329, %v2561
        %v3522 = vmul.f32 %v3330, %v2562
        %v3523 = vmul.f32 %v3331, %v2563
        %v3524 = vmul.f32 %v3332, %v2564
        %v3525 = vmul.f32 %v3333, %v2565
        %v3526 = vmul.f32 %v3334, %v2566
        %v3527 = vmul.f32 %v3335, %v2567
        %v3528 = vmul.f32 %v3336, %v2568
        %v3529 = vmul.f32 %v3337, %v2569
        %v3530 = vmul.f32 %v3338, %v2570
        %v3531 = vmul.f32 %v3339, %v2571
        %v3532 = vmul.f32 %v3340, %v2572
        %v3533 = vmul.f32 %v3341, %v2573
        %v3534 = vmul.f32 %v3342, %v2574
        %v3535 = vmul.f32 %v3343, %v2575
        %v3536 = vmul.f32 %v3344, %v2576
        %v3537 = vmul.f32 %v3345, %v2577
        %v3538 = vmul.f32 %v3346, %v2578
        %v3539 = vmul.f32 %v3347, %v2579
        %v3540 = vmul.f32 %v3348, %v2580
        %v3541 = vmul.f32 %v3349, %v2581
        %v3542 = vmul.f32 %v3350, %v2582
        %v3543 = vmul.f32 %v3351, %v2583
        %v3544 = vmul.f32 %v3352, %v2584
        %v3545 = vmul.f32 %v3353, %v2585
        %v3546 = vmul.f32 %v3354, %v2586
        %v3547 = vmul.f32 %v3355, %v2587
        %v3548 = vmul.f32 %v3356, %v2588
        %v3549 = vmul.f32 %v3357, %v2589
        %v3550 = vmul.f32 %v3358, %v2590
        %v3551 = vmul.f32 %v3359, %v2591
        %v3552 = vmul.f32 %v3360, %v2592
        %v3553 = vmul.f32 %v3361, %v2593
        %v3554 = vmul.f32 %v3362, %v2594
        %v3555 = vmul.f32 %v3363, %v2595
        %v3556 = vmul.f32 %v3364, %v2596
        %v3557 = vmul.f32 %v3365, %v2597
        %v3558 = vmul.f32 %v3366, %v2598
        %v3559 = vmul.f32 %v3367, %v2599
        %v3560 = vmul.f32 %v3368, %v2600
        %v3561 = vmul.f32 %v3369, %v2601
        %v3562 = vmul.f32 %v3370, %v2602
        %v3563 = vmul.f32 %v3371, %v2603
        %v3564 = vmul.f32 %v3372, %v2604
        %v3565 = vmul.f32 %v3373, %v2605
        %v3566 = vmul.f32 %v3374, %v2606
        %v3567 = vmul.f32 %v3375, %v2607
        %v3568 = vmul.f32 %v3376, %v2608
        %v3569 = vmul.f32 %v3377, %v2609
        %v3570 = vmul.f32 %v3378, %v2610
        %v3571 = vmul.f32 %v3379, %v2611
        %v3572 = vmul.f32 %v3380, %v2612
        %v3573 = vmul.f32 %v3381, %v2613
        %v3574 = vmul.f32 %v3382, %v2614
        %v3575 = vmul.f32 %v3383, %v2615
        %v3576 = vmul.f32 %v3384, %v2616
        %v3577 = vmul.f32 %v3385, %v2617
        %v3578 = vmul.f32 %v3386, %v2618
        %v3579 = vmul.f32 %v3387, %v2619
        %v3580 = vmul.f32 %v3388, %v2620
        %v3581 = vmul.f32 %v3389, %v2621
        %v3582 = vmul.f32 %v3390, %v2622
        %v3583 = vmul.f32 %v3391, %v2623
        %v3584 = vmul.f32 %v3392, %v2624
        %v3585 = vmul.f32 %v3393, %v2625
        %v3586 = vmul.f32 %v3394, %v2626
        %v3587 = vmul.f32 %v3395, %v2627
        %v3588 = vmul.f32 %v3396, %v2628
        %v3589 = vmul.f32 %v3397, %v2629
        %v3590 = vmul.f32 %v3398, %v2630
        %v3591 = vmul.f32 %v3399, %v2631
        %v3592 = vmul.f32 %v3400, %v2632
        %v3593 = vmul.f32 %v3401, %v2633
        %v3594 = vmul.f32 %v3402, %v2634
        %v3595 = vmul.f32 %v3403, %v2635
        %v3596 = vmul.f32 %v3404, %v2636
        %v3597 = vmul.f32 %v3405, %v2637
        %v3598 = vmul.f32 %v3406, %v2638
        %v3599 = vmul.f32 %v3407, %v2639
        %v3600 = vmul.f32 %v3408, %v2640
        %v3601 = vmul.f32 %v3409, %v2641
        %v3602 = vmul.f32 %v3410, %v2642
        %v3603 = vmul.f32 %v3411, %v2643
        %v3604 = vmul.f32 %v3412, %v2644
        %v3605 = vmul.f32 %v3413, %v2645
        %v3606 = vmul.f32 %v3414, %v2646
        %v3607 = vmul.f32 %v3415, %v2647
        %v3608 = vmul.f32 %v3416, %v2648
        %v3609 = vmul.f32 %v3417, %v2649
        %v3610 = vmul.f32 %v3418, %v2650
        %v3611 = vmul.f32 %v3419, %v2651
        %v3612 = vmul.f32 %v3420, %v2652
        %v3613 = vmul.f32 %v3421, %v2653
        %v3614 = vmul.f32 %v3422, %v2654
        %v3615 = vmul.f32 %v3423, %v2655
        %v3616 = vmul.f32 %v3424, %v2656
        %v3617 = vmul.f32 %v3425, %v2657
        %v3618 = vmul.f32 %v3426, %v2658
        %v3619 = vmul.f32 %v3427, %v2659
        %v3620 = vmul.f32 %v3428, %v2660
        %v3621 = vmul.f32 %v3429, %v2661
        %v3622 = vmul.f32 %v3430, %v2662
        %v3623 = vmul.f32 %v3431, %v2663
        %v3624 = vmul.f32 %v3432, %v2664
        %v3625 = vmul.f32 %v3433, %v2665
        %v3626 = vmul.f32 %v3434, %v2666
        %v3627 = vmul.f32 %v3435, %v2667
        %v3628 = vmul.f32 %v3436, %v2668
        %v3629 = vmul.f32 %v3437, %v2669
        %v3630 = vmul.f32 %v3438, %v2670
        %v3631 = vmul.f32 %v3439, %v2671
        %v3632 = vmul.f32 %v3440, %v2672
        %v3633 = vmul.f32 %v3441, %v2673
        %v3634 = vmul.f32 %v3442, %v2674
        %v3635 = vmul.f32 %v3443, %v2675
        %v3636 = vmul.f32 %v3444, %v2676
        %v3637 = vmul.f32 %v3445, %v2677
        %v3638 = vmul.f32 %v3446, %v2678
        %v3639 = vmul.f32 %v3447, %v2679
        %v3640 = vadd.f32 %v3448, -0.16663253
        %v3641 = vadd.f32 %v3449, -0.16663253
        %v3642 = vadd.f32 %v3450, -0.16663253
        %v3643 = vadd.f32 %v3451, -0.16663253
        %v3644 = vadd.f32 %v3452, -0.16663253
        %v3645 = vadd.f32 %v3453, -0.16663253
        %v3646 = vadd.f32 %v3454, -0.16663253
        %v3647 = vadd.f32 %v3455, -0.16663253
        %v3648 = vadd.f32 %v3456, -0.16663253
        %v3649 = vadd.f32 %v3457, -0.16663253
        %v3650 = vadd.f32 %v3458, -0.16663253
        %v3651 = vadd.f32 %v3459, -0.16663253
        %v3652 = vadd.f32 %v3460, -0.16663253
        %v3653 = vadd.f32 %v3461, -0.16663253
        %v3654 = vadd.f32 %v3462, -0.16663253
        %v3655 = vadd.f32 %v3463, -0.16663253
        %v3656 = vadd.f32 %v3464, -0.16663253
        %v3657 = vadd.f32 %v3465, -0.16663253
        %v3658 = vadd.f32 %v3466, -0.16663253
        %v3659 = vadd.f32 %v3467, -0.16663253
        %v3660 = vadd.f32 %v3468, -0.16663253
        %v3661 = vadd.f32 %v3469, -0.16663253
        %v3662 = vadd.f32 %v3470, -0.16663253
        %v3663 = vadd.f32 %v3471, -0.16663253
        %v3664 = vadd.f32 %v3472, -0.16663253
        %v3665 = vadd.f32 %v3473, -0.16663253
        %v3666 = vadd.f32 %v3474, -0.16663253
        %v3667 = vadd.f32 %v3475, -0.16663253
        %v3668 = vadd.f32 %v3476, -0.16663253
        %v3669 = vadd.f32 %v3477, -0.16663253
        %v3670 = vadd.f32 %v3478, -0.16663253
        %v3671 = vadd.f32 %v3479, -0.16663253
        %v3672 = vadd.f32 %v3480, -0.16663253
        %v3673 = vadd.f32 %v3481, -0.16663253
        %v3674 = vadd.f32 %v3482, -0.16663253
        %v3675 = vadd.f32 %v3483, -0.16663253
        %v3676 = vadd.f32 %v3484, -0.16663253
        %v3677 = vadd.f32 %v3485, -0.16663253
        %v3678 = vadd.f32 %v3486, -0.16663253
        %v3679 = vadd.f32 %v3487, -0.16663253
        %v3680 = vadd.f32 %v3488, -0.16663253
        %v3681 = vadd.f32 %v3489, -0.16663253
        %v3682 = vadd.f32 %v3490, -0.16663253
        %v3683 = vadd.f32 %v3491, -0.16663253
        %v3684 = vadd.f32 %v3492, -0.16663253
        %v3685 = vadd.f32 %v3493, -0.16663253
        %v3686 = vadd.f32 %v3494, -0.16663253
        %v3687 = vadd.f32 %v3495, -0.16663253
        %v3688 = vadd.f32 %v3496, -0.16663253
        %v3689 = vadd.f32 %v3497, -0.16663253
        %v3690 = vadd.f32 %v3498, -0.16663253
        %v3691 = vadd.f32 %v3499, -0.16663253
        %v3692 = vadd.f32 %v3500, -0.16663253
        %v3693 = vadd.f32 %v3501, -0.16663253
        %v3694 = vadd.f32 %v3502, -0.16663253
        %v3695 = vadd.f32 %v3503, -0.16663253
        %v3696 = vadd.f32 %v3504, -0.16663253
        %v3697 = vadd.f32 %v3505, -0.16663253
        %v3698 = vadd.f32 %v3506, -0.16663253
        %v3699 = vadd.f32 %v3507, -0.16663253
        %v3700 = vadd.f32 %v3508, -0.16663253
        %v3701 = vadd.f32 %v3509, -0.16663253
        %v3702 = vadd.f32 %v3510, -0.16663253
        %v3703 = vadd.f32 %v3511, -0.16663253
        %v3704 = vadd.f32 %v3512, -0.16663253
        %v3705 = vadd.f32 %v3513, -0.16663253
        %v3706 = vadd.f32 %v3514, -0.16663253
        %v3707 = vadd.f32 %v3515, -0.16663253
        %v3708 = vadd.f32 %v3516, -0.16663253
        %v3709 = vadd.f32 %v3517, -0.16663253
        %v3710 = vadd.f32 %v3518, -0.16663253
        %v3711 = vadd.f32 %v3519, -0.16663253
        %v3712 = vadd.f32 %v3520, -0.16663253
        %v3713 = vadd.f32 %v3521, -0.16663253
        %v3714 = vadd.f32 %v3522, -0.16663253
        %v3715 = vadd.f32 %v3523, -0.16663253
        %v3716 = vadd.f32 %v3524, -0.16663253
        %v3717 = vadd.f32 %v3525, -0.16663253
        %v3718 = vadd.f32 %v3526, -0.16663253
        %v3719 = vadd.f32 %v3527, -0.16663253
        %v3720 = vadd.f32 %v3528, -0.16663253
        %v3721 = vadd.f32 %v3529, -0.16663253
        %v3722 = vadd.f32 %v3530, -0.16663253
        %v3723 = vadd.f32 %v3531, -0.16663253
        %v3724 = vadd.f32 %v3532, -0.16663253
        %v3725 = vadd.f32 %v3533, -0.16663253
        %v3726 = vadd.f32 %v3534, -0.16663253
        %v3727 = vadd.f32 %v3535, -0.16663253
        %v3728 = vadd.f32 %v3536, -0.16663253
        %v3729 = vadd.f32 %v3537, -0.16663253
        %v3730 = vadd.f32 %v3538, -0.16663253
        %v3731 = vadd.f32 %v3539, -0.16663253
        %v3732 = vadd.f32 %v3540, -0.16663253
        %v3733 = vadd.f32 %v3541, -0.16663253
        %v3734 = vadd.f32 %v3542, -0.16663253
        %v3735 = vadd.f32 %v3543, -0.16663253
        %v3736 = vadd.f32 %v3544, -0.16663253
        %v3737 = vadd.f32 %v3545, -0.16663253
        %v3738 = vadd.f32 %v3546, -0.16663253
        %v3739 = vadd.f32 %v3547, -0.16663253
        %v3740 = vadd.f32 %v3548, -0.16663253
        %v3741 = vadd.f32 %v3549, -0.16663253
        %v3742 = vadd.f32 %v3550, -0.16663253
        %v3743 = vadd.f32 %v3551, -0.16663253
        %v3744 = vadd.f32 %v3552, -0.16663253
        %v3745 = vadd.f32 %v3553, -0.16663253
        %v3746 = vadd.f32 %v3554, -0.16663253
        %v3747 = vadd.f32 %v3555, -0.16663253
        %v3748 = vadd.f32 %v3556, -0.16663253
        %v3749 = vadd.f32 %v3557, -0.16663253
        %v3750 = vadd.f32 %v3558, -0.16663253
        %v3751 = vadd.f32 %v3559, -0.16663253
        %v3752 = vadd.f32 %v3560, -0.16663253
        %v3753 = vadd.f32 %v3561, -0.16663253
        %v3754 = vadd.f32 %v3562, -0.16663253
        %v3755 = vadd.f32 %v3563, -0.16663253
        %v3756 = vadd.f32 %v3564, -0.16663253
        %v3757 = vadd.f32 %v3565, -0.16663253
        %v3758 = vadd.f32 %v3566, -0.16663253
        %v3759 = vadd.f32 %v3567, -0.16663253
        %v3760 = vadd.f32 %v3568, -0.16663253
        %v3761 = vadd.f32 %v3569, -0.16663253
        %v3762 = vadd.f32 %v3570, -0.16663253
        %v3763 = vadd.f32 %v3571, -0.16663253
        %v3764 = vadd.f32 %v3572, -0.16663253
        %v3765 = vadd.f32 %v3573, -0.16663253
        %v3766 = vadd.f32 %v3574, -0.16663253
        %v3767 = vadd.f32 %v3575, -0.16663253
        %v3768 = vadd.f32 %v3576, -0.16663253
        %v3769 = vadd.f32 %v3577, -0.16663253
        %v3770 = vadd.f32 %v3578, -0.16663253
        %v3771 = vadd.f32 %v3579, -0.16663253
        %v3772 = vadd.f32 %v3580, -0.16663253
        %v3773 = vadd.f32 %v3581, -0.16663253
        %v3774 = vadd.f32 %v3582, -0.16663253
        %v3775 = vadd.f32 %v3583, -0.16663253
        %v3776 = vadd.f32 %v3584, -0.16663253
        %v3777 = vadd.f32 %v3585, -0.16663253
        %v3778 = vadd.f32 %v3586, -0.16663253
        %v3779 = vadd.f32 %v3587, -0.16663253
        %v3780 = vadd.f32 %v3588, -0.16663253
        %v3781 = vadd.f32 %v3589, -0.16663253
        %v3782 = vadd.f32 %v3590, -0.16663253
        %v3783 = vadd.f32 %v3591, -0.16663253
        %v3784 = vadd.f32 %v3592, -0.16663253
        %v3785 = vadd.f32 %v3593, -0.16663253
        %v3786 = vadd.f32 %v3594, -0.16663253
        %v3787 = vadd.f32 %v3595, -0.16663253
        %v3788 = vadd.f32 %v3596, -0.16663253
        %v3789 = vadd.f32 %v3597, -0.16663253
        %v3790 = vadd.f32 %v3598, -0.16663253
        %v3791 = vadd.f32 %v3599, -0.16663253
        %v3792 = vadd.f32 %v3600, -0.16663253
        %v3793 = vadd.f32 %v3601, -0.16663253
        %v3794 = vadd.f32 %v3602, -0.16663253
        %v3795 = vadd.f32 %v3603, -0.16663253
        %v3796 = vadd.f32 %v3604, -0.16663253
        %v3797 = vadd.f32 %v3605, -0.16663253
        %v3798 = vadd.f32 %v3606, -0.16663253
        %v3799 = vadd.f32 %v3607, -0.16663253
        %v3800 = vadd.f32 %v3608, -0.16663253
        %v3801 = vadd.f32 %v3609, -0.16663253
        %v3802 = vadd.f32 %v3610, -0.16663253
        %v3803 = vadd.f32 %v3611, -0.16663253
        %v3804 = vadd.f32 %v3612, -0.16663253
        %v3805 = vadd.f32 %v3613, -0.16663253
        %v3806 = vadd.f32 %v3614, -0.16663253
        %v3807 = vadd.f32 %v3615, -0.16663253
        %v3808 = vadd.f32 %v3616, -0.16663253
        %v3809 = vadd.f32 %v3617, -0.16663253
        %v3810 = vadd.f32 %v3618, -0.16663253
        %v3811 = vadd.f32 %v3619, -0.16663253
        %v3812 = vadd.f32 %v3620, -0.16663253
        %v3813 = vadd.f32 %v3621, -0.16663253
        %v3814 = vadd.f32 %v3622, -0.16663253
        %v3815 = vadd.f32 %v3623, -0.16663253
        %v3816 = vadd.f32 %v3624, -0.16663253
        %v3817 = vadd.f32 %v3625, -0.16663253
        %v3818 = vadd.f32 %v3626, -0.16663253
        %v3819 = vadd.f32 %v3627, -0.16663253
        %v3820 = vadd.f32 %v3628, -0.16663253
        %v3821 = vadd.f32 %v3629, -0.16663253
        %v3822 = vadd.f32 %v3630, -0.16663253
        %v3823 = vadd.f32 %v3631, -0.16663253
        %v3824 = vadd.f32 %v3632, -0.16663253
        %v3825 = vadd.f32 %v3633, -0.16663253
        %v3826 = vadd.f32 %v3634, -0.16663253
        %v3827 = vadd.f32 %v3635, -0.16663253
        %v3828 = vadd.f32 %v3636, -0.16663253
        %v3829 = vadd.f32 %v3637, -0.16663253
        %v3830 = vadd.f32 %v3638, -0.16663253
        %v3831 = vadd.f32 %v3639, -0.16663253
        %v3832 = vmul.f32 %v3640, %v2488
        %v3833 = vmul.f32 %v3641, %v2489
        %v3834 = vmul.f32 %v3642, %v2490
        %v3835 = vmul.f32 %v3643, %v2491
        %v3836 = vmul.f32 %v3644, %v2492
        %v3837 = vmul.f32 %v3645, %v2493
        %v3838 = vmul.f32 %v3646, %v2494
        %v3839 = vmul.f32 %v3647, %v2495
        %v3840 = vmul.f32 %v3648, %v2496
        %v3841 = vmul.f32 %v3649, %v2497
        %v3842 = vmul.f32 %v3650, %v2498
        %v3843 = vmul.f32 %v3651, %v2499
        %v3844 = vmul.f32 %v3652, %v2500
        %v3845 = vmul.f32 %v3653, %v2501
        %v3846 = vmul.f32 %v3654, %v2502
        %v3847 = vmul.f32 %v3655, %v2503
        %v3848 = vmul.f32 %v3656, %v2504
        %v3849 = vmul.f32 %v3657, %v2505
        %v3850 = vmul.f32 %v3658, %v2506
        %v3851 = vmul.f32 %v3659, %v2507
        %v3852 = vmul.f32 %v3660, %v2508
        %v3853 = vmul.f32 %v3661, %v2509
        %v3854 = vmul.f32 %v3662, %v2510
        %v3855 = vmul.f32 %v3663, %v2511
        %v3856 = vmul.f32 %v3664, %v2512
        %v3857 = vmul.f32 %v3665, %v2513
        %v3858 = vmul.f32 %v3666, %v2514
        %v3859 = vmul.f32 %v3667, %v2515
        %v3860 = vmul.f32 %v3668, %v2516
        %v3861 = vmul.f32 %v3669, %v2517
        %v3862 = vmul.f32 %v3670, %v2518
        %v3863 = vmul.f32 %v3671, %v2519
        %v3864 = vmul.f32 %v3672, %v2520
        %v3865 = vmul.f32 %v3673, %v2521
        %v3866 = vmul.f32 %v3674, %v2522
        %v3867 = vmul.f32 %v3675, %v2523
        %v3868 = vmul.f32 %v3676, %v2524
        %v3869 = vmul.f32 %v3677, %v2525
        %v3870 = vmul.f32 %v3678, %v2526
        %v3871 = vmul.f32 %v3679, %v2527
        %v3872 = vmul.f32 %v3680, %v2528
        %v3873 = vmul.f32 %v3681, %v2529
        %v3874 = vmul.f32 %v3682, %v2530
        %v3875 = vmul.f32 %v3683, %v2531
        %v3876 = vmul.f32 %v3684, %v2532
        %v3877 = vmul.f32 %v3685, %v2533
        %v3878 = vmul.f32 %v3686, %v2534
        %v3879 = vmul.f32 %v3687, %v2535
        %v3880 = vmul.f32 %v3688, %v2536
        %v3881 = vmul.f32 %v3689, %v2537
        %v3882 = vmul.f32 %v3690, %v2538
        %v3883 = vmul.f32 %v3691, %v2539
        %v3884 = vmul.f32 %v3692, %v2540
        %v3885 = vmul.f32 %v3693, %v2541
        %v3886 = vmul.f32 %v3694, %v2542
        %v3887 = vmul.f32 %v3695, %v2543
        %v3888 = vmul.f32 %v3696, %v2544
        %v3889 = vmul.f32 %v3697, %v2545
        %v3890 = vmul.f32 %v3698, %v2546
        %v3891 = vmul.f32 %v3699, %v2547
        %v3892 = vmul.f32 %v3700, %v2548
        %v3893 = vmul.f32 %v3701, %v2549
        %v3894 = vmul.f32 %v3702, %v2550
        %v3895 = vmul.f32 %v3703, %v2551
        %v3896 = vmul.f32 %v3704, %v2552
        %v3897 = vmul.f32 %v3705, %v2553
        %v3898 = vmul.f32 %v3706, %v2554
        %v3899 = vmul.f32 %v3707, %v2555
        %v3900 = vmul.f32 %v3708, %v2556
        %v3901 = vmul.f32 %v3709, %v2557
        %v3902 = vmul.f32 %v3710, %v2558
        %v3903 = vmul.f32 %v3711, %v2559
        %v3904 = vmul.f32 %v3712, %v2560
        %v3905 = vmul.f32 %v3713, %v2561
        %v3906 = vmul.f32 %v3714, %v2562
        %v3907 = vmul.f32 %v3715, %v2563
        %v3908 = vmul.f32 %v3716, %v2564
        %v3909 = vmul.f32 %v3717, %v2565
        %v3910 = vmul.f32 %v3718, %v2566
        %v3911 = vmul.f32 %v3719, %v2567
        %v3912 = vmul.f32 %v3720, %v2568
        %v3913 = vmul.f32 %v3721, %v2569
        %v3914 = vmul.f32 %v3722, %v2570
        %v3915 = vmul.f32 %v3723, %v2571
        %v3916 = vmul.f32 %v3724, %v2572
        %v3917 = vmul.f32 %v3725, %v2573
        %v3918 = vmul.f32 %v3726, %v2574
        %v3919 = vmul.f32 %v3727, %v2575
        %v3920 = vmul.f32 %v3728, %v2576
        %v3921 = vmul.f32 %v3729, %v2577
        %v3922 = vmul.f32 %v3730, %v2578
        %v3923 = vmul.f32 %v3731, %v2579
        %v3924 = vmul.f32 %v3732, %v2580
        %v3925 = vmul.f32 %v3733, %v2581
        %v3926 = vmul.f32 %v3734, %v2582
        %v3927 = vmul.f32 %v3735, %v2583
        %v3928 = vmul.f32 %v3736, %v2584
        %v3929 = vmul.f32 %v3737, %v2585
        %v3930 = vmul.f32 %v3738, %v2586
        %v3931 = vmul.f32 %v3739, %v2587
        %v3932 = vmul.f32 %v3740, %v2588
        %v3933 = vmul.f32 %v3741, %v2589
        %v3934 = vmul.f32 %v3742, %v2590
        %v3935 = vmul.f32 %v3743, %v2591
        %v3936 = vmul.f32 %v3744, %v2592
        %v3937 = vmul.f32 %v3745, %v2593
        %v3938 = vmul.f32 %v3746, %v2594
        %v3939 = vmul.f32 %v3747, %v2595
        %v3940 = vmul.f32 %v3748, %v2596
        %v3941 = vmul.f32 %v3749, %v2597
        %v3942 = vmul.f32 %v3750, %v2598
        %v3943 = vmul.f32 %v3751, %v2599
        %v3944 = vmul.f32 %v3752, %v2600
        %v3945 = vmul.f32 %v3753, %v2601
        %v3946 = vmul.f32 %v3754, %v2602
        %v3947 = vmul.f32 %v3755, %v2603
        %v3948 = vmul.f32 %v3756, %v2604
        %v3949 = vmul.f32 %v3757, %v2605
        %v3950 = vmul.f32 %v3758, %v2606
        %v3951 = vmul.f32 %v3759, %v2607
        %v3952 = vmul.f32 %v3760, %v2608
        %v3953 = vmul.f32 %v3761, %v2609
        %v3954 = vmul.f32 %v3762, %v2610
        %v3955 = vmul.f32 %v3763, %v2611
        %v3956 = vmul.f32 %v3764, %v2612
        %v3957 = vmul.f32 %v3765, %v2613
        %v3958 = vmul.f32 %v3766, %v2614
        %v3959 = vmul.f32 %v3767, %v2615
        %v3960 = vmul.f32 %v3768, %v2616
        %v3961 = vmul.f32 %v3769, %v2617
        %v3962 = vmul.f32 %v3770, %v2618
        %v3963 = vmul.f32 %v3771, %v2619
        %v3964 = vmul.f32 %v3772, %v2620
        %v3965 = vmul.f32 %v3773, %v2621
        %v3966 = vmul.f32 %v3774, %v2622
        %v3967 = vmul.f32 %v3775, %v2623
        %v3968 = vmul.f32 %v3776, %v2624
        %v3969 = vmul.f32 %v3777, %v2625
        %v3970 = vmul.f32 %v3778, %v2626
        %v3971 = vmul.f32 %v3779, %v2627
        %v3972 = vmul.f32 %v3780, %v2628
        %v3973 = vmul.f32 %v3781, %v2629
        %v3974 = vmul.f32 %v3782, %v2630
        %v3975 = vmul.f32 %v3783, %v2631
        %v3976 = vmul.f32 %v3784, %v2632
        %v3977 = vmul.f32 %v3785, %v2633
        %v3978 = vmul.f32 %v3786, %v2634
        %v3979 = vmul.f32 %v3787, %v2635
        %v3980 = vmul.f32 %v3788, %v2636
        %v3981 = vmul.f32 %v3789, %v2637
        %v3982 = vmul.f32 %v3790, %v2638
        %v3983 = vmul.f32 %v3791, %v2639
        %v3984 = vmul.f32 %v3792, %v2640
        %v3985 = vmul.f32 %v3793, %v2641
        %v3986 = vmul.f32 %v3794, %v2642
        %v3987 = vmul.f32 %v3795, %v2643
        %v3988 = vmul.f32 %v3796, %v2644
        %v3989 = vmul.f32 %v3797, %v2645
        %v3990 = vmul.f32 %v3798, %v2646
        %v3991 = vmul.f32 %v3799, %v2647
        %v3992 = vmul.f32 %v3800, %v2648
        %v3993 = vmul.f32 %v3801, %v2649
        %v3994 = vmul.f32 %v3802, %v2650
        %v3995 = vmul.f32 %v3803, %v2651
        %v3996 = vmul.f32 %v3804, %v2652
        %v3997 = vmul.f32 %v3805, %v2653
        %v3998 = vmul.f32 %v3806, %v2654
        %v3999 = vmul.f32 %v3807, %v2655
        %v4000 = vmul.f32 %v3808, %v2656
        %v4001 = vmul.f32 %v3809, %v2657
        %v4002 = vmul.f32 %v3810, %v2658
        %v4003 = vmul.f32 %v3811, %v2659
        %v4004 = vmul.f32 %v3812, %v2660
        %v4005 = vmul.f32 %v3813, %v2661
        %v4006 = vmul.f32 %v3814, %v2662
        %v4007 = vmul.f32 %v3815, %v2663
        %v4008 = vmul.f32 %v3816, %v2664
        %v4009 = vmul.f32 %v3817, %v2665
        %v4010 = vmul.f32 %v3818, %v2666
        %v4011 = vmul.f32 %v3819, %v2667
        %v4012 = vmul.f32 %v3820, %v2668
        %v4013 = vmul.f32 %v3821, %v2669
        %v4014 = vmul.f32 %v3822, %v2670
        %v4015 = vmul.f32 %v3823, %v2671
        %v4016 = vmul.f32 %v3824, %v2672
        %v4017 = vmul.f32 %v3825, %v2673
        %v4018 = vmul.f32 %v3826, %v2674
        %v4019 = vmul.f32 %v3827, %v2675
        %v4020 = vmul.f32 %v3828, %v2676
        %v4021 = vmul.f32 %v3829, %v2677
        %v4022 = vmul.f32 %v3830, %v2678
        %v4023 = vmul.f32 %v3831, %v2679
        %v4024 = vadd.f32 %v3832, 0.99998456
        %v4025 = vadd.f32 %v3833, 0.99998456
        %v4026 = vadd.f32 %v3834, 0.99998456
        %v4027 = vadd.f32 %v3835, 0.99998456
        %v4028 = vadd.f32 %v3836, 0.99998456
        %v4029 = vadd.f32 %v3837, 0.99998456
        %v4030 = vadd.f32 %v3838, 0.99998456
        %v4031 = vadd.f32 %v3839, 0.99998456
        %v4032 = vadd.f32 %v3840, 0.99998456
        %v4033 = vadd.f32 %v3841, 0.99998456
        %v4034 = vadd.f32 %v3842, 0.99998456
        %v4035 = vadd.f32 %v3843, 0.99998456
        %v4036 = vadd.f32 %v3844, 0.99998456
        %v4037 = vadd.f32 %v3845, 0.99998456
        %v4038 = vadd.f32 %v3846, 0.99998456
        %v4039 = vadd.f32 %v3847, 0.99998456
        %v4040 = vadd.f32 %v3848, 0.99998456
        %v4041 = vadd.f32 %v3849, 0.99998456
        %v4042 = vadd.f32 %v3850, 0.99998456
        %v4043 = vadd.f32 %v3851, 0.99998456
        %v4044 = vadd.f32 %v3852, 0.99998456
        %v4045 = vadd.f32 %v3853, 0.99998456
        %v4046 = vadd.f32 %v3854, 0.99998456
        %v4047 = vadd.f32 %v3855, 0.99998456
        %v4048 = vadd.f32 %v3856, 0.99998456
        %v4049 = vadd.f32 %v3857, 0.99998456
        %v4050 = vadd.f32 %v3858, 0.99998456
        %v4051 = vadd.f32 %v3859, 0.99998456
        %v4052 = vadd.f32 %v3860, 0.99998456
        %v4053 = vadd.f32 %v3861, 0.99998456
        %v4054 = vadd.f32 %v3862, 0.99998456
        %v4055 = vadd.f32 %v3863, 0.99998456
        %v4056 = vadd.f32 %v3864, 0.99998456
        %v4057 = vadd.f32 %v3865, 0.99998456
        %v4058 = vadd.f32 %v3866, 0.99998456
        %v4059 = vadd.f32 %v3867, 0.99998456
        %v4060 = vadd.f32 %v3868, 0.99998456
        %v4061 = vadd.f32 %v3869, 0.99998456
        %v4062 = vadd.f32 %v3870, 0.99998456
        %v4063 = vadd.f32 %v3871, 0.99998456
        %v4064 = vadd.f32 %v3872, 0.99998456
        %v4065 = vadd.f32 %v3873, 0.99998456
        %v4066 = vadd.f32 %v3874, 0.99998456
        %v4067 = vadd.f32 %v3875, 0.99998456
        %v4068 = vadd.f32 %v3876, 0.99998456
        %v4069 = vadd.f32 %v3877, 0.99998456
        %v4070 = vadd.f32 %v3878, 0.99998456
        %v4071 = vadd.f32 %v3879, 0.99998456
        %v4072 = vadd.f32 %v3880, 0.99998456
        %v4073 = vadd.f32 %v3881, 0.99998456
        %v4074 = vadd.f32 %v3882, 0.99998456
        %v4075 = vadd.f32 %v3883, 0.99998456
        %v4076 = vadd.f32 %v3884, 0.99998456
        %v4077 = vadd.f32 %v3885, 0.99998456
        %v4078 = vadd.f32 %v3886, 0.99998456
        %v4079 = vadd.f32 %v3887, 0.99998456
        %v4080 = vadd.f32 %v3888, 0.99998456
        %v4081 = vadd.f32 %v3889, 0.99998456
        %v4082 = vadd.f32 %v3890, 0.99998456
        %v4083 = vadd.f32 %v3891, 0.99998456
        %v4084 = vadd.f32 %v3892, 0.99998456
        %v4085 = vadd.f32 %v3893, 0.99998456
        %v4086 = vadd.f32 %v3894, 0.99998456
        %v4087 = vadd.f32 %v3895, 0.99998456
        %v4088 = vadd.f32 %v3896, 0.99998456
        %v4089 = vadd.f32 %v3897, 0.99998456
        %v4090 = vadd.f32 %v3898, 0.99998456
        %v4091 = vadd.f32 %v3899, 0.99998456
        %v4092 = vadd.f32 %v3900, 0.99998456
        %v4093 = vadd.f32 %v3901, 0.99998456
        %v4094 = vadd.f32 %v3902, 0.99998456
        %v4095 = vadd.f32 %v3903, 0.99998456
        %v4096 = vadd.f32 %v3904, 0.99998456
        %v4097 = vadd.f32 %v3905, 0.99998456
        %v4098 = vadd.f32 %v3906, 0.99998456
        %v4099 = vadd.f32 %v3907, 0.99998456
        %v4100 = vadd.f32 %v3908, 0.99998456
        %v4101 = vadd.f32 %v3909, 0.99998456
        %v4102 = vadd.f32 %v3910, 0.99998456
        %v4103 = vadd.f32 %v3911, 0.99998456
        %v4104 = vadd.f32 %v3912, 0.99998456
        %v4105 = vadd.f32 %v3913, 0.99998456
        %v4106 = vadd.f32 %v3914, 0.99998456
        %v4107 = vadd.f32 %v3915, 0.99998456
        %v4108 = vadd.f32 %v3916, 0.99998456
        %v4109 = vadd.f32 %v3917, 0.99998456
        %v4110 = vadd.f32 %v3918, 0.99998456
        %v4111 = vadd.f32 %v3919, 0.99998456
        %v4112 = vadd.f32 %v3920, 0.99998456
        %v4113 = vadd.f32 %v3921, 0.99998456
        %v4114 = vadd.f32 %v3922, 0.99998456
        %v4115 = vadd.f32 %v3923, 0.99998456
        %v4116 = vadd.f32 %v3924, 0.99998456
        %v4117 = vadd.f32 %v3925, 0.99998456
        %v4118 = vadd.f32 %v3926, 0.99998456
        %v4119 = vadd.f32 %v3927, 0.99998456
        %v4120 = vadd.f32 %v3928, 0.99998456
        %v4121 = vadd.f32 %v3929, 0.99998456
        %v4122 = vadd.f32 %v3930, 0.99998456
        %v4123 = vadd.f32 %v3931, 0.99998456
        %v4124 = vadd.f32 %v3932, 0.99998456
        %v4125 = vadd.f32 %v3933, 0.99998456
        %v4126 = vadd.f32 %v3934, 0.99998456
        %v4127 = vadd.f32 %v3935, 0.99998456
        %v4128 = vadd.f32 %v3936, 0.99998456
        %v4129 = vadd.f32 %v3937, 0.99998456
        %v4130 = vadd.f32 %v3938, 0.99998456
        %v4131 = vadd.f32 %v3939, 0.99998456
        %v4132 = vadd.f32 %v3940, 0.99998456
        %v4133 = vadd.f32 %v3941, 0.99998456
        %v4134 = vadd.f32 %v3942, 0.99998456
        %v4135 = vadd.f32 %v3943, 0.99998456
        %v4136 = vadd.f32 %v3944, 0.99998456
        %v4137 = vadd.f32 %v3945, 0.99998456
        %v4138 = vadd.f32 %v3946, 0.99998456
        %v4139 = vadd.f32 %v3947, 0.99998456
        %v4140 = vadd.f32 %v3948, 0.99998456
        %v4141 = vadd.f32 %v3949, 0.99998456
        %v4142 = vadd.f32 %v3950, 0.99998456
        %v4143 = vadd.f32 %v3951, 0.99998456
        %v4144 = vadd.f32 %v3952, 0.99998456
        %v4145 = vadd.f32 %v3953, 0.99998456
        %v4146 = vadd.f32 %v3954, 0.99998456
        %v4147 = vadd.f32 %v3955, 0.99998456
        %v4148 = vadd.f32 %v3956, 0.99998456
        %v4149 = vadd.f32 %v3957, 0.99998456
        %v4150 = vadd.f32 %v3958, 0.99998456
        %v4151 = vadd.f32 %v3959, 0.99998456
        %v4152 = vadd.f32 %v3960, 0.99998456
        %v4153 = vadd.f32 %v3961, 0.99998456
        %v4154 = vadd.f32 %v3962, 0.99998456
        %v4155 = vadd.f32 %v3963, 0.99998456
        %v4156 = vadd.f32 %v3964, 0.99998456
        %v4157 = vadd.f32 %v3965, 0.99998456
        %v4158 = vadd.f32 %v3966, 0.99998456
        %v4159 = vadd.f32 %v3967, 0.99998456
        %v4160 = vadd.f32 %v3968, 0.99998456
        %v4161 = vadd.f32 %v3969, 0.99998456
        %v4162 = vadd.f32 %v3970, 0.99998456
        %v4163 = vadd.f32 %v3971, 0.99998456
        %v4164 = vadd.f32 %v3972, 0.99998456
        %v4165 = vadd.f32 %v3973, 0.99998456
        %v4166 = vadd.f32 %v3974, 0.99998456
        %v4167 = vadd.f32 %v3975, 0.99998456
        %v4168 = vadd.f32 %v3976, 0.99998456
        %v4169 = vadd.f32 %v3977, 0.99998456
        %v4170 = vadd.f32 %v3978, 0.99998456
        %v4171 = vadd.f32 %v3979, 0.99998456
        %v4172 = vadd.f32 %v3980, 0.99998456
        %v4173 = vadd.f32 %v3981, 0.99998456
        %v4174 = vadd.f32 %v3982, 0.99998456
        %v4175 = vadd.f32 %v3983, 0.99998456
        %v4176 = vadd.f32 %v3984, 0.99998456
        %v4177 = vadd.f32 %v3985, 0.99998456
        %v4178 = vadd.f32 %v3986, 0.99998456
        %v4179 = vadd.f32 %v3987, 0.99998456
        %v4180 = vadd.f32 %v3988, 0.99998456
        %v4181 = vadd.f32 %v3989, 0.99998456
        %v4182 = vadd.f32 %v3990, 0.99998456
        %v4183 = vadd.f32 %v3991, 0.99998456
        %v4184 = vadd.f32 %v3992, 0.99998456
        %v4185 = vadd.f32 %v3993, 0.99998456
        %v4186 = vadd.f32 %v3994, 0.99998456
        %v4187 = vadd.f32 %v3995, 0.99998456
        %v4188 = vadd.f32 %v3996, 0.99998456
        %v4189 = vadd.f32 %v3997, 0.99998456
        %v4190 = vadd.f32 %v3998, 0.99998456
        %v4191 = vadd.f32 %v3999, 0.99998456
        %v4192 = vadd.f32 %v4000, 0.99998456
        %v4193 = vadd.f32 %v4001, 0.99998456
        %v4194 = vadd.f32 %v4002, 0.99998456
        %v4195 = vadd.f32 %v4003, 0.99998456
        %v4196 = vadd.f32 %v4004, 0.99998456
        %v4197 = vadd.f32 %v4005, 0.99998456
        %v4198 = vadd.f32 %v4006, 0.99998456
        %v4199 = vadd.f32 %v4007, 0.99998456
        %v4200 = vadd.f32 %v4008, 0.99998456
        %v4201 = vadd.f32 %v4009, 0.99998456
        %v4202 = vadd.f32 %v4010, 0.99998456
        %v4203 = vadd.f32 %v4011, 0.99998456
        %v4204 = vadd.f32 %v4012, 0.99998456
        %v4205 = vadd.f32 %v4013, 0.99998456
        %v4206 = vadd.f32 %v4014, 0.99998456
        %v4207 = vadd.f32 %v4015, 0.99998456
        %v4208 = vadd.f32 %v4016, 0.99998456
        %v4209 = vadd.f32 %v4017, 0.99998456
        %v4210 = vadd.f32 %v4018, 0.99998456
        %v4211 = vadd.f32 %v4019, 0.99998456
        %v4212 = vadd.f32 %v4020, 0.99998456
        %v4213 = vadd.f32 %v4021, 0.99998456
        %v4214 = vadd.f32 %v4022, 0.99998456
        %v4215 = vadd.f32 %v4023, 0.99998456
        %v4216 = vmul.f32 %v4024, %v2296
        %v4217 = vmul.f32 %v4025, %v2297
        %v4218 = vmul.f32 %v4026, %v2298
        %v4219 = vmul.f32 %v4027, %v2299
        %v4220 = vmul.f32 %v4028, %v2300
        %v4221 = vmul.f32 %v4029, %v2301
        %v4222 = vmul.f32 %v4030, %v2302
        %v4223 = vmul.f32 %v4031, %v2303
        %v4224 = vmul.f32 %v4032, %v2304
        %v4225 = vmul.f32 %v4033, %v2305
        %v4226 = vmul.f32 %v4034, %v2306
        %v4227 = vmul.f32 %v4035, %v2307
        %v4228 = vmul.f32 %v4036, %v2308
        %v4229 = vmul.f32 %v4037, %v2309
        %v4230 = vmul.f32 %v4038, %v2310
        %v4231 = vmul.f32 %v4039, %v2311
        %v4232 = vmul.f32 %v4040, %v2312
        %v4233 = vmul.f32 %v4041, %v2313
        %v4234 = vmul.f32 %v4042, %v2314
        %v4235 = vmul.f32 %v4043, %v2315
        %v4236 = vmul.f32 %v4044, %v2316
        %v4237 = vmul.f32 %v4045, %v2317
        %v4238 = vmul.f32 %v4046, %v2318
        %v4239 = vmul.f32 %v4047, %v2319
        %v4240 = vmul.f32 %v4048, %v2320
        %v4241 = vmul.f32 %v4049, %v2321
        %v4242 = vmul.f32 %v4050, %v2322
        %v4243 = vmul.f32 %v4051, %v2323
        %v4244 = vmul.f32 %v4052, %v2324
        %v4245 = vmul.f32 %v4053, %v2325
        %v4246 = vmul.f32 %v4054, %v2326
        %v4247 = vmul.f32 %v4055, %v2327
        %v4248 = vmul.f32 %v4056, %v2328
        %v4249 = vmul.f32 %v4057, %v2329
        %v4250 = vmul.f32 %v4058, %v2330
        %v4251 = vmul.f32 %v4059, %v2331
        %v4252 = vmul.f32 %v4060, %v2332
        %v4253 = vmul.f32 %v4061, %v2333
        %v4254 = vmul.f32 %v4062, %v2334
        %v4255 = vmul.f32 %v4063, %v2335
        %v4256 = vmul.f32 %v4064, %v2336
        %v4257 = vmul.f32 %v4065, %v2337
        %v4258 = vmul.f32 %v4066, %v2338
        %v4259 = vmul.f32 %v4067, %v2339
        %v4260 = vmul.f32 %v4068, %v2340
        %v4261 = vmul.f32 %v4069, %v2341
        %v4262 = vmul.f32 %v4070, %v2342
        %v4263 = vmul.f32 %v4071, %v2343
        %v4264 = vmul.f32 %v4072, %v2344
        %v4265 = vmul.f32 %v4073, %v2345
        %v4266 = vmul.f32 %v4074, %v2346
        %v4267 = vmul.f32 %v4075, %v2347
        %v4268 = vmul.f32 %v4076, %v2348
        %v4269 = vmul.f32 %v4077, %v2349
        %v4270 = vmul.f32 %v4078, %v2350
        %v4271 = vmul.f32 %v4079, %v2351
        %v4272 = vmul.f32 %v4080, %v2352
        %v4273 = vmul.f32 %v4081, %v2353
        %v4274 = vmul.f32 %v4082, %v2354
        %v4275 = vmul.f32 %v4083, %v2355
        %v4276 = vmul.f32 %v4084, %v2356
        %v4277 = vmul.f32 %v4085, %v2357
        %v4278 = vmul.f32 %v4086, %v2358
        %v4279 = vmul.f32 %v4087, %v2359
        %v4280 = vmul.f32 %v4088, %v2360
        %v4281 = vmul.f32 %v4089, %v2361
        %v4282 = vmul.f32 %v4090, %v2362
        %v4283 = vmul.f32 %v4091, %v2363
        %v4284 = vmul.f32 %v4092, %v2364
        %v4285 = vmul.f32 %v4093, %v2365
        %v4286 = vmul.f32 %v4094, %v2366
        %v4287 = vmul.f32 %v4095, %v2367
        %v4288 = vmul.f32 %v4096, %v2368
        %v4289 = vmul.f32 %v4097, %v2369
        %v4290 = vmul.f32 %v4098, %v2370
        %v4291 = vmul.f32 %v4099, %v2371
        %v4292 = vmul.f32 %v4100, %v2372
        %v4293 = vmul.f32 %v4101, %v2373
        %v4294 = vmul.f32 %v4102, %v2374
        %v4295 = vmul.f32 %v4103, %v2375
        %v4296 = vmul.f32 %v4104, %v2376
        %v4297 = vmul.f32 %v4105, %v2377
        %v4298 = vmul.f32 %v4106, %v2378
        %v4299 = vmul.f32 %v4107, %v2379
        %v4300 = vmul.f32 %v4108, %v2380
        %v4301 = vmul.f32 %v4109, %v2381
        %v4302 = vmul.f32 %v4110, %v2382
        %v4303 = vmul.f32 %v4111, %v2383
        %v4304 = vmul.f32 %v4112, %v2384
        %v4305 = vmul.f32 %v4113, %v2385
        %v4306 = vmul.f32 %v4114, %v2386
        %v4307 = vmul.f32 %v4115, %v2387
        %v4308 = vmul.f32 %v4116, %v2388
        %v4309 = vmul.f32 %v4117, %v2389
        %v4310 = vmul.f32 %v4118, %v2390
        %v4311 = vmul.f32 %v4119, %v2391
        %v4312 = vmul.f32 %v4120, %v2392
        %v4313 = vmul.f32 %v4121, %v2393
        %v4314 = vmul.f32 %v4122, %v2394
        %v4315 = vmul.f32 %v4123, %v2395
        %v4316 = vmul.f32 %v4124, %v2396
        %v4317 = vmul.f32 %v4125, %v2397
        %v4318 = vmul.f32 %v4126, %v2398
        %v4319 = vmul.f32 %v4127, %v2399
        %v4320 = vmul.f32 %v4128, %v2400
        %v4321 = vmul.f32 %v4129, %v2401
        %v4322 = vmul.f32 %v4130, %v2402
        %v4323 = vmul.f32 %v4131, %v2403
        %v4324 = vmul.f32 %v4132, %v2404
        %v4325 = vmul.f32 %v4133, %v2405
        %v4326 = vmul.f32 %v4134, %v2406
        %v4327 = vmul.f32 %v4135, %v2407
        %v4328 = vmul.f32 %v4136, %v2408
        %v4329 = vmul.f32 %v4137, %v2409
        %v4330 = vmul.f32 %v4138, %v2410
        %v4331 = vmul.f32 %v4139, %v2411
        %v4332 = vmul.f32 %v4140, %v2412
        %v4333 = vmul.f32 %v4141, %v2413
        %v4334 = vmul.f32 %v4142, %v2414
        %v4335 = vmul.f32 %v4143, %v2415
        %v4336 = vmul.f32 %v4144, %v2416
        %v4337 = vmul.f32 %v4145, %v2417
        %v4338 = vmul.f32 %v4146, %v2418
        %v4339 = vmul.f32 %v4147, %v2419
        %v4340 = vmul.f32 %v4148, %v2420
        %v4341 = vmul.f32 %v4149, %v2421
        %v4342 = vmul.f32 %v4150, %v2422
        %v4343 = vmul.f32 %v4151, %v2423
        %v4344 = vmul.f32 %v4152, %v2424
        %v4345 = vmul.f32 %v4153, %v2425
        %v4346 = vmul.f32 %v4154, %v2426
        %v4347 = vmul.f32 %v4155, %v2427
        %v4348 = vmul.f32 %v4156, %v2428
        %v4349 = vmul.f32 %v4157, %v2429
        %v4350 = vmul.f32 %v4158, %v2430
        %v4351 = vmul.f32 %v4159, %v2431
        %v4352 = vmul.f32 %v4160, %v2432
        %v4353 = vmul.f32 %v4161, %v2433
        %v4354 = vmul.f32 %v4162, %v2434
        %v4355 = vmul.f32 %v4163, %v2435
        %v4356 = vmul.f32 %v4164, %v2436
        %v4357 = vmul.f32 %v4165, %v2437
        %v4358 = vmul.f32 %v4166, %v2438
        %v4359 = vmul.f32 %v4167, %v2439
        %v4360 = vmul.f32 %v4168, %v2440
        %v4361 = vmul.f32 %v4169, %v2441
        %v4362 = vmul.f32 %v4170, %v2442
        %v4363 = vmul.f32 %v4171, %v2443
        %v4364 = vmul.f32 %v4172, %v2444
        %v4365 = vmul.f32 %v4173, %v2445
        %v4366 = vmul.f32 %v4174, %v2446
        %v4367 = vmul.f32 %v4175, %v2447
        %v4368 = vmul.f32 %v4176, %v2448
        %v4369 = vmul.f32 %v4177, %v2449
        %v4370 = vmul.f32 %v4178, %v2450
        %v4371 = vmul.f32 %v4179, %v2451
        %v4372 = vmul.f32 %v4180, %v2452
        %v4373 = vmul.f32 %v4181, %v2453
        %v4374 = vmul.f32 %v4182, %v2454
        %v4375 = vmul.f32 %v4183, %v2455
        %v4376 = vmul.f32 %v4184, %v2456
        %v4377 = vmul.f32 %v4185, %v2457
        %v4378 = vmul.f32 %v4186, %v2458
        %v4379 = vmul.f32 %v4187, %v2459
        %v4380 = vmul.f32 %v4188, %v2460
        %v4381 = vmul.f32 %v4189, %v2461
        %v4382 = vmul.f32 %v4190, %v2462
        %v4383 = vmul.f32 %v4191, %v2463
        %v4384 = vmul.f32 %v4192, %v2464
        %v4385 = vmul.f32 %v4193, %v2465
        %v4386 = vmul.f32 %v4194, %v2466
        %v4387 = vmul.f32 %v4195, %v2467
        %v4388 = vmul.f32 %v4196, %v2468
        %v4389 = vmul.f32 %v4197, %v2469
        %v4390 = vmul.f32 %v4198, %v2470
        %v4391 = vmul.f32 %v4199, %v2471
        %v4392 = vmul.f32 %v4200, %v2472
        %v4393 = vmul.f32 %v4201, %v2473
        %v4394 = vmul.f32 %v4202, %v2474
        %v4395 = vmul.f32 %v4203, %v2475
        %v4396 = vmul.f32 %v4204, %v2476
        %v4397 = vmul.f32 %v4205, %v2477
        %v4398 = vmul.f32 %v4206, %v2478
        %v4399 = vmul.f32 %v4207, %v2479
        %v4400 = vmul.f32 %v4208, %v2480
        %v4401 = vmul.f32 %v4209, %v2481
        %v4402 = vmul.f32 %v4210, %v2482
        %v4403 = vmul.f32 %v4211, %v2483
        %v4404 = vmul.f32 %v4212, %v2484
        %v4405 = vmul.f32 %v4213, %v2485
        %v4406 = vmul.f32 %v4214, %v2486
        %v4407 = vmul.f32 %v4215, %v2487
        %v4408 = vpack.c.bf16 %v4222, %v4216
        %v4409 = vpack.c.bf16 %v4223, %v4217
        %v4410 = vpack.c.bf16 %v4234, %v4228
        %v4411 = vpack.c.bf16 %v4235, %v4229
        %v4412 = vpack.c.bf16 %v4246, %v4240
        %v4413 = vpack.c.bf16 %v4247, %v4241
        %v4414 = vpack.c.bf16 %v4258, %v4252
        %v4415 = vpack.c.bf16 %v4259, %v4253
        %v4416 = vpack.c.bf16 %v4270, %v4264
        %v4417 = vpack.c.bf16 %v4271, %v4265
        %v4418 = vpack.c.bf16 %v4282, %v4276
        %v4419 = vpack.c.bf16 %v4283, %v4277
        %v4420 = vpack.c.bf16 %v4294, %v4288
        %v4421 = vpack.c.bf16 %v4295, %v4289
        %v4422 = vpack.c.bf16 %v4306, %v4300
        %v4423 = vpack.c.bf16 %v4307, %v4301
        %v4424 = vpack.c.bf16 %v4318, %v4312
        %v4425 = vpack.c.bf16 %v4319, %v4313
        %v4426 = vpack.c.bf16 %v4330, %v4324
        %v4427 = vpack.c.bf16 %v4331, %v4325
        %v4428 = vpack.c.bf16 %v4342, %v4336
        %v4429 = vpack.c.bf16 %v4343, %v4337
        %v4430 = vpack.c.bf16 %v4354, %v4348
        %v4431 = vpack.c.bf16 %v4355, %v4349
        %v4432 = vpack.c.bf16 %v4366, %v4360
        %v4433 = vpack.c.bf16 %v4367, %v4361
        %v4434 = vpack.c.bf16 %v4378, %v4372
        %v4435 = vpack.c.bf16 %v4379, %v4373
        %v4436 = vpack.c.bf16 %v4390, %v4384
        %v4437 = vpack.c.bf16 %v4391, %v4385
        %v4438 = vpack.c.bf16 %v4402, %v4396
        %v4439 = vpack.c.bf16 %v4403, %v4397
        %v4440 = vld [vmem:[%s3] sm:$0xff]
        %v4441 = vld [vmem:[%s3 + $0x8] sm:$0xff]
        %v4442 = vld [vmem:[%s3 + $0x10] sm:$0xff]
        %v4443 = vld [vmem:[%s3 + $0x18] sm:$0xff]
        %v4444 = vld [vmem:[%s3 + $0x20] sm:$0xff]
        %v4445 = vld [vmem:[%s3 + $0x28] sm:$0xff]
        %v4446 = vld [vmem:[%s3 + $0x30] sm:$0xff]
        %v4447 = vld [vmem:[%s3 + $0x38] sm:$0xff]
        %v4448 = vld [vmem:[%s3 + $0x40] sm:$0xff]
        %v4449 = vld [vmem:[%s3 + $0x48] sm:$0xff]
        %v4450 = vld [vmem:[%s3 + $0x50] sm:$0xff]
        %v4451 = vld [vmem:[%s3 + $0x58] sm:$0xff]
        %v4452 = vld [vmem:[%s3 + $0x60] sm:$0xff]
        %v4453 = vld [vmem:[%s3 + $0x68] sm:$0xff]
        %v4454 = vld [vmem:[%s3 + $0x70] sm:$0xff]
        %v4455 = vld [vmem:[%s3 + $0x78] sm:$0xff]
        %v4456 = vld [vmem:[%s3 + $0x80] sm:$0xff]
        %v4457 = vld [vmem:[%s3 + $0x88] sm:$0xff]
        %v4458 = vld [vmem:[%s3 + $0x90] sm:$0xff]
        %v4459 = vld [vmem:[%s3 + $0x98] sm:$0xff]
        %v4460 = vld [vmem:[%s3 + $0xa0] sm:$0xff]
        %v4461 = vld [vmem:[%s3 + $0xa8] sm:$0xff]
        %v4462 = vld [vmem:[%s3 + $0xb0] sm:$0xff]
        %v4463 = vld [vmem:[%s3 + $0xb8] sm:$0xff]
        %v4464 = vld [vmem:[%s3 + $0xc0] sm:$0xff]
        %v4465 = vld [vmem:[%s3 + $0xc8] sm:$0xff]
        %v4466 = vld [vmem:[%s3 + $0xd0] sm:$0xff]
        %v4467 = vld [vmem:[%s3 + $0xd8] sm:$0xff]
        %v4468 = vld [vmem:[%s3 + $0xe0] sm:$0xff]
        %v4469 = vld [vmem:[%s3 + $0xe8] sm:$0xff]
        %v4470 = vld [vmem:[%s3 + $0xf0] sm:$0xff]
        %v4471 = vld [vmem:[%s3 + $0xf8] sm:$0xff]
        %v4472 = vld [vmem:[%s4] ss:$2 sm:$0x3]
        %v4474 = vlaneseq
        %v4475 = vshrl.u32 %v4474, 7
        %v4476 = vsub.s32 0, %v4475
        %v4477 = vrot.slane %v4472, %v4476
        %v4478 = vlaneseq
        %v4479 = vshrl.u32 %v4478, 7
        %v4480 = vsub.s32 1, %v4479
        %v4481 = vrot.slane %v4472, %v4480
        %v4516 = vunpack.c.l.b16 %v4440
        %v4517 = vunpack.c.h.b16 %v4440
        %v4518 = vunpack.c.l.b16 %v4441
        %v4519 = vunpack.c.h.b16 %v4441
        %v4520 = vunpack.c.l.b16 %v4442
        %v4521 = vunpack.c.h.b16 %v4442
        %v4522 = vunpack.c.l.b16 %v4443
        %v4523 = vunpack.c.h.b16 %v4443
        %v4524 = vunpack.c.l.b16 %v4444
        %v4525 = vunpack.c.h.b16 %v4444
        %v4526 = vunpack.c.l.b16 %v4445
        %v4527 = vunpack.c.h.b16 %v4445
        %v4528 = vunpack.c.l.b16 %v4446
        %v4529 = vunpack.c.h.b16 %v4446
        %v4530 = vunpack.c.l.b16 %v4447
        %v4531 = vunpack.c.h.b16 %v4447
        %v4532 = vunpack.c.l.b16 %v4448
        %v4533 = vunpack.c.h.b16 %v4448
        %v4534 = vunpack.c.l.b16 %v4449
        %v4535 = vunpack.c.h.b16 %v4449
        %v4536 = vunpack.c.l.b16 %v4450
        %v4537 = vunpack.c.h.b16 %v4450
        %v4538 = vunpack.c.l.b16 %v4451
        %v4539 = vunpack.c.h.b16 %v4451
        %v4540 = vunpack.c.l.b16 %v4452
        %v4541 = vunpack.c.h.b16 %v4452
        %v4542 = vunpack.c.l.b16 %v4453
        %v4543 = vunpack.c.h.b16 %v4453
        %v4544 = vunpack.c.l.b16 %v4454
        %v4545 = vunpack.c.h.b16 %v4454
        %v4546 = vunpack.c.l.b16 %v4455
        %v4547 = vunpack.c.h.b16 %v4455
        %v4548 = vunpack.c.l.b16 %v4456
        %v4549 = vunpack.c.h.b16 %v4456
        %v4550 = vunpack.c.l.b16 %v4457
        %v4551 = vunpack.c.h.b16 %v4457
        %v4552 = vunpack.c.l.b16 %v4458
        %v4553 = vunpack.c.h.b16 %v4458
        %v4554 = vunpack.c.l.b16 %v4459
        %v4555 = vunpack.c.h.b16 %v4459
        %v4556 = vunpack.c.l.b16 %v4460
        %v4557 = vunpack.c.h.b16 %v4460
        %v4558 = vunpack.c.l.b16 %v4461
        %v4559 = vunpack.c.h.b16 %v4461
        %v4560 = vunpack.c.l.b16 %v4462
        %v4561 = vunpack.c.h.b16 %v4462
        %v4562 = vunpack.c.l.b16 %v4463
        %v4563 = vunpack.c.h.b16 %v4463
        %v4564 = vunpack.c.l.b16 %v4464
        %v4565 = vunpack.c.h.b16 %v4464
        %v4566 = vunpack.c.l.b16 %v4465
        %v4567 = vunpack.c.h.b16 %v4465
        %v4568 = vunpack.c.l.b16 %v4466
        %v4569 = vunpack.c.h.b16 %v4466
        %v4570 = vunpack.c.l.b16 %v4467
        %v4571 = vunpack.c.h.b16 %v4467
        %v4572 = vunpack.c.l.b16 %v4468
        %v4573 = vunpack.c.h.b16 %v4468
        %v4574 = vunpack.c.l.b16 %v4469
        %v4575 = vunpack.c.h.b16 %v4469
        %v4576 = vunpack.c.l.b16 %v4470
        %v4577 = vunpack.c.h.b16 %v4470
        %v4578 = vunpack.c.l.b16 %v4471
        %v4579 = vunpack.c.h.b16 %v4471
        %v4580 = vpack.c.b16 %v4518, %v4516
        %v4581 = vpack.c.b16 %v4519, %v4517
        %v4582 = vpack.c.b16 %v4522, %v4520
        %v4583 = vpack.c.b16 %v4523, %v4521
        %v4584 = vpack.c.b16 %v4526, %v4524
        %v4585 = vpack.c.b16 %v4527, %v4525
        %v4586 = vpack.c.b16 %v4530, %v4528
        %v4587 = vpack.c.b16 %v4531, %v4529
        %v4588 = vpack.c.b16 %v4534, %v4532
        %v4589 = vpack.c.b16 %v4535, %v4533
        %v4590 = vpack.c.b16 %v4538, %v4536
        %v4591 = vpack.c.b16 %v4539, %v4537
        %v4592 = vpack.c.b16 %v4542, %v4540
        %v4593 = vpack.c.b16 %v4543, %v4541
        %v4594 = vpack.c.b16 %v4546, %v4544
        %v4595 = vpack.c.b16 %v4547, %v4545
        %v4596 = vpack.c.b16 %v4550, %v4548
        %v4597 = vpack.c.b16 %v4551, %v4549
        %v4598 = vpack.c.b16 %v4554, %v4552
        %v4599 = vpack.c.b16 %v4555, %v4553
        %v4600 = vpack.c.b16 %v4558, %v4556
        %v4601 = vpack.c.b16 %v4559, %v4557
        %v4602 = vpack.c.b16 %v4562, %v4560
        %v4603 = vpack.c.b16 %v4563, %v4561
        %v4604 = vpack.c.b16 %v4566, %v4564
        %v4605 = vpack.c.b16 %v4567, %v4565
        %v4606 = vpack.c.b16 %v4570, %v4568
        %v4607 = vpack.c.b16 %v4571, %v4569
        %v4608 = vpack.c.b16 %v4574, %v4572
        %v4609 = vpack.c.b16 %v4575, %v4573
        %v4610 = vpack.c.b16 %v4578, %v4576
        %v4611 = vpack.c.b16 %v4579, %v4577
        %4644 = vmatprep.subr.bf16.mxu0 %v4581
        %4645 = vmatpush1.bf16.msra.mxu0 %v4580
        %4646 = vmatprep.subr.bf16.mxu0 %v4583
        %4647 = vmatpush1.bf16.msra.mxu0 %v4582
        %4648 = vmatprep.subr.bf16.mxu0 %v4585
        %4649 = vmatpush1.bf16.msra.mxu0 %v4584
        %4650 = vmatprep.subr.bf16.mxu0 %v4587
        %4651 = vmatpush1.bf16.msra.mxu0 %v4586
        %4652 = vmatprep.subr.bf16.mxu0 %v4589
        %4653 = vmatpush1.bf16.msra.mxu0 %v4588
        %4654 = vmatprep.subr.bf16.mxu0 %v4591
        %4655 = vmatpush1.bf16.msra.mxu0 %v4590
        %4656 = vmatprep.subr.bf16.mxu0 %v4593
        %4657 = vmatpush1.bf16.msra.mxu0 %v4592
        %4658 = vmatprep.subr.bf16.mxu0 %v4595
        %4659 = vmatpush1.bf16.msra.mxu0 %v4594
        %4660 = vmatprep.subr.bf16.mxu0 %v4597
        %4661 = vmatpush1.bf16.msra.mxu0 %v4596
        %4662 = vmatprep.subr.bf16.mxu0 %v4599
        %4663 = vmatpush1.bf16.msra.mxu0 %v4598
        %4664 = vmatprep.subr.bf16.mxu0 %v4601
        %4665 = vmatpush1.bf16.msra.mxu0 %v4600
        %4666 = vmatprep.subr.bf16.mxu0 %v4603
        %4667 = vmatpush1.bf16.msra.mxu0 %v4602
        %4668 = vmatprep.subr.bf16.mxu0 %v4605
        %4669 = vmatpush1.bf16.msra.mxu0 %v4604
        %4670 = vmatprep.subr.bf16.mxu0 %v4607
        %4671 = vmatpush1.bf16.msra.mxu0 %v4606
        %4672 = vmatprep.subr.bf16.mxu0 %v4609
        %4673 = vmatpush1.bf16.msra.mxu0 %v4608
        %4674 = vmatprep.subr.bf16.mxu0 %v4611
        %4675 = vmatpush1.bf16.msra.mxu0 %v4610
        %4676 = vmatprep.mubr.bf16.mxu0 %v4409
        %4677 = vmatmul.mubr.bf16.gmra.mrb[0].mxu0 %v4408
        %v4678 = vpop.f32.mrb[0].mxu0
        %v4679 = vadd.f32 %v4477, %v4678
        %v4680 = vpop.f32.mrb[0].mxu0
        %v4681 = vadd.f32 %v4481, %v4680
        %v4682 = vpop.f32.mrb[0].mxu0
        %v4683 = vadd.f32 %v4477, %v4682
        %v4684 = vpop.f32.mrb[0].mxu0
        %v4685 = vadd.f32 %v4481, %v4684
        %4686 = vmatprep.mubr.bf16.mxu0 %v4411
        %4687 = vmatmul.mubr.bf16.gmra.mrb[0].mxu0 %v4410
        %v4688 = vpop.f32.mrb[0].mxu0
        %v4689 = vadd.f32 %v4477, %v4688
        %v4690 = vpop.f32.mrb[0].mxu0
        %v4691 = vadd.f32 %v4481, %v4690
        %v4692 = vpop.f32.mrb[0].mxu0
        %v4693 = vadd.f32 %v4477, %v4692
        %v4694 = vpop.f32.mrb[0].mxu0
        %v4695 = vadd.f32 %v4481, %v4694
        %4696 = vmatprep.mubr.bf16.mxu0 %v4413
        %4697 = vmatmul.mubr.bf16.gmra.mrb[0].mxu0 %v4412
        %v4698 = vpop.f32.mrb[0].mxu0
        %v4699 = vadd.f32 %v4477, %v4698
        %v4700 = vpop.f32.mrb[0].mxu0
        %v4701 = vadd.f32 %v4481, %v4700
        %v4702 = vpop.f32.mrb[0].mxu0
        %v4703 = vadd.f32 %v4477, %v4702
        %v4704 = vpop.f32.mrb[0].mxu0
        %v4705 = vadd.f32 %v4481, %v4704
        %4706 = vmatprep.mubr.bf16.mxu0 %v4415
        %4707 = vmatmul.mubr.bf16.gmra.mrb[0].mxu0 %v4414
        %v4708 = vpop.f32.mrb[0].mxu0
        %v4709 = vadd.f32 %v4477, %v4708
        %v4710 = vpop.f32.mrb[0].mxu0
        %v4711 = vadd.f32 %v4481, %v4710
        %v4712 = vpop.f32.mrb[0].mxu0
        %v4713 = vadd.f32 %v4477, %v4712
        %v4714 = vpop.f32.mrb[0].mxu0
        %v4715 = vadd.f32 %v4481, %v4714
        %4716 = vmatprep.mubr.bf16.mxu0 %v4417
        %4717 = vmatmul.mubr.bf16.gmra.mrb[0].mxu0 %v4416
        %v4718 = vpop.f32.mrb[0].mxu0
        %v4719 = vadd.f32 %v4477, %v4718
        %v4720 = vpop.f32.mrb[0].mxu0
        %v4721 = vadd.f32 %v4481, %v4720
        %v4722 = vpop.f32.mrb[0].mxu0
        %v4723 = vadd.f32 %v4477, %v4722
        %v4724 = vpop.f32.mrb[0].mxu0
        %v4725 = vadd.f32 %v4481, %v4724
        %4726 = vmatprep.mubr.bf16.mxu0 %v4419
        %4727 = vmatmul.mubr.bf16.gmra.mrb[0].mxu0 %v4418
        %v4728 = vpop.f32.mrb[0].mxu0
        %v4729 = vadd.f32 %v4477, %v4728
        %v4730 = vpop.f32.mrb[0].mxu0
        %v4731 = vadd.f32 %v4481, %v4730
        %v4732 = vpop.f32.mrb[0].mxu0
        %v4733 = vadd.f32 %v4477, %v4732
        %v4734 = vpop.f32.mrb[0].mxu0
        %v4735 = vadd.f32 %v4481, %v4734
        %4736 = vmatprep.mubr.bf16.mxu0 %v4421
        %4737 = vmatmul.mubr.bf16.gmra.mrb[0].mxu0 %v4420
        %v4738 = vpop.f32.mrb[0].mxu0
        %v4739 = vadd.f32 %v4477, %v4738
        %v4740 = vpop.f32.mrb[0].mxu0
        %v4741 = vadd.f32 %v4481, %v4740
        %v4742 = vpop.f32.mrb[0].mxu0
        %v4743 = vadd.f32 %v4477, %v4742
        %v4744 = vpop.f32.mrb[0].mxu0
        %v4745 = vadd.f32 %v4481, %v4744
        %4746 = vmatprep.mubr.bf16.mxu0 %v4423
        %4747 = vmatmul.mubr.bf16.gmra.mrb[0].mxu0 %v4422
        %v4748 = vpop.f32.mrb[0].mxu0
        %v4749 = vadd.f32 %v4477, %v4748
        %v4750 = vpop.f32.mrb[0].mxu0
        %v4751 = vadd.f32 %v4481, %v4750
        %v4752 = vpop.f32.mrb[0].mxu0
        %v4753 = vadd.f32 %v4477, %v4752
        %v4754 = vpop.f32.mrb[0].mxu0
        %v4755 = vadd.f32 %v4481, %v4754
        %4756 = vmatprep.mubr.bf16.mxu0 %v4425
        %4757 = vmatmul.mubr.bf16.gmra.mrb[0].mxu0 %v4424
        %v4758 = vpop.f32.mrb[0].mxu0
        %v4759 = vadd.f32 %v4477, %v4758
        %v4760 = vpop.f32.mrb[0].mxu0
        %v4761 = vadd.f32 %v4481, %v4760
        %v4762 = vpop.f32.mrb[0].mxu0
        %v4763 = vadd.f32 %v4477, %v4762
        %v4764 = vpop.f32.mrb[0].mxu0
        %v4765 = vadd.f32 %v4481, %v4764
        %4766 = vmatprep.mubr.bf16.mxu0 %v4427
        %4767 = vmatmul.mubr.bf16.gmra.mrb[0].mxu0 %v4426
        %v4768 = vpop.f32.mrb[0].mxu0
        %v4769 = vadd.f32 %v4477, %v4768
        %v4770 = vpop.f32.mrb[0].mxu0
        %v4771 = vadd.f32 %v4481, %v4770
        %v4772 = vpop.f32.mrb[0].mxu0
        %v4773 = vadd.f32 %v4477, %v4772
        %v4774 = vpop.f32.mrb[0].mxu0
        %v4775 = vadd.f32 %v4481, %v4774
        %4776 = vmatprep.mubr.bf16.mxu0 %v4429
        %4777 = vmatmul.mubr.bf16.gmra.mrb[0].mxu0 %v4428
        %v4778 = vpop.f32.mrb[0].mxu0
        %v4779 = vadd.f32 %v4477, %v4778
        %v4780 = vpop.f32.mrb[0].mxu0
        %v4781 = vadd.f32 %v4481, %v4780
        %v4782 = vpop.f32.mrb[0].mxu0
        %v4783 = vadd.f32 %v4477, %v4782
        %v4784 = vpop.f32.mrb[0].mxu0
        %v4785 = vadd.f32 %v4481, %v4784
        %4786 = vmatprep.mubr.bf16.mxu0 %v4431
        %4787 = vmatmul.mubr.bf16.gmra.mrb[0].mxu0 %v4430
        %v4788 = vpop.f32.mrb[0].mxu0
        %v4789 = vadd.f32 %v4477, %v4788
        %v4790 = vpop.f32.mrb[0].mxu0
        %v4791 = vadd.f32 %v4481, %v4790
        %v4792 = vpop.f32.mrb[0].mxu0
        %v4793 = vadd.f32 %v4477, %v4792
        %v4794 = vpop.f32.mrb[0].mxu0
        %v4795 = vadd.f32 %v4481, %v4794
        %4796 = vmatprep.mubr.bf16.mxu0 %v4433
        %4797 = vmatmul.mubr.bf16.gmra.mrb[0].mxu0 %v4432
        %v4798 = vpop.f32.mrb[0].mxu0
        %v4799 = vadd.f32 %v4477, %v4798
        %v4800 = vpop.f32.mrb[0].mxu0
        %v4801 = vadd.f32 %v4481, %v4800
        %v4802 = vpop.f32.mrb[0].mxu0
        %v4803 = vadd.f32 %v4477, %v4802
        %v4804 = vpop.f32.mrb[0].mxu0
        %v4805 = vadd.f32 %v4481, %v4804
        %4806 = vmatprep.mubr.bf16.mxu0 %v4435
        %4807 = vmatmul.mubr.bf16.gmra.mrb[0].mxu0 %v4434
        %v4808 = vpop.f32.mrb[0].mxu0
        %v4809 = vadd.f32 %v4477, %v4808
        %v4810 = vpop.f32.mrb[0].mxu0
        %v4811 = vadd.f32 %v4481, %v4810
        %v4812 = vpop.f32.mrb[0].mxu0
        %v4813 = vadd.f32 %v4477, %v4812
        %v4814 = vpop.f32.mrb[0].mxu0
        %v4815 = vadd.f32 %v4481, %v4814
        %4816 = vmatprep.mubr.bf16.mxu0 %v4437
        %4817 = vmatmul.mubr.bf16.gmra.mrb[0].mxu0 %v4436
        %v4818 = vpop.f32.mrb[0].mxu0
        %v4819 = vadd.f32 %v4477, %v4818
        %v4820 = vpop.f32.mrb[0].mxu0
        %v4821 = vadd.f32 %v4481, %v4820
        %v4822 = vpop.f32.mrb[0].mxu0
        %v4823 = vadd.f32 %v4477, %v4822
        %v4824 = vpop.f32.mrb[0].mxu0
        %v4825 = vadd.f32 %v4481, %v4824
        %4826 = vmatprep.mubr.bf16.mxu0 %v4439
        %4827 = vmatmul.mubr.bf16.gmra.mrb[0].mxu0 %v4438
        %v4828 = vpop.f32.mrb[0].mxu0
        %v4829 = vadd.f32 %v4477, %v4828
        %v4830 = vpop.f32.mrb[0].mxu0
        %v4831 = vadd.f32 %v4481, %v4830
        %v4832 = vpop.f32.mrb[0].mxu0
        %v4833 = vadd.f32 %v4477, %v4832
        %v4834 = vpop.f32.mrb[0].mxu0
        %v4835 = vadd.f32 %v4481, %v4834
        %4836 = vdwg.mxu0
        %v4837 = vmul.f32 %v4218, %v4679
        %v4838 = vmul.f32 %v4219, %v4681
        %v4839 = vmul.f32 %v4224, %v4683
        %v4840 = vmul.f32 %v4225, %v4685
        %v4841 = vmul.f32 %v4230, %v4689
        %v4842 = vmul.f32 %v4231, %v4691
        %v4843 = vmul.f32 %v4236, %v4693
        %v4844 = vmul.f32 %v4237, %v4695
        %v4845 = vmul.f32 %v4242, %v4699
        %v4846 = vmul.f32 %v4243, %v4701
        %v4847 = vmul.f32 %v4248, %v4703
        %v4848 = vmul.f32 %v4249, %v4705
        %v4849 = vmul.f32 %v4254, %v4709
        %v4850 = vmul.f32 %v4255, %v4711
        %v4851 = vmul.f32 %v4260, %v4713
        %v4852 = vmul.f32 %v4261, %v4715
        %v4853 = vmul.f32 %v4266, %v4719
        %v4854 = vmul.f32 %v4267, %v4721
        %v4855 = vmul.f32 %v4272, %v4723
        %v4856 = vmul.f32 %v4273, %v4725
        %v4857 = vmul.f32 %v4278, %v4729
        %v4858 = vmul.f32 %v4279, %v4731
        %v4859 = vmul.f32 %v4284, %v4733
        %v4860 = vmul.f32 %v4285, %v4735
        %v4861 = vmul.f32 %v4290, %v4739
        %v4862 = vmul.f32 %v4291, %v4741
        %v4863 = vmul.f32 %v4296, %v4743
        %v4864 = vmul.f32 %v4297, %v4745
        %v4865 = vmul.f32 %v4302, %v4749
        %v4866 = vmul.f32 %v4303, %v4751
        %v4867 = vmul.f32 %v4308, %v4753
        %v4868 = vmul.f32 %v4309, %v4755
        %v4869 = vmul.f32 %v4314, %v4759
        %v4870 = vmul.f32 %v4315, %v4761
        %v4871 = vmul.f32 %v4320, %v4763
        %v4872 = vmul.f32 %v4321, %v4765
        %v4873 = vmul.f32 %v4326, %v4769
        %v4874 = vmul.f32 %v4327, %v4771
        %v4875 = vmul.f32 %v4332, %v4773
        %v4876 = vmul.f32 %v4333, %v4775
        %v4877 = vmul.f32 %v4338, %v4779
        %v4878 = vmul.f32 %v4339, %v4781
        %v4879 = vmul.f32 %v4344, %v4783
        %v4880 = vmul.f32 %v4345, %v4785
        %v4881 = vmul.f32 %v4350, %v4789
        %v4882 = vmul.f32 %v4351, %v4791
        %v4883 = vmul.f32 %v4356, %v4793
        %v4884 = vmul.f32 %v4357, %v4795
        %v4885 = vmul.f32 %v4362, %v4799
        %v4886 = vmul.f32 %v4363, %v4801
        %v4887 = vmul.f32 %v4368, %v4803
        %v4888 = vmul.f32 %v4369, %v4805
        %v4889 = vmul.f32 %v4374, %v4809
        %v4890 = vmul.f32 %v4375, %v4811
        %v4891 = vmul.f32 %v4380, %v4813
        %v4892 = vmul.f32 %v4381, %v4815
        %v4893 = vmul.f32 %v4386, %v4819
        %v4894 = vmul.f32 %v4387, %v4821
        %v4895 = vmul.f32 %v4392, %v4823
        %v4896 = vmul.f32 %v4393, %v4825
        %v4897 = vmul.f32 %v4398, %v4829
        %v4898 = vmul.f32 %v4399, %v4831
        %v4899 = vmul.f32 %v4404, %v4833
        %v4900 = vmul.f32 %v4405, %v4835
        %v4901 = vpack.c.bf16 %v4839, %v4837
        %v4902 = vpack.c.bf16 %v4840, %v4838
        %v4903 = vpack.c.bf16 %v4843, %v4841
        %v4904 = vpack.c.bf16 %v4844, %v4842
        %v4905 = vpack.c.bf16 %v4847, %v4845
        %v4906 = vpack.c.bf16 %v4848, %v4846
        %v4907 = vpack.c.bf16 %v4851, %v4849
        %v4908 = vpack.c.bf16 %v4852, %v4850
        %v4909 = vpack.c.bf16 %v4855, %v4853
        %v4910 = vpack.c.bf16 %v4856, %v4854
        %v4911 = vpack.c.bf16 %v4859, %v4857
        %v4912 = vpack.c.bf16 %v4860, %v4858
        %v4913 = vpack.c.bf16 %v4863, %v4861
        %v4914 = vpack.c.bf16 %v4864, %v4862
        %v4915 = vpack.c.bf16 %v4867, %v4865
        %v4916 = vpack.c.bf16 %v4868, %v4866
        %v4917 = vpack.c.bf16 %v4871, %v4869
        %v4918 = vpack.c.bf16 %v4872, %v4870
        %v4919 = vpack.c.bf16 %v4875, %v4873
        %v4920 = vpack.c.bf16 %v4876, %v4874
        %v4921 = vpack.c.bf16 %v4879, %v4877
        %v4922 = vpack.c.bf16 %v4880, %v4878
        %v4923 = vpack.c.bf16 %v4883, %v4881
        %v4924 = vpack.c.bf16 %v4884, %v4882
        %v4925 = vpack.c.bf16 %v4887, %v4885
        %v4926 = vpack.c.bf16 %v4888, %v4886
        %v4927 = vpack.c.bf16 %v4891, %v4889
        %v4928 = vpack.c.bf16 %v4892, %v4890
        %v4929 = vpack.c.bf16 %v4895, %v4893
        %v4930 = vpack.c.bf16 %v4896, %v4894
        %v4931 = vpack.c.bf16 %v4899, %v4897
        %v4932 = vpack.c.bf16 %v4900, %v4898
        %s4933 = scalar_lea.vmem %s3, 256
        %v4934 = vld [vmem:[%s4933] sm:$0xff]
        %v4935 = vld [vmem:[%s4933 + $0x8] sm:$0xff]
        %v4936 = vld [vmem:[%s4933 + $0x10] sm:$0xff]
        %v4937 = vld [vmem:[%s4933 + $0x18] sm:$0xff]
        %v4938 = vld [vmem:[%s4933 + $0x20] sm:$0xff]
        %v4939 = vld [vmem:[%s4933 + $0x28] sm:$0xff]
        %v4940 = vld [vmem:[%s4933 + $0x30] sm:$0xff]
        %v4941 = vld [vmem:[%s4933 + $0x38] sm:$0xff]
        %v4942 = vld [vmem:[%s4933 + $0x40] sm:$0xff]
        %v4943 = vld [vmem:[%s4933 + $0x48] sm:$0xff]
        %v4944 = vld [vmem:[%s4933 + $0x50] sm:$0xff]
        %v4945 = vld [vmem:[%s4933 + $0x58] sm:$0xff]
        %v4946 = vld [vmem:[%s4933 + $0x60] sm:$0xff]
        %v4947 = vld [vmem:[%s4933 + $0x68] sm:$0xff]
        %v4948 = vld [vmem:[%s4933 + $0x70] sm:$0xff]
        %v4949 = vld [vmem:[%s4933 + $0x78] sm:$0xff]
        %v4950 = vld [vmem:[%s4933 + $0x80] sm:$0xff]
        %v4951 = vld [vmem:[%s4933 + $0x88] sm:$0xff]
        %v4952 = vld [vmem:[%s4933 + $0x90] sm:$0xff]
        %v4953 = vld [vmem:[%s4933 + $0x98] sm:$0xff]
        %v4954 = vld [vmem:[%s4933 + $0xa0] sm:$0xff]
        %v4955 = vld [vmem:[%s4933 + $0xa8] sm:$0xff]
        %v4956 = vld [vmem:[%s4933 + $0xb0] sm:$0xff]
        %v4957 = vld [vmem:[%s4933 + $0xb8] sm:$0xff]
        %v4958 = vld [vmem:[%s4933 + $0xc0] sm:$0xff]
        %v4959 = vld [vmem:[%s4933 + $0xc8] sm:$0xff]
        %v4960 = vld [vmem:[%s4933 + $0xd0] sm:$0xff]
        %v4961 = vld [vmem:[%s4933 + $0xd8] sm:$0xff]
        %v4962 = vld [vmem:[%s4933 + $0xe0] sm:$0xff]
        %v4963 = vld [vmem:[%s4933 + $0xe8] sm:$0xff]
        %v4964 = vld [vmem:[%s4933 + $0xf0] sm:$0xff]
        %v4965 = vld [vmem:[%s4933 + $0xf8] sm:$0xff]
        %s4966 = scalar_lea.vmem %s4, 1
        %v4967 = vld [vmem:[%s4966] ss:$2 sm:$0x3]
        %v4969 = vlaneseq
        %v4970 = vshrl.u32 %v4969, 7
        %v4971 = vsub.s32 0, %v4970
        %v4972 = vrot.slane %v4967, %v4971
        %v4973 = vlaneseq
        %v4974 = vshrl.u32 %v4973, 7
        %v4975 = vsub.s32 1, %v4974
        %v4976 = vrot.slane %v4967, %v4975
        %v5011 = vunpack.c.l.b16 %v4934
        %v5012 = vunpack.c.h.b16 %v4934
        %v5013 = vunpack.c.l.b16 %v4935
        %v5014 = vunpack.c.h.b16 %v4935
        %v5015 = vunpack.c.l.b16 %v4936
        %v5016 = vunpack.c.h.b16 %v4936
        %v5017 = vunpack.c.l.b16 %v4937
        %v5018 = vunpack.c.h.b16 %v4937
        %v5019 = vunpack.c.l.b16 %v4938
        %v5020 = vunpack.c.h.b16 %v4938
        %v5021 = vunpack.c.l.b16 %v4939
        %v5022 = vunpack.c.h.b16 %v4939
        %v5023 = vunpack.c.l.b16 %v4940
        %v5024 = vunpack.c.h.b16 %v4940
        %v5025 = vunpack.c.l.b16 %v4941
        %v5026 = vunpack.c.h.b16 %v4941
        %v5027 = vunpack.c.l.b16 %v4942
        %v5028 = vunpack.c.h.b16 %v4942
        %v5029 = vunpack.c.l.b16 %v4943
        %v5030 = vunpack.c.h.b16 %v4943
        %v5031 = vunpack.c.l.b16 %v4944
        %v5032 = vunpack.c.h.b16 %v4944
        %v5033 = vunpack.c.l.b16 %v4945
        %v5034 = vunpack.c.h.b16 %v4945
        %v5035 = vunpack.c.l.b16 %v4946
        %v5036 = vunpack.c.h.b16 %v4946
        %v5037 = vunpack.c.l.b16 %v4947
        %v5038 = vunpack.c.h.b16 %v4947
        %v5039 = vunpack.c.l.b16 %v4948
        %v5040 = vunpack.c.h.b16 %v4948
        %v5041 = vunpack.c.l.b16 %v4949
        %v5042 = vunpack.c.h.b16 %v4949
        %v5043 = vunpack.c.l.b16 %v4950
        %v5044 = vunpack.c.h.b16 %v4950
        %v5045 = vunpack.c.l.b16 %v4951
        %v5046 = vunpack.c.h.b16 %v4951
        %v5047 = vunpack.c.l.b16 %v4952
        %v5048 = vunpack.c.h.b16 %v4952
        %v5049 = vunpack.c.l.b16 %v4953
        %v5050 = vunpack.c.h.b16 %v4953
        %v5051 = vunpack.c.l.b16 %v4954
        %v5052 = vunpack.c.h.b16 %v4954
        %v5053 = vunpack.c.l.b16 %v4955
        %v5054 = vunpack.c.h.b16 %v4955
        %v5055 = vunpack.c.l.b16 %v4956
        %v5056 = vunpack.c.h.b16 %v4956
        %v5057 = vunpack.c.l.b16 %v4957
        %v5058 = vunpack.c.h.b16 %v4957
        %v5059 = vunpack.c.l.b16 %v4958
        %v5060 = vunpack.c.h.b16 %v4958
        %v5061 = vunpack.c.l.b16 %v4959
        %v5062 = vunpack.c.h.b16 %v4959
        %v5063 = vunpack.c.l.b16 %v4960
        %v5064 = vunpack.c.h.b16 %v4960
        %v5065 = vunpack.c.l.b16 %v4961
        %v5066 = vunpack.c.h.b16 %v4961
        %v5067 = vunpack.c.l.b16 %v4962
        %v5068 = vunpack.c.h.b16 %v4962
        %v5069 = vunpack.c.l.b16 %v4963
        %v5070 = vunpack.c.h.b16 %v4963
        %v5071 = vunpack.c.l.b16 %v4964
        %v5072 = vunpack.c.h.b16 %v4964
        %v5073 = vunpack.c.l.b16 %v4965
        %v5074 = vunpack.c.h.b16 %v4965
        %v5075 = vpack.c.b16 %v5013, %v5011
        %v5076 = vpack.c.b16 %v5014, %v5012
        %v5077 = vpack.c.b16 %v5017, %v5015
        %v5078 = vpack.c.b16 %v5018, %v5016
        %v5079 = vpack.c.b16 %v5021, %v5019
        %v5080 = vpack.c.b16 %v5022, %v5020
        %v5081 = vpack.c.b16 %v5025, %v5023
        %v5082 = vpack.c.b16 %v5026, %v5024
        %v5083 = vpack.c.b16 %v5029, %v5027
        %v5084 = vpack.c.b16 %v5030, %v5028
        %v5085 = vpack.c.b16 %v5033, %v5031
        %v5086 = vpack.c.b16 %v5034, %v5032
        %v5087 = vpack.c.b16 %v5037, %v5035
        %v5088 = vpack.c.b16 %v5038, %v5036
        %v5089 = vpack.c.b16 %v5041, %v5039
        %v5090 = vpack.c.b16 %v5042, %v5040
        %v5091 = vpack.c.b16 %v5045, %v5043
        %v5092 = vpack.c.b16 %v5046, %v5044
        %v5093 = vpack.c.b16 %v5049, %v5047
        %v5094 = vpack.c.b16 %v5050, %v5048
        %v5095 = vpack.c.b16 %v5053, %v5051
        %v5096 = vpack.c.b16 %v5054, %v5052
        %v5097 = vpack.c.b16 %v5057, %v5055
        %v5098 = vpack.c.b16 %v5058, %v5056
        %v5099 = vpack.c.b16 %v5061, %v5059
        %v5100 = vpack.c.b16 %v5062, %v5060
        %v5101 = vpack.c.b16 %v5065, %v5063
        %v5102 = vpack.c.b16 %v5066, %v5064
        %v5103 = vpack.c.b16 %v5069, %v5067
        %v5104 = vpack.c.b16 %v5070, %v5068
        %v5105 = vpack.c.b16 %v5073, %v5071
        %v5106 = vpack.c.b16 %v5074, %v5072
        %5139 = vmatprep.subr.bf16.mxu0 %v5076
        %5140 = vmatpush1.bf16.msra.mxu0 %v5075
        %5141 = vmatprep.subr.bf16.mxu0 %v5078
        %5142 = vmatpush1.bf16.msra.mxu0 %v5077
        %5143 = vmatprep.subr.bf16.mxu0 %v5080
        %5144 = vmatpush1.bf16.msra.mxu0 %v5079
        %5145 = vmatprep.subr.bf16.mxu0 %v5082
        %5146 = vmatpush1.bf16.msra.mxu0 %v5081
        %5147 = vmatprep.subr.bf16.mxu0 %v5084
        %5148 = vmatpush1.bf16.msra.mxu0 %v5083
        %5149 = vmatprep.subr.bf16.mxu0 %v5086
        %5150 = vmatpush1.bf16.msra.mxu0 %v5085
        %5151 = vmatprep.subr.bf16.mxu0 %v5088
        %5152 = vmatpush1.bf16.msra.mxu0 %v5087
        %5153 = vmatprep.subr.bf16.mxu0 %v5090
        %5154 = vmatpush1.bf16.msra.mxu0 %v5089
        %5155 = vmatprep.subr.bf16.mxu0 %v5092
        %5156 = vmatpush1.bf16.msra.mxu0 %v5091
        %5157 = vmatprep.subr.bf16.mxu0 %v5094
        %5158 = vmatpush1.bf16.msra.mxu0 %v5093
        %5159 = vmatprep.subr.bf16.mxu0 %v5096
        %5160 = vmatpush1.bf16.msra.mxu0 %v5095
        %5161 = vmatprep.subr.bf16.mxu0 %v5098
        %5162 = vmatpush1.bf16.msra.mxu0 %v5097
        %5163 = vmatprep.subr.bf16.mxu0 %v5100
        %5164 = vmatpush1.bf16.msra.mxu0 %v5099
        %5165 = vmatprep.subr.bf16.mxu0 %v5102
        %5166 = vmatpush1.bf16.msra.mxu0 %v5101
        %5167 = vmatprep.subr.bf16.mxu0 %v5104
        %5168 = vmatpush1.bf16.msra.mxu0 %v5103
        %5169 = vmatprep.subr.bf16.mxu0 %v5106
        %5170 = vmatpush1.bf16.msra.mxu0 %v5105
        %5171 = vmatprep.mubr.bf16.mxu0 %v4902
        %5172 = vmatmul.mubr.bf16.gmra.mrb[0].mxu0 %v4901
        %v5173 = vpop.f32.mrb[0].mxu0
        %v5174 = vadd.f32 %v4972, %v5173
        %v5175 = vpop.f32.mrb[0].mxu0
        %v5176 = vadd.f32 %v4976, %v5175
        %v5177 = vpop.f32.mrb[0].mxu0
        %v5178 = vadd.f32 %v4972, %v5177
        %v5179 = vpop.f32.mrb[0].mxu0
        %v5180 = vadd.f32 %v4976, %v5179
        %5181 = vmatprep.mubr.bf16.mxu0 %v4904
        %5182 = vmatmul.mubr.bf16.gmra.mrb[0].mxu0 %v4903
        %v5183 = vpop.f32.mrb[0].mxu0
        %v5184 = vadd.f32 %v4972, %v5183
        %v5185 = vpop.f32.mrb[0].mxu0
        %v5186 = vadd.f32 %v4976, %v5185
        %v5187 = vpop.f32.mrb[0].mxu0
        %v5188 = vadd.f32 %v4972, %v5187
        %v5189 = vpop.f32.mrb[0].mxu0
        %v5190 = vadd.f32 %v4976, %v5189
        %5191 = vmatprep.mubr.bf16.mxu0 %v4906
        %5192 = vmatmul.mubr.bf16.gmra.mrb[0].mxu0 %v4905
        %v5193 = vpop.f32.mrb[0].mxu0
        %v5194 = vadd.f32 %v4972, %v5193
        %v5195 = vpop.f32.mrb[0].mxu0
        %v5196 = vadd.f32 %v4976, %v5195
        %v5197 = vpop.f32.mrb[0].mxu0
        %v5198 = vadd.f32 %v4972, %v5197
        %v5199 = vpop.f32.mrb[0].mxu0
        %v5200 = vadd.f32 %v4976, %v5199
        %5201 = vmatprep.mubr.bf16.mxu0 %v4908
        %5202 = vmatmul.mubr.bf16.gmra.mrb[0].mxu0 %v4907
        %v5203 = vpop.f32.mrb[0].mxu0
        %v5204 = vadd.f32 %v4972, %v5203
        %v5205 = vpop.f32.mrb[0].mxu0
        %v5206 = vadd.f32 %v4976, %v5205
        %v5207 = vpop.f32.mrb[0].mxu0
        %v5208 = vadd.f32 %v4972, %v5207
        %v5209 = vpop.f32.mrb[0].mxu0
        %v5210 = vadd.f32 %v4976, %v5209
        %5211 = vmatprep.mubr.bf16.mxu0 %v4910
        %5212 = vmatmul.mubr.bf16.gmra.mrb[0].mxu0 %v4909
        %v5213 = vpop.f32.mrb[0].mxu0
        %v5214 = vadd.f32 %v4972, %v5213
        %v5215 = vpop.f32.mrb[0].mxu0
        %v5216 = vadd.f32 %v4976, %v5215
        %v5217 = vpop.f32.mrb[0].mxu0
        %v5218 = vadd.f32 %v4972, %v5217
        %v5219 = vpop.f32.mrb[0].mxu0
        %v5220 = vadd.f32 %v4976, %v5219
        %5221 = vmatprep.mubr.bf16.mxu0 %v4912
        %5222 = vmatmul.mubr.bf16.gmra.mrb[0].mxu0 %v4911
        %v5223 = vpop.f32.mrb[0].mxu0
        %v5224 = vadd.f32 %v4972, %v5223
        %v5225 = vpop.f32.mrb[0].mxu0
        %v5226 = vadd.f32 %v4976, %v5225
        %v5227 = vpop.f32.mrb[0].mxu0
        %v5228 = vadd.f32 %v4972, %v5227
        %v5229 = vpop.f32.mrb[0].mxu0
        %v5230 = vadd.f32 %v4976, %v5229
        %5231 = vmatprep.mubr.bf16.mxu0 %v4914
        %5232 = vmatmul.mubr.bf16.gmra.mrb[0].mxu0 %v4913
        %v5233 = vpop.f32.mrb[0].mxu0
        %v5234 = vadd.f32 %v4972, %v5233
        %v5235 = vpop.f32.mrb[0].mxu0
        %v5236 = vadd.f32 %v4976, %v5235
        %v5237 = vpop.f32.mrb[0].mxu0
        %v5238 = vadd.f32 %v4972, %v5237
        %v5239 = vpop.f32.mrb[0].mxu0
        %v5240 = vadd.f32 %v4976, %v5239
        %5241 = vmatprep.mubr.bf16.mxu0 %v4916
        %5242 = vmatmul.mubr.bf16.gmra.mrb[0].mxu0 %v4915
        %v5243 = vpop.f32.mrb[0].mxu0
        %v5244 = vadd.f32 %v4972, %v5243
        %v5245 = vpop.f32.mrb[0].mxu0
        %v5246 = vadd.f32 %v4976, %v5245
        %v5247 = vpop.f32.mrb[0].mxu0
        %v5248 = vadd.f32 %v4972, %v5247
        %v5249 = vpop.f32.mrb[0].mxu0
        %v5250 = vadd.f32 %v4976, %v5249
        %5251 = vmatprep.mubr.bf16.mxu0 %v4918
        %5252 = vmatmul.mubr.bf16.gmra.mrb[0].mxu0 %v4917
        %v5253 = vpop.f32.mrb[0].mxu0
        %v5254 = vadd.f32 %v4972, %v5253
        %v5255 = vpop.f32.mrb[0].mxu0
        %v5256 = vadd.f32 %v4976, %v5255
        %v5257 = vpop.f32.mrb[0].mxu0
        %v5258 = vadd.f32 %v4972, %v5257
        %v5259 = vpop.f32.mrb[0].mxu0
        %v5260 = vadd.f32 %v4976, %v5259
        %5261 = vmatprep.mubr.bf16.mxu0 %v4920
        %5262 = vmatmul.mubr.bf16.gmra.mrb[0].mxu0 %v4919
        %v5263 = vpop.f32.mrb[0].mxu0
        %v5264 = vadd.f32 %v4972, %v5263
        %v5265 = vpop.f32.mrb[0].mxu0
        %v5266 = vadd.f32 %v4976, %v5265
        %v5267 = vpop.f32.mrb[0].mxu0
        %v5268 = vadd.f32 %v4972, %v5267
        %v5269 = vpop.f32.mrb[0].mxu0
        %v5270 = vadd.f32 %v4976, %v5269
        %5271 = vmatprep.mubr.bf16.mxu0 %v4922
        %5272 = vmatmul.mubr.bf16.gmra.mrb[0].mxu0 %v4921
        %v5273 = vpop.f32.mrb[0].mxu0
        %v5274 = vadd.f32 %v4972, %v5273
        %v5275 = vpop.f32.mrb[0].mxu0
        %v5276 = vadd.f32 %v4976, %v5275
        %v5277 = vpop.f32.mrb[0].mxu0
        %v5278 = vadd.f32 %v4972, %v5277
        %v5279 = vpop.f32.mrb[0].mxu0
        %v5280 = vadd.f32 %v4976, %v5279
        %5281 = vmatprep.mubr.bf16.mxu0 %v4924
        %5282 = vmatmul.mubr.bf16.gmra.mrb[0].mxu0 %v4923
        %v5283 = vpop.f32.mrb[0].mxu0
        %v5284 = vadd.f32 %v4972, %v5283
        %v5285 = vpop.f32.mrb[0].mxu0
        %v5286 = vadd.f32 %v4976, %v5285
        %v5287 = vpop.f32.mrb[0].mxu0
        %v5288 = vadd.f32 %v4972, %v5287
        %v5289 = vpop.f32.mrb[0].mxu0
        %v5290 = vadd.f32 %v4976, %v5289
        %5291 = vmatprep.mubr.bf16.mxu0 %v4926
        %5292 = vmatmul.mubr.bf16.gmra.mrb[0].mxu0 %v4925
        %v5293 = vpop.f32.mrb[0].mxu0
        %v5294 = vadd.f32 %v4972, %v5293
        %v5295 = vpop.f32.mrb[0].mxu0
        %v5296 = vadd.f32 %v4976, %v5295
        %v5297 = vpop.f32.mrb[0].mxu0
        %v5298 = vadd.f32 %v4972, %v5297
        %v5299 = vpop.f32.mrb[0].mxu0
        %v5300 = vadd.f32 %v4976, %v5299
        %5301 = vmatprep.mubr.bf16.mxu0 %v4928
        %5302 = vmatmul.mubr.bf16.gmra.mrb[0].mxu0 %v4927
        %v5303 = vpop.f32.mrb[0].mxu0
        %v5304 = vadd.f32 %v4972, %v5303
        %v5305 = vpop.f32.mrb[0].mxu0
        %v5306 = vadd.f32 %v4976, %v5305
        %v5307 = vpop.f32.mrb[0].mxu0
        %v5308 = vadd.f32 %v4972, %v5307
        %v5309 = vpop.f32.mrb[0].mxu0
        %v5310 = vadd.f32 %v4976, %v5309
        %5311 = vmatprep.mubr.bf16.mxu0 %v4930
        %5312 = vmatmul.mubr.bf16.gmra.mrb[0].mxu0 %v4929
        %v5313 = vpop.f32.mrb[0].mxu0
        %v5314 = vadd.f32 %v4972, %v5313
        %v5315 = vpop.f32.mrb[0].mxu0
        %v5316 = vadd.f32 %v4976, %v5315
        %v5317 = vpop.f32.mrb[0].mxu0
        %v5318 = vadd.f32 %v4972, %v5317
        %v5319 = vpop.f32.mrb[0].mxu0
        %v5320 = vadd.f32 %v4976, %v5319
        %5321 = vmatprep.mubr.bf16.mxu0 %v4932
        %5322 = vmatmul.mubr.bf16.gmra.mrb[0].mxu0 %v4931
        %v5323 = vpop.f32.mrb[0].mxu0
        %v5324 = vadd.f32 %v4972, %v5323
        %v5325 = vpop.f32.mrb[0].mxu0
        %v5326 = vadd.f32 %v4976, %v5325
        %v5327 = vpop.f32.mrb[0].mxu0
        %v5328 = vadd.f32 %v4972, %v5327
        %v5329 = vpop.f32.mrb[0].mxu0
        %v5330 = vadd.f32 %v4976, %v5329
        %5331 = vdwg.mxu0
        %v5332 = vmul.f32 %v4220, %v5174
        %v5333 = vmul.f32 %v4221, %v5176
        %v5334 = vmul.f32 %v4226, %v5178
        %v5335 = vmul.f32 %v4227, %v5180
        %v5336 = vmul.f32 %v4232, %v5184
        %v5337 = vmul.f32 %v4233, %v5186
        %v5338 = vmul.f32 %v4238, %v5188
        %v5339 = vmul.f32 %v4239, %v5190
        %v5340 = vmul.f32 %v4244, %v5194
        %v5341 = vmul.f32 %v4245, %v5196
        %v5342 = vmul.f32 %v4250, %v5198
        %v5343 = vmul.f32 %v4251, %v5200
        %v5344 = vmul.f32 %v4256, %v5204
        %v5345 = vmul.f32 %v4257, %v5206
        %v5346 = vmul.f32 %v4262, %v5208
        %v5347 = vmul.f32 %v4263, %v5210
        %v5348 = vmul.f32 %v4268, %v5214
        %v5349 = vmul.f32 %v4269, %v5216
        %v5350 = vmul.f32 %v4274, %v5218
        %v5351 = vmul.f32 %v4275, %v5220
        %v5352 = vmul.f32 %v4280, %v5224
        %v5353 = vmul.f32 %v4281, %v5226
        %v5354 = vmul.f32 %v4286, %v5228
        %v5355 = vmul.f32 %v4287, %v5230
        %v5356 = vmul.f32 %v4292, %v5234
        %v5357 = vmul.f32 %v4293, %v5236
        %v5358 = vmul.f32 %v4298, %v5238
        %v5359 = vmul.f32 %v4299, %v5240
        %v5360 = vmul.f32 %v4304, %v5244
        %v5361 = vmul.f32 %v4305, %v5246
        %v5362 = vmul.f32 %v4310, %v5248
        %v5363 = vmul.f32 %v4311, %v5250
        %v5364 = vmul.f32 %v4316, %v5254
        %v5365 = vmul.f32 %v4317, %v5256
        %v5366 = vmul.f32 %v4322, %v5258
        %v5367 = vmul.f32 %v4323, %v5260
        %v5368 = vmul.f32 %v4328, %v5264
        %v5369 = vmul.f32 %v4329, %v5266
        %v5370 = vmul.f32 %v4334, %v5268
        %v5371 = vmul.f32 %v4335, %v5270
        %v5372 = vmul.f32 %v4340, %v5274
        %v5373 = vmul.f32 %v4341, %v5276
        %v5374 = vmul.f32 %v4346, %v5278
        %v5375 = vmul.f32 %v4347, %v5280
        %v5376 = vmul.f32 %v4352, %v5284
        %v5377 = vmul.f32 %v4353, %v5286
        %v5378 = vmul.f32 %v4358, %v5288
        %v5379 = vmul.f32 %v4359, %v5290
        %v5380 = vmul.f32 %v4364, %v5294
        %v5381 = vmul.f32 %v4365, %v5296
        %v5382 = vmul.f32 %v4370, %v5298
        %v5383 = vmul.f32 %v4371, %v5300
        %v5384 = vmul.f32 %v4376, %v5304
        %v5385 = vmul.f32 %v4377, %v5306
        %v5386 = vmul.f32 %v4382, %v5308
        %v5387 = vmul.f32 %v4383, %v5310
        %v5388 = vmul.f32 %v4388, %v5314
        %v5389 = vmul.f32 %v4389, %v5316
        %v5390 = vmul.f32 %v4394, %v5318
        %v5391 = vmul.f32 %v4395, %v5320
        %v5392 = vmul.f32 %v4400, %v5324
        %v5393 = vmul.f32 %v4401, %v5326
        %v5394 = vmul.f32 %v4406, %v5328
        %v5395 = vmul.f32 %v4407, %v5330
        %v5396 = vpack.c.bf16 %v5334, %v5332
        %v5397 = vpack.c.bf16 %v5335, %v5333
        %v5398 = vpack.c.bf16 %v5338, %v5336
        %v5399 = vpack.c.bf16 %v5339, %v5337
        %v5400 = vpack.c.bf16 %v5342, %v5340
        %v5401 = vpack.c.bf16 %v5343, %v5341
        %v5402 = vpack.c.bf16 %v5346, %v5344
        %v5403 = vpack.c.bf16 %v5347, %v5345
        %v5404 = vpack.c.bf16 %v5350, %v5348
        %v5405 = vpack.c.bf16 %v5351, %v5349
        %v5406 = vpack.c.bf16 %v5354, %v5352
        %v5407 = vpack.c.bf16 %v5355, %v5353
        %v5408 = vpack.c.bf16 %v5358, %v5356
        %v5409 = vpack.c.bf16 %v5359, %v5357
        %v5410 = vpack.c.bf16 %v5362, %v5360
        %v5411 = vpack.c.bf16 %v5363, %v5361
        %v5412 = vpack.c.bf16 %v5366, %v5364
        %v5413 = vpack.c.bf16 %v5367, %v5365
        %v5414 = vpack.c.bf16 %v5370, %v5368
        %v5415 = vpack.c.bf16 %v5371, %v5369
        %v5416 = vpack.c.bf16 %v5374, %v5372
        %v5417 = vpack.c.bf16 %v5375, %v5373
        %v5418 = vpack.c.bf16 %v5378, %v5376
        %v5419 = vpack.c.bf16 %v5379, %v5377
        %v5420 = vpack.c.bf16 %v5382, %v5380
        %v5421 = vpack.c.bf16 %v5383, %v5381
        %v5422 = vpack.c.bf16 %v5386, %v5384
        %v5423 = vpack.c.bf16 %v5387, %v5385
        %v5424 = vpack.c.bf16 %v5390, %v5388
        %v5425 = vpack.c.bf16 %v5391, %v5389
        %v5426 = vpack.c.bf16 %v5394, %v5392
        %v5427 = vpack.c.bf16 %v5395, %v5393
        %v5428 = vld [vmem:[#allocation2] sm:$0xf]
        %v5429 = vld [vmem:[#allocation2 + $0x4] sm:$0xf]
        %v5430 = vld [vmem:[#allocation2 + $0x8] sm:$0xf]
        %v5431 = vld [vmem:[#allocation2 + $0xc] sm:$0xf]
        %v5432 = vld [vmem:[#allocation2 + $0x10] sm:$0xf]
        %v5433 = vld [vmem:[#allocation2 + $0x14] sm:$0xf]
        %v5434 = vld [vmem:[#allocation2 + $0x18] sm:$0xf]
        %v5435 = vld [vmem:[#allocation2 + $0x1c] sm:$0xf]
        %v5436 = vld [vmem:[#allocation2 + $0x20] sm:$0xf]
        %v5437 = vld [vmem:[#allocation2 + $0x24] sm:$0xf]
        %v5438 = vld [vmem:[#allocation2 + $0x28] sm:$0xf]
        %v5439 = vld [vmem:[#allocation2 + $0x2c] sm:$0xf]
        %v5440 = vld [vmem:[#allocation2 + $0x30] sm:$0xf]
        %v5441 = vld [vmem:[#allocation2 + $0x34] sm:$0xf]
        %v5442 = vld [vmem:[#allocation2 + $0x38] sm:$0xf]
        %v5443 = vld [vmem:[#allocation2 + $0x3c] sm:$0xf]
        %v5444 = vld [vmem:[#allocation2 + $0x40] sm:$0xf]
        %v5445 = vld [vmem:[#allocation2 + $0x44] sm:$0xf]
        %v5446 = vld [vmem:[#allocation2 + $0x48] sm:$0xf]
        %v5447 = vld [vmem:[#allocation2 + $0x4c] sm:$0xf]
        %v5448 = vld [vmem:[#allocation2 + $0x50] sm:$0xf]
        %v5449 = vld [vmem:[#allocation2 + $0x54] sm:$0xf]
        %v5450 = vld [vmem:[#allocation2 + $0x58] sm:$0xf]
        %v5451 = vld [vmem:[#allocation2 + $0x5c] sm:$0xf]
        %v5452 = vld [vmem:[#allocation2 + $0x60] sm:$0xf]
        %v5453 = vld [vmem:[#allocation2 + $0x64] sm:$0xf]
        %v5454 = vld [vmem:[#allocation2 + $0x68] sm:$0xf]
        %v5455 = vld [vmem:[#allocation2 + $0x6c] sm:$0xf]
        %v5456 = vld [vmem:[#allocation2 + $0x70] sm:$0xf]
        %v5457 = vld [vmem:[#allocation2 + $0x74] sm:$0xf]
        %v5458 = vld [vmem:[#allocation2 + $0x78] sm:$0xf]
        %v5459 = vld [vmem:[#allocation2 + $0x7c] sm:$0xf]
        %v5460 = vld [vmem:[%s6] sm:$0x1]
        %v5462 = vlaneseq
        %v5463 = vshrl.u32 %v5462, 7
        %v5464 = vsub.s32 0, %v5463
        %v5465 = vrot.slane %v5460, %v5464
        %v5499 = vunpack.c.l.b16 %v5428
        %v5500 = vunpack.c.l.b16 %v5429
        %v5501 = vunpack.c.l.b16 %v5430
        %v5502 = vunpack.c.l.b16 %v5431
        %v5503 = vunpack.c.l.b16 %v5432
        %v5504 = vunpack.c.l.b16 %v5433
        %v5505 = vunpack.c.l.b16 %v5434
        %v5506 = vunpack.c.l.b16 %v5435
        %v5507 = vunpack.c.l.b16 %v5436
        %v5508 = vunpack.c.l.b16 %v5437
        %v5509 = vunpack.c.l.b16 %v5438
        %v5510 = vunpack.c.l.b16 %v5439
        %v5511 = vunpack.c.l.b16 %v5440
        %v5512 = vunpack.c.l.b16 %v5441
        %v5513 = vunpack.c.l.b16 %v5442
        %v5514 = vunpack.c.l.b16 %v5443
        %v5515 = vunpack.c.l.b16 %v5444
        %v5516 = vunpack.c.l.b16 %v5445
        %v5517 = vunpack.c.l.b16 %v5446
        %v5518 = vunpack.c.l.b16 %v5447
        %v5519 = vunpack.c.l.b16 %v5448
        %v5520 = vunpack.c.l.b16 %v5449
        %v5521 = vunpack.c.l.b16 %v5450
        %v5522 = vunpack.c.l.b16 %v5451
        %v5523 = vunpack.c.l.b16 %v5452
        %v5524 = vunpack.c.l.b16 %v5453
        %v5525 = vunpack.c.l.b16 %v5454
        %v5526 = vunpack.c.l.b16 %v5455
        %v5527 = vunpack.c.l.b16 %v5456
        %v5528 = vunpack.c.l.b16 %v5457
        %v5529 = vunpack.c.l.b16 %v5458
        %v5530 = vunpack.c.l.b16 %v5459
        %v5531 = vpack.c.b16 %v5500, %v5499
        %v5532 = vpack.c.b16 %v5502, %v5501
        %v5533 = vpack.c.b16 %v5504, %v5503
        %v5534 = vpack.c.b16 %v5506, %v5505
        %v5535 = vpack.c.b16 %v5508, %v5507
        %v5536 = vpack.c.b16 %v5510, %v5509
        %v5537 = vpack.c.b16 %v5512, %v5511
        %v5538 = vpack.c.b16 %v5514, %v5513
        %v5539 = vpack.c.b16 %v5516, %v5515
        %v5540 = vpack.c.b16 %v5518, %v5517
        %v5541 = vpack.c.b16 %v5520, %v5519
        %v5542 = vpack.c.b16 %v5522, %v5521
        %v5543 = vpack.c.b16 %v5524, %v5523
        %v5544 = vpack.c.b16 %v5526, %v5525
        %v5545 = vpack.c.b16 %v5528, %v5527
        %v5546 = vpack.c.b16 %v5530, %v5529
        %5563 = vmatprep.subr.bf16.mxu0 0
        %5564 = vmatpush1.bf16.msra.mxu0 %v5531
        %5565 = vmatprep.subr.bf16.mxu0 0
        %5566 = vmatpush1.bf16.msra.mxu0 %v5532
        %5567 = vmatprep.subr.bf16.mxu0 0
        %5568 = vmatpush1.bf16.msra.mxu0 %v5533
        %5569 = vmatprep.subr.bf16.mxu0 0
        %5570 = vmatpush1.bf16.msra.mxu0 %v5534
        %5571 = vmatprep.subr.bf16.mxu0 0
        %5572 = vmatpush1.bf16.msra.mxu0 %v5535
        %5573 = vmatprep.subr.bf16.mxu0 0
        %5574 = vmatpush1.bf16.msra.mxu0 %v5536
        %5575 = vmatprep.subr.bf16.mxu0 0
        %5576 = vmatpush1.bf16.msra.mxu0 %v5537
        %5577 = vmatprep.subr.bf16.mxu0 0
        %5578 = vmatpush1.bf16.msra.mxu0 %v5538
        %5579 = vmatprep.subr.bf16.mxu0 0
        %5580 = vmatpush1.bf16.msra.mxu0 %v5539
        %5581 = vmatprep.subr.bf16.mxu0 0
        %5582 = vmatpush1.bf16.msra.mxu0 %v5540
        %5583 = vmatprep.subr.bf16.mxu0 0
        %5584 = vmatpush1.bf16.msra.mxu0 %v5541
        %5585 = vmatprep.subr.bf16.mxu0 0
        %5586 = vmatpush1.bf16.msra.mxu0 %v5542
        %5587 = vmatprep.subr.bf16.mxu0 0
        %5588 = vmatpush1.bf16.msra.mxu0 %v5543
        %5589 = vmatprep.subr.bf16.mxu0 0
        %5590 = vmatpush1.bf16.msra.mxu0 %v5544
        %5591 = vmatprep.subr.bf16.mxu0 0
        %5592 = vmatpush1.bf16.msra.mxu0 %v5545
        %5593 = vmatprep.subr.bf16.mxu0 0
        %5594 = vmatpush1.bf16.msra.mxu0 %v5546
        %5595 = vmatprep.mubr.bf16.mxu0 %v5397
        %5596 = vmatmul.mubr.bf16.gmra.mrb[0].mxu0 %v5396
        %v5597 = vpop.f32.mrb[0].mxu0
        %v5598 = vadd.f32 %v5465, %v5597
        %v5599 = vpop.f32.mrb[0].mxu0
        %v5600 = vpop.f32.mrb[0].mxu0
        %v5601 = vadd.f32 %v5465, %v5600
        %v5602 = vpop.f32.mrb[0].mxu0
        %5603 = vmatprep.mubr.bf16.mxu0 %v5399
        %5604 = vmatmul.mubr.bf16.gmra.mrb[0].mxu0 %v5398
        %v5605 = vpop.f32.mrb[0].mxu0
        %v5606 = vadd.f32 %v5465, %v5605
        %v5607 = vpop.f32.mrb[0].mxu0
        %v5608 = vpop.f32.mrb[0].mxu0
        %v5609 = vadd.f32 %v5465, %v5608
        %v5610 = vpop.f32.mrb[0].mxu0
        %5611 = vmatprep.mubr.bf16.mxu0 %v5401
        %5612 = vmatmul.mubr.bf16.gmra.mrb[0].mxu0 %v5400
        %v5613 = vpop.f32.mrb[0].mxu0
        %v5614 = vadd.f32 %v5465, %v5613
        %v5615 = vpop.f32.mrb[0].mxu0
        %v5616 = vpop.f32.mrb[0].mxu0
        %v5617 = vadd.f32 %v5465, %v5616
        %v5618 = vpop.f32.mrb[0].mxu0
        %5619 = vmatprep.mubr.bf16.mxu0 %v5403
        %5620 = vmatmul.mubr.bf16.gmra.mrb[0].mxu0 %v5402
        %v5621 = vpop.f32.mrb[0].mxu0
        %v5622 = vadd.f32 %v5465, %v5621
        %v5623 = vpop.f32.mrb[0].mxu0
        %v5624 = vpop.f32.mrb[0].mxu0
        %v5625 = vadd.f32 %v5465, %v5624
        %v5626 = vpop.f32.mrb[0].mxu0
        %5627 = vmatprep.mubr.bf16.mxu0 %v5405
        %5628 = vmatmul.mubr.bf16.gmra.mrb[0].mxu0 %v5404
        %v5629 = vpop.f32.mrb[0].mxu0
        %v5630 = vadd.f32 %v5465, %v5629
        %v5631 = vpop.f32.mrb[0].mxu0
        %v5632 = vpop.f32.mrb[0].mxu0
        %v5633 = vadd.f32 %v5465, %v5632
        %v5634 = vpop.f32.mrb[0].mxu0
        %5635 = vmatprep.mubr.bf16.mxu0 %v5407
        %5636 = vmatmul.mubr.bf16.gmra.mrb[0].mxu0 %v5406
        %v5637 = vpop.f32.mrb[0].mxu0
        %v5638 = vadd.f32 %v5465, %v5637
        %v5639 = vpop.f32.mrb[0].mxu0
        %v5640 = vpop.f32.mrb[0].mxu0
        %v5641 = vadd.f32 %v5465, %v5640
        %v5642 = vpop.f32.mrb[0].mxu0
        %5643 = vmatprep.mubr.bf16.mxu0 %v5409
        %5644 = vmatmul.mubr.bf16.gmra.mrb[0].mxu0 %v5408
        %v5645 = vpop.f32.mrb[0].mxu0
        %v5646 = vadd.f32 %v5465, %v5645
        %v5647 = vpop.f32.mrb[0].mxu0
        %v5648 = vpop.f32.mrb[0].mxu0
        %v5649 = vadd.f32 %v5465, %v5648
        %v5650 = vpop.f32.mrb[0].mxu0
        %5651 = vmatprep.mubr.bf16.mxu0 %v5411
        %5652 = vmatmul.mubr.bf16.gmra.mrb[0].mxu0 %v5410
        %v5653 = vpop.f32.mrb[0].mxu0
        %v5654 = vadd.f32 %v5465, %v5653
        %v5655 = vpop.f32.mrb[0].mxu0
        %v5656 = vpop.f32.mrb[0].mxu0
        %v5657 = vadd.f32 %v5465, %v5656
        %v5658 = vpop.f32.mrb[0].mxu0
        %5659 = vmatprep.mubr.bf16.mxu0 %v5413
        %5660 = vmatmul.mubr.bf16.gmra.mrb[0].mxu0 %v5412
        %v5661 = vpop.f32.mrb[0].mxu0
        %v5662 = vadd.f32 %v5465, %v5661
        %v5663 = vpop.f32.mrb[0].mxu0
        %v5664 = vpop.f32.mrb[0].mxu0
        %v5665 = vadd.f32 %v5465, %v5664
        %v5666 = vpop.f32.mrb[0].mxu0
        %5667 = vmatprep.mubr.bf16.mxu0 %v5415
        %5668 = vmatmul.mubr.bf16.gmra.mrb[0].mxu0 %v5414
        %v5669 = vpop.f32.mrb[0].mxu0
        %v5670 = vadd.f32 %v5465, %v5669
        %v5671 = vpop.f32.mrb[0].mxu0
        %v5672 = vpop.f32.mrb[0].mxu0
        %v5673 = vadd.f32 %v5465, %v5672
        %v5674 = vpop.f32.mrb[0].mxu0
        %5675 = vmatprep.mubr.bf16.mxu0 %v5417
        %5676 = vmatmul.mubr.bf16.gmra.mrb[0].mxu0 %v5416
        %v5677 = vpop.f32.mrb[0].mxu0
        %v5678 = vadd.f32 %v5465, %v5677
        %v5679 = vpop.f32.mrb[0].mxu0
        %v5680 = vpop.f32.mrb[0].mxu0
        %v5681 = vadd.f32 %v5465, %v5680
        %v5682 = vpop.f32.mrb[0].mxu0
        %5683 = vmatprep.mubr.bf16.mxu0 %v5419
        %5684 = vmatmul.mubr.bf16.gmra.mrb[0].mxu0 %v5418
        %v5685 = vpop.f32.mrb[0].mxu0
        %v5686 = vadd.f32 %v5465, %v5685
        %v5687 = vpop.f32.mrb[0].mxu0
        %v5688 = vpop.f32.mrb[0].mxu0
        %v5689 = vadd.f32 %v5465, %v5688
        %v5690 = vpop.f32.mrb[0].mxu0
        %5691 = vmatprep.mubr.bf16.mxu0 %v5421
        %5692 = vmatmul.mubr.bf16.gmra.mrb[0].mxu0 %v5420
        %v5693 = vpop.f32.mrb[0].mxu0
        %v5694 = vadd.f32 %v5465, %v5693
        %v5695 = vpop.f32.mrb[0].mxu0
        %v5696 = vpop.f32.mrb[0].mxu0
        %v5697 = vadd.f32 %v5465, %v5696
        %v5698 = vpop.f32.mrb[0].mxu0
        %5699 = vmatprep.mubr.bf16.mxu0 %v5423
        %5700 = vmatmul.mubr.bf16.gmra.mrb[0].mxu0 %v5422
        %v5701 = vpop.f32.mrb[0].mxu0
        %v5702 = vadd.f32 %v5465, %v5701
        %v5703 = vpop.f32.mrb[0].mxu0
        %v5704 = vpop.f32.mrb[0].mxu0
        %v5705 = vadd.f32 %v5465, %v5704
        %v5706 = vpop.f32.mrb[0].mxu0
        %5707 = vmatprep.mubr.bf16.mxu0 %v5425
        %5708 = vmatmul.mubr.bf16.gmra.mrb[0].mxu0 %v5424
        %v5709 = vpop.f32.mrb[0].mxu0
        %v5710 = vadd.f32 %v5465, %v5709
        %v5711 = vpop.f32.mrb[0].mxu0
        %v5712 = vpop.f32.mrb[0].mxu0
        %v5713 = vadd.f32 %v5465, %v5712
        %v5714 = vpop.f32.mrb[0].mxu0
        %5715 = vmatprep.mubr.bf16.mxu0 %v5427
        %5716 = vmatmul.mubr.bf16.gmra.mrb[0].mxu0 %v5426
        %v5717 = vpop.f32.mrb[0].mxu0
        %v5718 = vadd.f32 %v5465, %v5717
        %v5719 = vpop.f32.mrb[0].mxu0
        %v5720 = vpop.f32.mrb[0].mxu0
        %v5721 = vadd.f32 %v5465, %v5720
        %v5722 = vpop.f32.mrb[0].mxu0
        %5723 = vdwg.mxu0
        %5724 = vst [vmem:[%s287] sm:$0xff] %v5598
        %5725 = vst [vmem:[%s287 + $0x8] sm:$0xff] %v5601
        %5726 = vst [vmem:[%s287 + $0x10] sm:$0xff] %v5606
        %5727 = vst [vmem:[%s287 + $0x18] sm:$0xff] %v5609
        %5728 = vst [vmem:[%s287 + $0x20] sm:$0xff] %v5614
        %5729 = vst [vmem:[%s287 + $0x28] sm:$0xff] %v5617
        %5730 = vst [vmem:[%s287 + $0x30] sm:$0xff] %v5622
        %5731 = vst [vmem:[%s287 + $0x38] sm:$0xff] %v5625
        %5732 = vst [vmem:[%s287 + $0x40] sm:$0xff] %v5630
        %5733 = vst [vmem:[%s287 + $0x48] sm:$0xff] %v5633
        %5734 = vst [vmem:[%s287 + $0x50] sm:$0xff] %v5638
        %5735 = vst [vmem:[%s287 + $0x58] sm:$0xff] %v5641
        %5736 = vst [vmem:[%s287 + $0x60] sm:$0xff] %v5646
        %5737 = vst [vmem:[%s287 + $0x68] sm:$0xff] %v5649
        %5738 = vst [vmem:[%s287 + $0x70] sm:$0xff] %v5654
        %5739 = vst [vmem:[%s287 + $0x78] sm:$0xff] %v5657
        %5740 = vst [vmem:[%s287 + $0x80] sm:$0xff] %v5662
        %5741 = vst [vmem:[%s287 + $0x88] sm:$0xff] %v5665
        %5742 = vst [vmem:[%s287 + $0x90] sm:$0xff] %v5670
        %5743 = vst [vmem:[%s287 + $0x98] sm:$0xff] %v5673
        %5744 = vst [vmem:[%s287 + $0xa0] sm:$0xff] %v5678
        %5745 = vst [vmem:[%s287 + $0xa8] sm:$0xff] %v5681
        %5746 = vst [vmem:[%s287 + $0xb0] sm:$0xff] %v5686
        %5747 = vst [vmem:[%s287 + $0xb8] sm:$0xff] %v5689
        %5748 = vst [vmem:[%s287 + $0xc0] sm:$0xff] %v5694
        %5749 = vst [vmem:[%s287 + $0xc8] sm:$0xff] %v5697
        %5750 = vst [vmem:[%s287 + $0xd0] sm:$0xff] %v5702
        %5751 = vst [vmem:[%s287 + $0xd8] sm:$0xff] %v5705
        %5752 = vst [vmem:[%s287 + $0xe0] sm:$0xff] %v5710
        %5753 = vst [vmem:[%s287 + $0xe8] sm:$0xff] %v5713
        %5754 = vst [vmem:[%s287 + $0xf0] sm:$0xff] %v5718
        %5755 = vst [vmem:[%s287 + $0xf8] sm:$0xff] %v5721
        %s5756 = sand.u32 %s182, 1
        %s5757 = scalar_lea.sflag [#allocation4], %s5756
        %s5758 = sand.u32 %s182, 1
        %s5759 = smul.addr %s5758, 256
        %s5760 = scalar_lea.vmem [#allocation5], %s5759
        // Predicated region
        $region53: #{tpu_custom_call.1} parent=47 // pred_check
          %p5761 = pneg %p192
        $region54: #{tpu_custom_call.1} parent=47 // pred_check_branch
          %5763 = sbr.rel (%p5761) target = $region56
        $region55: #{tpu_custom_call.1} parent=47 // pred_region
          %s5764 = smul.u32 32, %s22
          %s5766 = ssub.s32 4096, 4096
          %5767 = vsyncadd %s5757, %s5766
          %s5768 = smul.addr %s5764, 128
          %s5769 = scalar_lea.hbm %s7, %s5768
          %s5770 = sshll.u32 %s5760, 4
          %s5771 = int_to_ptr.vmem [resolvable:$true] %s5770
          %5776 = dma.vmem_to_hbm [thread:$0]  %s5771, 4096, %s5769, %s5757, 128, 128, 8
        $region56: #{tpu_custom_call.1} parent=47 // pred_fallthru
          _
      $region48: #{tpu_custom_call.1} parent=5 // pred_fallthru
        _
      %p5777 = scmp.le.s32.totalorder 2, %s17
      // Predicated region
      $region57: #{tpu_custom_call.1} parent=5 // pred_check
        %p5778 = pneg %p5777
      $region58: #{tpu_custom_call.1} parent=5 // pred_check_branch
        %5780 = sbr.rel (%p5778) target = $region60
      $region59: #{tpu_custom_call.1} parent=5 // pred_region
        %s5781 = ssub.s32 %s17, 2
        // Predicated region
        $region61: #{tpu_custom_call.1} parent=59 // pred_check
          %p5782 = pneg %p198
        $region62: #{tpu_custom_call.1} parent=59 // pred_check_branch
          %5784 = sbr.rel (%p5782) target = $region64
        $region63: #{tpu_custom_call.1} parent=59 // pred_region
          %s5785 = sand.u32 %s183, 1
          %s5786 = scalar_lea.sflag [#allocation4], %s5785
          %s5787 = sand.u32 %s183, 1
          %s5788 = smul.addr %s5787, 256
          %s5789 = scalar_lea.vmem [#allocation5], %s5788
          %5790 = dma.done %s5786, 4096
        $region64: #{tpu_custom_call.1} parent=59 // pred_fallthru
          _
      $region60: #{tpu_custom_call.1} parent=5 // pred_fallthru
        _
    $region6: #{tpu_custom_call.1} parent=1 // loop_footer
      %s21 = sadd.s32 1, %s17
    $region7: #{tpu_custom_call.1} parent=1 // loop_footer_branch
      %16 = sbr.rel target = $region3
    $region8: #{tpu_custom_call.1} parent=1 // loop_exit
      _
    %5791 = vsyncpa [#allocation3], 1
    %s5792 = scalar_lea.sflag [#allocation3], 1
    %5793 = vsyncpa %s5792, 1
    %5794 = vsyncpa [#allocation4], 1
    %s5795 = scalar_lea.sflag [#allocation4], 1
    %5796 = vsyncpa %s5795, 1

</llo_original>
